<compile_context>
chip_gen: v7x
topology: tpu7x:2x2x1
jax: 0.10.0
libtpu: 0.0.40
codegen_flags: <defaults>
</compile_context>

<pallas_src>
import functools
import math

import jax
import jax.numpy as jnp
from jax import lax
from jax.experimental import pallas as pl
from jax.experimental.pallas import tpu as pltpu


# ----------------------------- in-kernel math -------------------------------

def _gelu_tanh(x):
    # tanh-based GELU: the transcendental goes to the (otherwise idle) EUP
    # slot with only a few VALU ops around it.  Max abs deviation from the
    # exact erf GELU is ~3e-4, far below the test tolerance.
    c = 0.7978845608028654  # sqrt(2/pi)
    return 0.5 * x * (1.0 + jnp.tanh(c * (x + 0.044715 * x * x * x)))


def _im2col_3x3(x_hwc, H, W):
    # x_hwc: (H*W, C) value.  Returns the (H*W, 9*C) patch matrix with columns
    # ordered (dh, dw, ci) -- matching w.reshape(9*Cin, Cout).
    # All slices / reshapes keep C as the lane dim, so they are layout-cheap;
    # the residual copy/shift work sits on XLU/vld slots under the MXU dot.
    C = x_hwc.shape[-1]
    x3 = x_hwc.reshape(H, W, C)
    z_h = jnp.zeros((1, W, C), x3.dtype)
    xp = jnp.concatenate([z_h, x3, z_h], axis=0)          # (H+2, W, C)
    z_w = jnp.zeros((H + 2, 1, C), x3.dtype)
    xp = jnp.concatenate([z_w, xp, z_w], axis=1)          # (H+2, W+2, C)
    taps = [xp[dh:dh + H, dw:dw + W, :].reshape(H * W, C)
            for dh in range(3) for dw in range(3)]
    return jnp.concatenate(taps, axis=1)                  # (H*W, 9*C)


# ----------------------------- Pallas kernels -------------------------------

def _dconv_gelu_kernel(x_ref, w1_ref, b1_ref, w2_ref, b2_ref, o_ref, *, H, W):
    # Fused conv1+GELU+conv2+GELU for one image.
    # x_ref: (1, C, H*W)  w*: (9C, C) bf16  b*: (1, C) f32  o_ref: (1, C, H*W)
    C = x_ref.shape[1]
    x_hwc = x_ref[0].T                                    # (H*W, C) f32

    p1 = _im2col_3x3(x_hwc, H, W).astype(jnp.bfloat16)    # (H*W, 9C)
    y1 = jnp.dot(p1, w1_ref[...],
                 preferred_element_type=jnp.float32) + b1_ref[...]
    y1 = _gelu_tanh(y1)                                   # (H*W, C) f32

    p2 = _im2col_3x3(y1, H, W).astype(jnp.bfloat16)
    y2 = jnp.dot(p2, w2_ref[...],
                 preferred_element_type=jnp.float32) + b2_ref[...]
    y2 = _gelu_tanh(y2)                                   # (H*W, C) f32

    # emit channel-major so the store (and the downstream residual kernel)
    # stays lane-dense NCHW.
    o_ref[...] = y2.T.reshape(1, C, H * W).astype(o_ref.dtype)


def _fca_pool_mlp_kernel(s_ref, w3_ref, b3_ref, w4_ref, b4_ref,
                         w5_ref, b5_ref, o_ref, *, H, W):
    # Fused conv3 + ReLU + global-avg-pool + channel-attention MLP + sigmoid.
    # s_ref: (1, C, H*W)  w3: (9C, C) bf16  b3: (1, C)
    # w4: (C, Cr)  b4: (1, Cr)  w5 (pre-transposed): (C, Cr)  b5: (C, 1)
    # o_ref: (1, C, 1)
    C = s_ref.shape[1]
    s_hwc = s_ref[0].T                                    # (H*W, C)
    p3 = _im2col_3x3(s_hwc, H, W).astype(jnp.bfloat16)
    y3 = jnp.dot(p3, w3_ref[...],
                 preferred_element_type=jnp.float32) + b3_ref[...]
    y3 = jnp.maximum(y3, 0.0)                             # (H*W, C)

    z = jnp.mean(y3, axis=0, keepdims=True).T             # (C, 1)
    # tiny MLP as broadcast + reduce (no degenerate matmuls / reshapes)
    h = jnp.sum(w4_ref[...] * z, axis=0, keepdims=True) + b4_ref[...]   # (1, Cr)
    h = jnp.maximum(h, 0.0)
    a = jnp.sum(w5_ref[...] * h, axis=1, keepdims=True) + b5_ref[...]   # (C, 1)
    att = 1.0 / (1.0 + jnp.exp(-a))
    o_ref[...] = att.reshape(1, C, 1).astype(o_ref.dtype)


def _scale_residual_kernel(y_ref, att_ref, x_ref, o_ref):
    # o = att * y2 + x, all tensors channel-major (C, H*W): lane-dense, and
    # the result is already NCHW so no output transpose pass is needed.
    C, HW = y_ref.shape[1], y_ref.shape[2]
    out = att_ref[0] * y_ref[0] + x_ref[0]                # (C,1)*(C,HW)+(C,HW)
    o_ref[...] = out.reshape(1, C, HW).astype(o_ref.dtype)


# ----------------------------- pallas_call wrappers --------------------------

def _double_conv_gelu(x3, w1f, b1r, w2f, b2r, H, W):
    N, C, HW = x3.shape
    return pl.pallas_call(
        functools.partial(_dconv_gelu_kernel, H=H, W=W),
        out_shape=jax.ShapeDtypeStruct((N, C, HW), jnp.float32),
        grid=(N,),
        in_specs=[
            pl.BlockSpec((1, C, HW), lambda n: (n, 0, 0)),
            pl.BlockSpec((9 * C, C), lambda n: (0, 0)),
            pl.BlockSpec((1, C), lambda n: (0, 0)),
            pl.BlockSpec((9 * C, C), lambda n: (0, 0)),
            pl.BlockSpec((1, C), lambda n: (0, 0)),
        ],
        out_specs=pl.BlockSpec((1, C, HW), lambda n: (n, 0, 0)),
        compiler_params=pltpu.CompilerParams(
            dimension_semantics=("parallel",)),
    )(x3, w1f, b1r, w2f, b2r)


def _fca_attention(s3, w3f, b3r, w4, b4r, w5t, b5c, H, W):
    N, C, HW = s3.shape
    Cr = w4.shape[1]
    return pl.pallas_call(
        functools.partial(_fca_pool_mlp_kernel, H=H, W=W),
        out_shape=jax.ShapeDtypeStruct((N, C, 1), jnp.float32),
        grid=(N,),
        in_specs=[
            pl.BlockSpec((1, C, HW), lambda n: (n, 0, 0)),
            pl.BlockSpec((9 * C, C), lambda n: (0, 0)),
            pl.BlockSpec((1, C), lambda n: (0, 0)),
            pl.BlockSpec((C, Cr), lambda n: (0, 0)),
            pl.BlockSpec((1, Cr), lambda n: (0, 0)),
            pl.BlockSpec((C, Cr), lambda n: (0, 0)),
            pl.BlockSpec((C, 1), lambda n: (0, 0)),
        ],
        out_specs=pl.BlockSpec((1, C, 1), lambda n: (n, 0, 0)),
        compiler_params=pltpu.CompilerParams(
            dimension_semantics=("parallel",)),
    )(s3, w3f, b3r, w4, b4r, w5t, b5c)


def _scale_residual(y2, att, x3):
    N, C, HW = y2.shape
    return pl.pallas_call(
        _scale_residual_kernel,
        out_shape=jax.ShapeDtypeStruct((N, C, HW), jnp.float32),
        grid=(N,),
        in_specs=[
            pl.BlockSpec((1, C, HW), lambda n: (n, 0, 0)),
            pl.BlockSpec((1, C, 1), lambda n: (n, 0, 0)),
            pl.BlockSpec((1, C, HW), lambda n: (n, 0, 0)),
        ],
        out_specs=pl.BlockSpec((1, C, HW), lambda n: (n, 0, 0)),
        compiler_params=pltpu.CompilerParams(
            dimension_semantics=("parallel",)),
    )(y2, att, x3)


def spectral_map(x_nchw, gamma=0.8):
    # fftshift2d(pow(|fftn(x, dims=(-1,-2))| + 1e-8, gamma)) in NCHW.
    # TODO(synk): FFT has no Pallas TPU primitive; computed with jnp.fft (glue).
    f = jnp.fft.fftn(x_nchw, axes=(2, 3))
    mag = jnp.power(jnp.abs(f) + 1e-8, gamma)
    h, w = x_nchw.shape[2], x_nchw.shape[3]
    # matches the cat-based fftshift2d for any parity: out[i] = in[(i + n//2) % n]
    return jnp.roll(mag, shift=(-(h // 2), -(w // 2)), axis=(2, 3)).astype(x_nchw.dtype)


def _prep_kernel_params(params):
    # conv weights flattened (3,3,Cin,Cout)->(9*Cin,Cout) in bf16 (f32 MXU acc
    # via preferred_element_type); everything else stays f32.
    C = params["w1"].shape[2]
    flat = lambda w: w.reshape(9 * C, -1).astype(jnp.bfloat16)
    return dict(
        w1f=flat(params["w1"]), b1r=params["b1"].reshape(1, -1),
        w2f=flat(params["w2"]), b2r=params["b2"].reshape(1, -1),
        w3f=flat(params["w3"]), b3r=params["b3"].reshape(1, -1),
        w4=params["w4"], b4r=params["b4"].reshape(1, -1),
        w5t=params["w5"].T, b5c=params["b5"].reshape(-1, 1),
    )


def fcab_forward(x_nchw, params):
    N, C, H, W = x_nchw.shape
    kp = _prep_kernel_params(params)
    x3 = x_nchw.reshape(N, C, H * W)                      # free reshape
    y2 = _double_conv_gelu(x3, kp["w1f"], kp["b1r"], kp["w2f"], kp["b2r"], H, W)
    spec = spectral_map(y2.reshape(N, C, H, W), gamma=0.8)
    att = _fca_attention(spec.reshape(N, C, H * W),
                         kp["w3f"], kp["b3r"], kp["w4"], kp["b4r"],
                         kp["w5t"], kp["b5c"], H, W)
    out3 = _scale_residual(y2, att, x3)                   # att*y2 + x, NCHW
    return out3.reshape(N, C, H, W)


# ----------------------------- pure-JAX reference ----------------------------

def fcab_reference(x_nchw, params):
    def conv_ref(x, w, b):
        y = lax.conv_general_dilated(
            x, w, (1, 1), "SAME",
            dimension_numbers=("NHWC", "HWIO", "NHWC"))
        return y + b.reshape(1, 1, 1, -1)

    gelu = lambda t: 0.5 * t * (1.0 + lax.erf(t / jnp.sqrt(2.0)))
    x = jnp.transpose(x_nchw, (0, 2, 3, 1))               # NHWC
    y1 = gelu(conv_ref(x, params["w1"], params["b1"]))
    y2 = gelu(conv_ref(y1, params["w2"], params["b2"]))
    spec = spectral_map(jnp.transpose(y2, (0, 3, 1, 2)), gamma=0.8)
    spec_nhwc = jnp.transpose(spec, (0, 2, 3, 1))
    y3 = jnp.maximum(conv_ref(spec_nhwc, params["w3"], params["b3"]), 0.0)
    z = jnp.mean(y3, axis=(1, 2))
    h = jnp.maximum(z @ params["w4"] + params["b4"], 0.0)
    att = jax.nn.sigmoid(h @ params["w5"] + params["b5"])
    out = att[:, None, None, :] * y2 + x
    return jnp.transpose(out, (0, 3, 1, 2))


# ----------------------------- params ----------------------------------------

def init_params(key, features=32, reduction=16):
    cr = features // reduction
    ks = jax.random.split(key, 10)

    def w(k, shape, fan_in):
        return jax.random.normal(k, shape, jnp.float32) / jnp.sqrt(float(fan_in))

    return dict(
        w1=w(ks[0], (3, 3, features, features), 9 * features),
        b1=0.01 * jax.random.normal(ks[1], (features,), jnp.float32),
        w2=w(ks[2], (3, 3, features, features), 9 * features),
        b2=0.01 * jax.random.normal(ks[3], (features,), jnp.float32),
        w3=w(ks[4], (3, 3, features, features), 9 * features),
        b3=0.01 * jax.random.normal(ks[5], (features,), jnp.float32),
        w4=w(ks[6], (features, cr), features),
        b4=0.01 * jax.random.normal(ks[7], (cr,), jnp.float32),
        w5=w(ks[8], (cr, features), cr),
        b5=0.01 * jax.random.normal(ks[9], (features,), jnp.float32),
    )


# ----------------------------- main -------------------------------------------

if __name__ == "__main__":
    key = jax.random.PRNGKey(0)
    kx, kp = jax.random.split(key)
    N, C, H, W = 2, 32, 16, 16            # features=32, reduction=16 -> bottleneck 2
    x = jax.random.normal(kx, (N, C, H, W), jnp.float32)
    params = init_params(kp, features=C, reduction=16)

    fwd = jax.jit(fcab_forward)
    out = jax.block_until_ready(fwd(x, params))
    ref = jax.block_until_ready(fcab_reference(x, params))

    assert out.shape == (N, C, H, W) and out.dtype == jnp.float32
    err = float(jnp.max(jnp.abs(out - ref)))
    # bf16 MXU operands + tanh-GELU vs the exact erf / f32 reference: expected
    # divergence is O(1e-2); 5e-2 keeps comfortable headroom.
    if (not math.isfinite(err)) or err > 5e-2:
        raise AssertionError(f"mismatch vs reference: max abs err {err}")
    print("KERNEL_OK")
</pallas_src>

<mosaic_0001>
module attributes {stable_mosaic.version = 11 : i64} {
  func.func @_dconv_gelu_kernel(%arg0: i32, %arg1: memref<1x32x256xf32, #tpu.memory_space<vmem>>, %arg2: memref<288x32xbf16, #tpu.memory_space<vmem>>, %arg3: memref<1x32xf32, #tpu.memory_space<vmem>>, %arg4: memref<288x32xbf16, #tpu.memory_space<vmem>>, %arg5: memref<1x32xf32, #tpu.memory_space<vmem>>, %arg6: memref<1x32x256xf32, #tpu.memory_space<vmem>>) attributes {dimension_semantics = [#tpu.dimension_semantics<parallel>], iteration_bounds = array<i64: 2>, scalar_prefetch = 0 : i64, scratch_operands = 0 : i64, tpu.core_type = #tpu.core_type<tc>, window_params = [{transform_indices = @transform_0, window_bounds = array<i64: 1, 32, 256>}, {pipeline_mode = #tpu.pipeline_mode<synchronous>, transform_indices = @transform_1, window_bounds = array<i64: 288, 32>}, {pipeline_mode = #tpu.pipeline_mode<synchronous>, transform_indices = @transform_2, window_bounds = array<i64: 1, 32>}, {pipeline_mode = #tpu.pipeline_mode<synchronous>, transform_indices = @transform_3, window_bounds = array<i64: 288, 32>}, {pipeline_mode = #tpu.pipeline_mode<synchronous>, transform_indices = @transform_4, window_bounds = array<i64: 1, 32>}, {transform_indices = @transform_5, window_bounds = array<i64: 1, 32, 256>}]} {
    %c0 = arith.constant 0 : index
    %c0_0 = arith.constant 0 : index
    %c0_1 = arith.constant 0 : index
    %0 = vector.load %arg1[%c0, %c0_0, %c0_1] : memref<1x32x256xf32, #tpu.memory_space<vmem>>, vector<1x32x256xf32>
    %1 = vector.shape_cast %0 : vector<1x32x256xf32> to vector<32x256xf32>
    %2 = tpu.transpose %1, [1, 0] : vector<32x256xf32> -> vector<256x32xf32>
    %3 = vector.shape_cast %2 : vector<256x32xf32> to vector<16x16x32xf32>
    %cst = arith.constant 0.000000e+00 : f32
    %4 = vector.broadcast %cst : f32 to vector<1x16x32xf32>
    %5 = tpu.concatenate %4, %3, %4 in 0 : vector<1x16x32xf32>, vector<16x16x32xf32>, vector<1x16x32xf32> -> vector<18x16x32xf32>
    %cst_2 = arith.constant 0.000000e+00 : f32
    %6 = vector.broadcast %cst_2 : f32 to vector<18x1x32xf32>
    %7 = tpu.concatenate %6, %5, %6 in 1 : vector<18x1x32xf32>, vector<18x16x32xf32>, vector<18x1x32xf32> -> vector<18x18x32xf32>
    %8 = vector.extract_strided_slice %7 {offsets = [0, 0, 0], sizes = [16, 16, 32], strides = [1, 1, 1]} : vector<18x18x32xf32> to vector<16x16x32xf32>
    %9 = vector.shape_cast %8 : vector<16x16x32xf32> to vector<256x32xf32>
    %10 = vector.extract_strided_slice %7 {offsets = [0, 1, 0], sizes = [16, 16, 32], strides = [1, 1, 1]} : vector<18x18x32xf32> to vector<16x16x32xf32>
    %11 = vector.shape_cast %10 : vector<16x16x32xf32> to vector<256x32xf32>
    %12 = vector.extract_strided_slice %7 {offsets = [0, 2, 0], sizes = [16, 16, 32], strides = [1, 1, 1]} : vector<18x18x32xf32> to vector<16x16x32xf32>
    %13 = vector.shape_cast %12 : vector<16x16x32xf32> to vector<256x32xf32>
    %14 = vector.extract_strided_slice %7 {offsets = [1, 0, 0], sizes = [16, 16, 32], strides = [1, 1, 1]} : vector<18x18x32xf32> to vector<16x16x32xf32>
    %15 = vector.shape_cast %14 : vector<16x16x32xf32> to vector<256x32xf32>
    %16 = vector.extract_strided_slice %7 {offsets = [1, 1, 0], sizes = [16, 16, 32], strides = [1, 1, 1]} : vector<18x18x32xf32> to vector<16x16x32xf32>
    %17 = vector.shape_cast %16 : vector<16x16x32xf32> to vector<256x32xf32>
    %18 = vector.extract_strided_slice %7 {offsets = [1, 2, 0], sizes = [16, 16, 32], strides = [1, 1, 1]} : vector<18x18x32xf32> to vector<16x16x32xf32>
    %19 = vector.shape_cast %18 : vector<16x16x32xf32> to vector<256x32xf32>
    %20 = vector.extract_strided_slice %7 {offsets = [2, 0, 0], sizes = [16, 16, 32], strides = [1, 1, 1]} : vector<18x18x32xf32> to vector<16x16x32xf32>
    %21 = vector.shape_cast %20 : vector<16x16x32xf32> to vector<256x32xf32>
    %22 = vector.extract_strided_slice %7 {offsets = [2, 1, 0], sizes = [16, 16, 32], strides = [1, 1, 1]} : vector<18x18x32xf32> to vector<16x16x32xf32>
    %23 = vector.shape_cast %22 : vector<16x16x32xf32> to vector<256x32xf32>
    %24 = vector.extract_strided_slice %7 {offsets = [2, 2, 0], sizes = [16, 16, 32], strides = [1, 1, 1]} : vector<18x18x32xf32> to vector<16x16x32xf32>
    %25 = vector.shape_cast %24 : vector<16x16x32xf32> to vector<256x32xf32>
    %26 = tpu.concatenate %9, %11, %13, %15, %17, %19, %21, %23, %25 in 1 : vector<256x32xf32>, vector<256x32xf32>, vector<256x32xf32>, vector<256x32xf32>, vector<256x32xf32>, vector<256x32xf32>, vector<256x32xf32>, vector<256x32xf32>, vector<256x32xf32> -> vector<256x288xf32>
    %27 = arith.truncf %26 : vector<256x288xf32> to vector<256x288xbf16>
    %c0_3 = arith.constant 0 : index
    %c0_4 = arith.constant 0 : index
    %28 = vector.load %arg2[%c0_3, %c0_4] : memref<288x32xbf16, #tpu.memory_space<vmem>>, vector<288x32xbf16>
    %cst_5 = arith.constant dense<0.000000e+00> : vector<256x32xf32>
    %29 = tpu.matmul %27, %28, %cst_5 {dimension_numbers = #tpu.dot_dimension_numbers<[1], [0], [0], [1], [0, 0, 1, 1], [], []>} : vector<256x288xbf16>, vector<288x32xbf16>, vector<256x32xf32> -> vector<256x32xf32>
    %c0_6 = arith.constant 0 : index
    %c0_7 = arith.constant 0 : index
    %30 = vector.load %arg3[%c0_6, %c0_7] : memref<1x32xf32, #tpu.memory_space<vmem>>, vector<1x32xf32>
    %31 = vector.broadcast %30 : vector<1x32xf32> to vector<256x32xf32>
    %32 = arith.addf %29, %31 : vector<256x32xf32>
    %cst_8 = arith.constant 5.000000e-01 : f32
    %33 = vector.broadcast %cst_8 : f32 to vector<256x32xf32>
    %34 = arith.mulf %33, %32 : vector<256x32xf32>
    %cst_9 = arith.constant 4.471500e-02 : f32
    %35 = vector.broadcast %cst_9 : f32 to vector<256x32xf32>
    %36 = arith.mulf %35, %32 : vector<256x32xf32>
    %37 = arith.mulf %36, %32 : vector<256x32xf32>
    %38 = arith.mulf %37, %32 : vector<256x32xf32>
    %39 = arith.addf %32, %38 : vector<256x32xf32>
    %cst_10 = arith.constant 0.797884583 : f32
    %40 = vector.broadcast %cst_10 : f32 to vector<256x32xf32>
    %41 = arith.mulf %40, %39 : vector<256x32xf32>
    %42 = math.tanh %41 : vector<256x32xf32>
    %cst_11 = arith.constant 1.000000e+00 : f32
    %43 = vector.broadcast %cst_11 : f32 to vector<256x32xf32>
    %44 = arith.addf %43, %42 : vector<256x32xf32>
    %45 = arith.mulf %34, %44 : vector<256x32xf32>
    %46 = vector.shape_cast %45 : vector<256x32xf32> to vector<16x16x32xf32>
    %cst_12 = arith.constant 0.000000e+00 : f32
    %47 = vector.broadcast %cst_12 : f32 to vector<1x16x32xf32>
    %48 = tpu.concatenate %47, %46, %47 in 0 : vector<1x16x32xf32>, vector<16x16x32xf32>, vector<1x16x32xf32> -> vector<18x16x32xf32>
    %cst_13 = arith.constant 0.000000e+00 : f32
    %49 = vector.broadcast %cst_13 : f32 to vector<18x1x32xf32>
    %50 = tpu.concatenate %49, %48, %49 in 1 : vector<18x1x32xf32>, vector<18x16x32xf32>, vector<18x1x32xf32> -> vector<18x18x32xf32>
    %51 = vector.extract_strided_slice %50 {offsets = [0, 0, 0], sizes = [16, 16, 32], strides = [1, 1, 1]} : vector<18x18x32xf32> to vector<16x16x32xf32>
    %52 = vector.shape_cast %51 : vector<16x16x32xf32> to vector<256x32xf32>
    %53 = vector.extract_strided_slice %50 {offsets = [0, 1, 0], sizes = [16, 16, 32], strides = [1, 1, 1]} : vector<18x18x32xf32> to vector<16x16x32xf32>
    %54 = vector.shape_cast %53 : vector<16x16x32xf32> to vector<256x32xf32>
    %55 = vector.extract_strided_slice %50 {offsets = [0, 2, 0], sizes = [16, 16, 32], strides = [1, 1, 1]} : vector<18x18x32xf32> to vector<16x16x32xf32>
    %56 = vector.shape_cast %55 : vector<16x16x32xf32> to vector<256x32xf32>
    %57 = vector.extract_strided_slice %50 {offsets = [1, 0, 0], sizes = [16, 16, 32], strides = [1, 1, 1]} : vector<18x18x32xf32> to vector<16x16x32xf32>
    %58 = vector.shape_cast %57 : vector<16x16x32xf32> to vector<256x32xf32>
    %59 = vector.extract_strided_slice %50 {offsets = [1, 1, 0], sizes = [16, 16, 32], strides = [1, 1, 1]} : vector<18x18x32xf32> to vector<16x16x32xf32>
    %60 = vector.shape_cast %59 : vector<16x16x32xf32> to vector<256x32xf32>
    %61 = vector.extract_strided_slice %50 {offsets = [1, 2, 0], sizes = [16, 16, 32], strides = [1, 1, 1]} : vector<18x18x32xf32> to vector<16x16x32xf32>
    %62 = vector.shape_cast %61 : vector<16x16x32xf32> to vector<256x32xf32>
    %63 = vector.extract_strided_slice %50 {offsets = [2, 0, 0], sizes = [16, 16, 32], strides = [1, 1, 1]} : vector<18x18x32xf32> to vector<16x16x32xf32>
    %64 = vector.shape_cast %63 : vector<16x16x32xf32> to vector<256x32xf32>
    %65 = vector.extract_strided_slice %50 {offsets = [2, 1, 0], sizes = [16, 16, 32], strides = [1, 1, 1]} : vector<18x18x32xf32> to vector<16x16x32xf32>
    %66 = vector.shape_cast %65 : vector<16x16x32xf32> to vector<256x32xf32>
    %67 = vector.extract_strided_slice %50 {offsets = [2, 2, 0], sizes = [16, 16, 32], strides = [1, 1, 1]} : vector<18x18x32xf32> to vector<16x16x32xf32>
    %68 = vector.shape_cast %67 : vector<16x16x32xf32> to vector<256x32xf32>
    %69 = tpu.concatenate %52, %54, %56, %58, %60, %62, %64, %66, %68 in 1 : vector<256x32xf32>, vector<256x32xf32>, vector<256x32xf32>, vector<256x32xf32>, vector<256x32xf32>, vector<256x32xf32>, vector<256x32xf32>, vector<256x32xf32>, vector<256x32xf32> -> vector<256x288xf32>
    %70 = arith.truncf %69 : vector<256x288xf32> to vector<256x288xbf16>
    %c0_14 = arith.constant 0 : index
    %c0_15 = arith.constant 0 : index
    %71 = vector.load %arg4[%c0_14, %c0_15] : memref<288x32xbf16, #tpu.memory_space<vmem>>, vector<288x32xbf16>
    %cst_16 = arith.constant dense<0.000000e+00> : vector<256x32xf32>
    %72 = tpu.matmul %70, %71, %cst_16 {dimension_numbers = #tpu.dot_dimension_numbers<[1], [0], [0], [1], [0, 0, 1, 1], [], []>} : vector<256x288xbf16>, vector<288x32xbf16>, vector<256x32xf32> -> vector<256x32xf32>
    %c0_17 = arith.constant 0 : index
    %c0_18 = arith.constant 0 : index
    %73 = vector.load %arg5[%c0_17, %c0_18] : memref<1x32xf32, #tpu.memory_space<vmem>>, vector<1x32xf32>
    %74 = vector.broadcast %73 : vector<1x32xf32> to vector<256x32xf32>
    %75 = arith.addf %72, %74 : vector<256x32xf32>
    %cst_19 = arith.constant 5.000000e-01 : f32
    %76 = vector.broadcast %cst_19 : f32 to vector<256x32xf32>
    %77 = arith.mulf %76, %75 : vector<256x32xf32>
    %cst_20 = arith.constant 4.471500e-02 : f32
    %78 = vector.broadcast %cst_20 : f32 to vector<256x32xf32>
    %79 = arith.mulf %78, %75 : vector<256x32xf32>
    %80 = arith.mulf %79, %75 : vector<256x32xf32>
    %81 = arith.mulf %80, %75 : vector<256x32xf32>
    %82 = arith.addf %75, %81 : vector<256x32xf32>
    %cst_21 = arith.constant 0.797884583 : f32
    %83 = vector.broadcast %cst_21 : f32 to vector<256x32xf32>
    %84 = arith.mulf %83, %82 : vector<256x32xf32>
    %85 = math.tanh %84 : vector<256x32xf32>
    %cst_22 = arith.constant 1.000000e+00 : f32
    %86 = vector.broadcast %cst_22 : f32 to vector<256x32xf32>
    %87 = arith.addf %86, %85 : vector<256x32xf32>
    %88 = arith.mulf %77, %87 : vector<256x32xf32>
    %89 = tpu.transpose %88, [1, 0] : vector<256x32xf32> -> vector<32x256xf32>
    %90 = vector.shape_cast %89 : vector<32x256xf32> to vector<1x32x256xf32>
    %c0_23 = arith.constant 0 : index
    %c0_24 = arith.constant 0 : index
    %c0_25 = arith.constant 0 : index
    %91 = vector.load %arg6[%c0_23, %c0_24, %c0_25] : memref<1x32x256xf32, #tpu.memory_space<vmem>>, vector<1x32x256xf32>
    tpu.vector_store %arg6[%c0_23, %c0_24, %c0_25], %90 {strides = array<i32>} : memref<1x32x256xf32, #tpu.memory_space<vmem>>, vector<1x32x256xf32>,
    return
  }
  func.func @transform_0(%arg0: i32) -> (i32, i32, i32) {
    %c0_i32 = arith.constant 0 : i32
    %c0_i32_0 = arith.constant 0 : i32
    %c0_i32_1 = arith.constant 0 : i32
    return %arg0, %c0_i32, %c0_i32_0 : i32, i32, i32
  }
  func.func @transform_1(%arg0: i32) -> (i32, i32) {
    %c0_i32 = arith.constant 0 : i32
    %c0_i32_0 = arith.constant 0 : i32
    %c0_i32_1 = arith.constant 0 : i32
    return %c0_i32, %c0_i32_0 : i32, i32
  }
  func.func @transform_2(%arg0: i32) -> (i32, i32) {
    %c0_i32 = arith.constant 0 : i32
    %c0_i32_0 = arith.constant 0 : i32
    %c0_i32_1 = arith.constant 0 : i32
    return %c0_i32, %c0_i32_0 : i32, i32
  }
  func.func @transform_3(%arg0: i32) -> (i32, i32) {
    %c0_i32 = arith.constant 0 : i32
    %c0_i32_0 = arith.constant 0 : i32
    %c0_i32_1 = arith.constant 0 : i32
    return %c0_i32, %c0_i32_0 : i32, i32
  }
  func.func @transform_4(%arg0: i32) -> (i32, i32) {
    %c0_i32 = arith.constant 0 : i32
    %c0_i32_0 = arith.constant 0 : i32
    %c0_i32_1 = arith.constant 0 : i32
    return %c0_i32, %c0_i32_0 : i32, i32
  }
  func.func @transform_5(%arg0: i32) -> (i32, i32, i32) {
    %c0_i32 = arith.constant 0 : i32
    %c0_i32_0 = arith.constant 0 : i32
    %c0_i32_1 = arith.constant 0 : i32
    return %arg0, %c0_i32, %c0_i32_0 : i32, i32, i32
  }
}

module attributes {stable_mosaic.version = 11 : i64} {
  func.func @_fca_pool_mlp_kernel(%arg0: i32, %arg1: memref<1x32x256xf32, #tpu.memory_space<vmem>>, %arg2: memref<288x32xbf16, #tpu.memory_space<vmem>>, %arg3: memref<1x32xf32, #tpu.memory_space<vmem>>, %arg4: memref<32x2xf32, #tpu.memory_space<vmem>>, %arg5: memref<1x2xf32, #tpu.memory_space<vmem>>, %arg6: memref<32x2xf32, #tpu.memory_space<vmem>>, %arg7: memref<32x1xf32, #tpu.memory_space<vmem>>, %arg8: memref<1x32x1xf32, #tpu.memory_space<vmem>>) attributes {dimension_semantics = [#tpu.dimension_semantics<parallel>], iteration_bounds = array<i64: 2>, scalar_prefetch = 0 : i64, scratch_operands = 0 : i64, tpu.core_type = #tpu.core_type<tc>, window_params = [{transform_indices = @transform_0, window_bounds = array<i64: 1, 32, 256>}, {pipeline_mode = #tpu.pipeline_mode<synchronous>, transform_indices = @transform_1, window_bounds = array<i64: 288, 32>}, {pipeline_mode = #tpu.pipeline_mode<synchronous>, transform_indices = @transform_2, window_bounds = array<i64: 1, 32>}, {pipeline_mode = #tpu.pipeline_mode<synchronous>, transform_indices = @transform_3, window_bounds = array<i64: 32, 2>}, {pipeline_mode = #tpu.pipeline_mode<synchronous>, transform_indices = @transform_4, window_bounds = array<i64: 1, 2>}, {pipeline_mode = #tpu.pipeline_mode<synchronous>, transform_indices = @transform_5, window_bounds = array<i64: 32, 2>}, {pipeline_mode = #tpu.pipeline_mode<synchronous>, transform_indices = @transform_6, window_bounds = array<i64: 32, 1>}, {transform_indices = @transform_7, window_bounds = array<i64: 1, 32, 1>}]} {
    %c0 = arith.constant 0 : index
    %c0_0 = arith.constant 0 : index
    %c0_1 = arith.constant 0 : index
    %0 = vector.load %arg1[%c0, %c0_0, %c0_1] : memref<1x32x256xf32, #tpu.memory_space<vmem>>, vector<1x32x256xf32>
    %1 = vector.shape_cast %0 : vector<1x32x256xf32> to vector<32x256xf32>
    %2 = tpu.transpose %1, [1, 0] : vector<32x256xf32> -> vector<256x32xf32>
    %3 = vector.shape_cast %2 : vector<256x32xf32> to vector<16x16x32xf32>
    %cst = arith.constant 0.000000e+00 : f32
    %4 = vector.broadcast %cst : f32 to vector<1x16x32xf32>
    %5 = tpu.concatenate %4, %3, %4 in 0 : vector<1x16x32xf32>, vector<16x16x32xf32>, vector<1x16x32xf32> -> vector<18x16x32xf32>
    %cst_2 = arith.constant 0.000000e+00 : f32
    %6 = vector.broadcast %cst_2 : f32 to vector<18x1x32xf32>
    %7 = tpu.concatenate %6, %5, %6 in 1 : vector<18x1x32xf32>, vector<18x16x32xf32>, vector<18x1x32xf32> -> vector<18x18x32xf32>
    %8 = vector.extract_strided_slice %7 {offsets = [0, 0, 0], sizes = [16, 16, 32], strides = [1, 1, 1]} : vector<18x18x32xf32> to vector<16x16x32xf32>
    %9 = vector.shape_cast %8 : vector<16x16x32xf32> to vector<256x32xf32>
    %10 = vector.extract_strided_slice %7 {offsets = [0, 1, 0], sizes = [16, 16, 32], strides = [1, 1, 1]} : vector<18x18x32xf32> to vector<16x16x32xf32>
    %11 = vector.shape_cast %10 : vector<16x16x32xf32> to vector<256x32xf32>
    %12 = vector.extract_strided_slice %7 {offsets = [0, 2, 0], sizes = [16, 16, 32], strides = [1, 1, 1]} : vector<18x18x32xf32> to vector<16x16x32xf32>
    %13 = vector.shape_cast %12 : vector<16x16x32xf32> to vector<256x32xf32>
    %14 = vector.extract_strided_slice %7 {offsets = [1, 0, 0], sizes = [16, 16, 32], strides = [1, 1, 1]} : vector<18x18x32xf32> to vector<16x16x32xf32>
    %15 = vector.shape_cast %14 : vector<16x16x32xf32> to vector<256x32xf32>
    %16 = vector.extract_strided_slice %7 {offsets = [1, 1, 0], sizes = [16, 16, 32], strides = [1, 1, 1]} : vector<18x18x32xf32> to vector<16x16x32xf32>
    %17 = vector.shape_cast %16 : vector<16x16x32xf32> to vector<256x32xf32>
    %18 = vector.extract_strided_slice %7 {offsets = [1, 2, 0], sizes = [16, 16, 32], strides = [1, 1, 1]} : vector<18x18x32xf32> to vector<16x16x32xf32>
    %19 = vector.shape_cast %18 : vector<16x16x32xf32> to vector<256x32xf32>
    %20 = vector.extract_strided_slice %7 {offsets = [2, 0, 0], sizes = [16, 16, 32], strides = [1, 1, 1]} : vector<18x18x32xf32> to vector<16x16x32xf32>
    %21 = vector.shape_cast %20 : vector<16x16x32xf32> to vector<256x32xf32>
    %22 = vector.extract_strided_slice %7 {offsets = [2, 1, 0], sizes = [16, 16, 32], strides = [1, 1, 1]} : vector<18x18x32xf32> to vector<16x16x32xf32>
    %23 = vector.shape_cast %22 : vector<16x16x32xf32> to vector<256x32xf32>
    %24 = vector.extract_strided_slice %7 {offsets = [2, 2, 0], sizes = [16, 16, 32], strides = [1, 1, 1]} : vector<18x18x32xf32> to vector<16x16x32xf32>
    %25 = vector.shape_cast %24 : vector<16x16x32xf32> to vector<256x32xf32>
    %26 = tpu.concatenate %9, %11, %13, %15, %17, %19, %21, %23, %25 in 1 : vector<256x32xf32>, vector<256x32xf32>, vector<256x32xf32>, vector<256x32xf32>, vector<256x32xf32>, vector<256x32xf32>, vector<256x32xf32>, vector<256x32xf32>, vector<256x32xf32> -> vector<256x288xf32>
    %27 = arith.truncf %26 : vector<256x288xf32> to vector<256x288xbf16>
    %c0_3 = arith.constant 0 : index
    %c0_4 = arith.constant 0 : index
    %28 = vector.load %arg2[%c0_3, %c0_4] : memref<288x32xbf16, #tpu.memory_space<vmem>>, vector<288x32xbf16>
    %cst_5 = arith.constant dense<0.000000e+00> : vector<256x32xf32>
    %29 = tpu.matmul %27, %28, %cst_5 {dimension_numbers = #tpu.dot_dimension_numbers<[1], [0], [0], [1], [0, 0, 1, 1], [], []>} : vector<256x288xbf16>, vector<288x32xbf16>, vector<256x32xf32> -> vector<256x32xf32>
    %c0_6 = arith.constant 0 : index
    %c0_7 = arith.constant 0 : index
    %30 = vector.load %arg3[%c0_6, %c0_7] : memref<1x32xf32, #tpu.memory_space<vmem>>, vector<1x32xf32>
    %31 = vector.broadcast %30 : vector<1x32xf32> to vector<256x32xf32>
    %32 = arith.addf %29, %31 : vector<256x32xf32>
    %cst_8 = arith.constant 0.000000e+00 : f32
    %33 = vector.broadcast %cst_8 : f32 to vector<256x32xf32>
    %34 = arith.maximumf %32, %33 : vector<256x32xf32>
    %cst_9 = arith.constant dense<0.000000e+00> : vector<32xf32>
    %35 = vector.multi_reduction <add>, %34, %cst_9 [0] : vector<256x32xf32> to vector<32xf32>
    %36 = vector.shape_cast %35 : vector<32xf32> to vector<1x32xf32>
    %cst_10 = arith.constant 2.560000e+02 : f32
    %37 = vector.broadcast %cst_10 : f32 to vector<1x32xf32>
    %38 = arith.divf %36, %37 : vector<1x32xf32>
    %39 = tpu.transpose %38, [1, 0] : vector<1x32xf32> -> vector<32x1xf32>
    %c0_11 = arith.constant 0 : index
    %c0_12 = arith.constant 0 : index
    %40 = vector.load %arg4[%c0_11, %c0_12] : memref<32x2xf32, #tpu.memory_space<vmem>>, vector<32x2xf32>
    %41 = vector.broadcast %39 : vector<32x1xf32> to vector<32x2xf32>
    %42 = arith.mulf %40, %41 : vector<32x2xf32>
    %cst_13 = arith.constant dense<0.000000e+00> : vector<2xf32>
    %43 = vector.multi_reduction <add>, %42, %cst_13 [0] : vector<32x2xf32> to vector<2xf32>
    %44 = vector.shape_cast %43 : vector<2xf32> to vector<1x2xf32>
    %c0_14 = arith.constant 0 : index
    %c0_15 = arith.constant 0 : index
    %45 = vector.load %arg5[%c0_14, %c0_15] : memref<1x2xf32, #tpu.memory_space<vmem>>, vector<1x2xf32>
    %46 = arith.addf %44, %45 : vector<1x2xf32>
    %cst_16 = arith.constant 0.000000e+00 : f32
    %47 = vector.broadcast %cst_16 : f32 to vector<1x2xf32>
    %48 = arith.maximumf %46, %47 : vector<1x2xf32>
    %c0_17 = arith.constant 0 : index
    %c0_18 = arith.constant 0 : index
    %49 = vector.load %arg6[%c0_17, %c0_18] : memref<32x2xf32, #tpu.memory_space<vmem>>, vector<32x2xf32>
    %50 = vector.broadcast %48 : vector<1x2xf32> to vector<32x2xf32>
    %51 = arith.mulf %49, %50 : vector<32x2xf32>
    %cst_19 = arith.constant dense<0.000000e+00> : vector<32xf32>
    %52 = vector.multi_reduction <add>, %51, %cst_19 [1] : vector<32x2xf32> to vector<32xf32>
    %53 = vector.shape_cast %52 : vector<32xf32> to vector<32x1xf32>
    %c0_20 = arith.constant 0 : index
    %c0_21 = arith.constant 0 : index
    %54 = vector.load %arg7[%c0_20, %c0_21] : memref<32x1xf32, #tpu.memory_space<vmem>>, vector<32x1xf32>
    %55 = arith.addf %53, %54 : vector<32x1xf32>
    %cst_22 = arith.constant 0.000000e+00 : f32
    %56 = vector.broadcast %cst_22 : f32 to vector<32x1xf32>
    %57 = arith.subf %56, %55 : vector<32x1xf32>
    %58 = math.exp %57 : vector<32x1xf32>
    %cst_23 = arith.constant 1.000000e+00 : f32
    %59 = vector.broadcast %cst_23 : f32 to vector<32x1xf32>
    %60 = arith.addf %59, %58 : vector<32x1xf32>
    %cst_24 = arith.constant 1.000000e+00 : f32
    %61 = vector.broadcast %cst_24 : f32 to vector<32x1xf32>
    %62 = arith.divf %61, %60 : vector<32x1xf32>
    %63 = vector.shape_cast %62 : vector<32x1xf32> to vector<1x32x1xf32>
    %c0_25 = arith.constant 0 : index
    %c0_26 = arith.constant 0 : index
    %c0_27 = arith.constant 0 : index
    %64 = vector.load %arg8[%c0_25, %c0_26, %c0_27] : memref<1x32x1xf32, #tpu.memory_space<vmem>>, vector<1x32x1xf32>
    tpu.vector_store %arg8[%c0_25, %c0_26, %c0_27], %63 {strides = array<i32>} : memref<1x32x1xf32, #tpu.memory_space<vmem>>, vector<1x32x1xf32>,
    return
  }
  func.func @transform_0(%arg0: i32) -> (i32, i32, i32) {
    %c0_i32 = arith.constant 0 : i32
    %c0_i32_0 = arith.constant 0 : i32
    %c0_i32_1 = arith.constant 0 : i32
    return %arg0, %c0_i32, %c0_i32_0 : i32, i32, i32
  }
  func.func @transform_1(%arg0: i32) -> (i32, i32) {
    %c0_i32 = arith.constant 0 : i32
    %c0_i32_0 = arith.constant 0 : i32
    %c0_i32_1 = arith.constant 0 : i32
    return %c0_i32, %c0_i32_0 : i32, i32
  }
  func.func @transform_2(%arg0: i32) -> (i32, i32) {
    %c0_i32 = arith.constant 0 : i32
    %c0_i32_0 = arith.constant 0 : i32
    %c0_i32_1 = arith.constant 0 : i32
    return %c0_i32, %c0_i32_0 : i32, i32
  }
  func.func @transform_3(%arg0: i32) -> (i32, i32) {
    %c0_i32 = arith.constant 0 : i32
    %c0_i32_0 = arith.constant 0 : i32
    %c0_i32_1 = arith.constant 0 : i32
    return %c0_i32, %c0_i32_0 : i32, i32
  }
  func.func @transform_4(%arg0: i32) -> (i32, i32) {
    %c0_i32 = arith.constant 0 : i32
    %c0_i32_0 = arith.constant 0 : i32
    %c0_i32_1 = arith.constant 0 : i32
    return %c0_i32, %c0_i32_0 : i32, i32
  }
  func.func @transform_5(%arg0: i32) -> (i32, i32) {
    %c0_i32 = arith.constant 0 : i32
    %c0_i32_0 = arith.constant 0 : i32
    %c0_i32_1 = arith.constant 0 : i32
    return %c0_i32, %c0_i32_0 : i32, i32
  }
  func.func @transform_6(%arg0: i32) -> (i32, i32) {
    %c0_i32 = arith.constant 0 : i32
    %c0_i32_0 = arith.constant 0 : i32
    %c0_i32_1 = arith.constant 0 : i32
    return %c0_i32, %c0_i32_0 : i32, i32
  }
  func.func @transform_7(%arg0: i32) -> (i32, i32, i32) {
    %c0_i32 = arith.constant 0 : i32
    %c0_i32_0 = arith.constant 0 : i32
    %c0_i32_1 = arith.constant 0 : i32
    return %arg0, %c0_i32, %c0_i32_0 : i32, i32, i32
  }
}

module attributes {stable_mosaic.version = 11 : i64} {
  func.func @_scale_residual_kernel(%arg0: i32, %arg1: memref<1x32x256xf32, #tpu.memory_space<vmem>>, %arg2: memref<1x32x1xf32, #tpu.memory_space<vmem>>, %arg3: memref<1x32x256xf32, #tpu.memory_space<vmem>>, %arg4: memref<1x32x256xf32, #tpu.memory_space<vmem>>) attributes {dimension_semantics = [#tpu.dimension_semantics<parallel>], iteration_bounds = array<i64: 2>, scalar_prefetch = 0 : i64, scratch_operands = 0 : i64, tpu.core_type = #tpu.core_type<tc>, window_params = [{transform_indices = @transform_0, window_bounds = array<i64: 1, 32, 256>}, {transform_indices = @transform_1, window_bounds = array<i64: 1, 32, 1>}, {transform_indices = @transform_2, window_bounds = array<i64: 1, 32, 256>}, {transform_indices = @transform_3, window_bounds = array<i64: 1, 32, 256>}]} {
    %c0 = arith.constant 0 : index
    %c0_0 = arith.constant 0 : index
    %c0_1 = arith.constant 0 : index
    %0 = vector.load %arg2[%c0, %c0_0, %c0_1] : memref<1x32x1xf32, #tpu.memory_space<vmem>>, vector<1x32x1xf32>
    %1 = vector.shape_cast %0 : vector<1x32x1xf32> to vector<32x1xf32>
    %c0_2 = arith.constant 0 : index
    %c0_3 = arith.constant 0 : index
    %c0_4 = arith.constant 0 : index
    %2 = vector.load %arg1[%c0_2, %c0_3, %c0_4] : memref<1x32x256xf32, #tpu.memory_space<vmem>>, vector<1x32x256xf32>
    %3 = vector.shape_cast %2 : vector<1x32x256xf32> to vector<32x256xf32>
    %4 = vector.broadcast %1 : vector<32x1xf32> to vector<32x256xf32>
    %5 = arith.mulf %4, %3 : vector<32x256xf32>
    %c0_5 = arith.constant 0 : index
    %c0_6 = arith.constant 0 : index
    %c0_7 = arith.constant 0 : index
    %6 = vector.load %arg3[%c0_5, %c0_6, %c0_7] : memref<1x32x256xf32, #tpu.memory_space<vmem>>, vector<1x32x256xf32>
    %7 = vector.shape_cast %6 : vector<1x32x256xf32> to vector<32x256xf32>
    %8 = arith.addf %5, %7 : vector<32x256xf32>
    %9 = vector.shape_cast %8 : vector<32x256xf32> to vector<1x32x256xf32>
    %c0_8 = arith.constant 0 : index
    %c0_9 = arith.constant 0 : index
    %c0_10 = arith.constant 0 : index
    %10 = vector.load %arg4[%c0_8, %c0_9, %c0_10] : memref<1x32x256xf32, #tpu.memory_space<vmem>>, vector<1x32x256xf32>
    tpu.vector_store %arg4[%c0_8, %c0_9, %c0_10], %9 {strides = array<i32>} : memref<1x32x256xf32, #tpu.memory_space<vmem>>, vector<1x32x256xf32>,
    return
  }
  func.func @transform_0(%arg0: i32) -> (i32, i32, i32) {
    %c0_i32 = arith.constant 0 : i32
    %c0_i32_0 = arith.constant 0 : i32
    %c0_i32_1 = arith.constant 0 : i32
    return %arg0, %c0_i32, %c0_i32_0 : i32, i32, i32
  }
  func.func @transform_1(%arg0: i32) -> (i32, i32, i32) {
    %c0_i32 = arith.constant 0 : i32
    %c0_i32_0 = arith.constant 0 : i32
    %c0_i32_1 = arith.constant 0 : i32
    return %arg0, %c0_i32, %c0_i32_0 : i32, i32, i32
  }
  func.func @transform_2(%arg0: i32) -> (i32, i32, i32) {
    %c0_i32 = arith.constant 0 : i32
    %c0_i32_0 = arith.constant 0 : i32
    %c0_i32_1 = arith.constant 0 : i32
    return %arg0, %c0_i32, %c0_i32_0 : i32, i32, i32
  }
  func.func @transform_3(%arg0: i32) -> (i32, i32, i32) {
    %c0_i32 = arith.constant 0 : i32
    %c0_i32_0 = arith.constant 0 : i32
    %c0_i32_1 = arith.constant 0 : i32
    return %arg0, %c0_i32, %c0_i32_0 : i32, i32, i32
  }
}

</mosaic_0001>

<llo_original>
// kernel: fcab_forward.3
$region0: #{fcab_forward.3}
  #allocation0 [shape = 'u32[]', space=smem, size = 0x4, offset = 0x4, fixed_abs, tag = 'smem constant byte address 0x4 - core index']
  #allocation1 [shape = 'u32[144,128]{1,0:T(1,128)}', space=vmem, size = 0x12000, scoped, tag = 'internal scratch']
  %s0 = inlined_call_operand.vmem [shape: f32[2,32,256], index: 0, kind: input, shape index: {}]
  %s1 = inlined_call_operand.vmem [shape: bf16[288,32], index: 1, kind: input, shape index: {}]
  %s2 = inlined_call_operand.vmem [shape: f32[1,32], index: 2, kind: input, shape index: {}]
  %s3 = inlined_call_operand.vmem [shape: bf16[288,32], index: 3, kind: input, shape index: {}]
  %s4 = inlined_call_operand.vmem [shape: f32[1,32], index: 4, kind: input, shape index: {}]
  %s5 = inlined_call_operand.vmem [shape: f32[2,32,256], index: 5, kind: output, shape index: {}]
  %s6 = sld [smem:[#allocation0]]
  $region53: #{fcab_forward.3} parent=0
    _
  %s8 = ssub.s32 1, %s6
  %s9 = scalar_select 0, %s8, %s6
  loop: start=0, step=1, limit=4
  $region2: #{fcab_forward.3} parent=0 // loop_pre_header
    _
  $region3: #{fcab_forward.3} parent=0 // loop_header
    %s11 = sphi 0, %s15
    %p12 = scmp.ge.s32.totalorder %s11, 4
    %s21 = sphi 0, %s23
    %s24 = sphi 0, %s21
    %s25 = sphi 0, %s24
    %s41 = sphi 0, %s25
    %s45 = sphi 0, %s45
    %s47 = sphi 0, %s45
    %s48 = sphi 0, %s47
    %s62 = sphi 0, %s48
    %s66 = sphi 0, %s66
    %s68 = sphi 0, %s66
    %s69 = sphi 0, %s68
    %s83 = sphi 0, %s69
    %s87 = sphi 0, %s87
    %s89 = sphi 0, %s87
    %s90 = sphi 0, %s89
    %s104 = sphi 0, %s90
    %s108 = sphi 0, %s108
    %s110 = sphi 0, %s108
    %s111 = sphi 0, %s110
    %s125 = sphi 0, %s111
    %s131 = sphi 0, %s133
    %s134 = sphi 0, %s131
    %s135 = sphi 0, %s134
    %s151 = sphi 0, %s135
  $region4: #{fcab_forward.3} parent=0 // loop_header_branch
    %14 = sbr.rel (%p12) target = $region8
  $region5: #{fcab_forward.3} parent=0 // loop_body
    %s16 = ssub.s32 %s11, 1
    %s17 = ssub.s32 %s11, 2
    %s18 = sadd.s32 %s11, 1
    %s19 = ssub.s32 %s11, %s18
    %p20 = scmp.eq.s32.totalorder %s19, 0
    %s22 = sadd.s32 %s21, 1
    %s23 = scalar_select %p20, %s21, %s22
    %p26 = pneg %p20
    %p27 = scmp.eq.s32.totalorder %s11, 1
    %p28 = por %p26, %p27
    %p29 = scmp.ne.s32.totalorder %s21, %s24
    %p30 = scmp.eq.s32.totalorder %s11, 0
    %p31 = por %p29, %p30
    %p32 = scmp.ne.s32.totalorder %s21, %s24
    %p33 = scmp.eq.s32.totalorder %s16, 1
    %p34 = por %p32, %p33
    %p35 = scmp.ne.s32.totalorder %s24, %s25
    %p36 = scmp.eq.s32.totalorder %s16, 0
    %p37 = por %p35, %p36
    %p38 = scmp.ne.s32.totalorder %s24, %s25
    %p39 = scmp.eq.s32.totalorder %s17, 1
    %p40 = por %p38, %p39
    %p42 = scmp.ne.s32.totalorder %s25, %s41
    %p43 = scmp.eq.s32.totalorder %s17, 0
    %p44 = por %p42, %p43
    %s46 = sadd.s32 %s45, 1
    %p49 = scmp.eq.s32.totalorder %s11, 1
    %p50 = scmp.ne.s32.totalorder %s45, %s47
    %p51 = scmp.eq.s32.totalorder %s11, 0
    %p52 = por %p50, %p51
    %p53 = scmp.ne.s32.totalorder %s45, %s47
    %p54 = scmp.eq.s32.totalorder %s16, 1
    %p55 = por %p53, %p54
    %p56 = scmp.ne.s32.totalorder %s47, %s48
    %p57 = scmp.eq.s32.totalorder %s16, 0
    %p58 = por %p56, %p57
    %p59 = scmp.ne.s32.totalorder %s47, %s48
    %p60 = scmp.eq.s32.totalorder %s17, 1
    %p61 = por %p59, %p60
    %p63 = scmp.ne.s32.totalorder %s48, %s62
    %p64 = scmp.eq.s32.totalorder %s17, 0
    %p65 = por %p63, %p64
    %s67 = sadd.s32 %s66, 1
    %p70 = scmp.eq.s32.totalorder %s11, 1
    %p71 = scmp.ne.s32.totalorder %s66, %s68
    %p72 = scmp.eq.s32.totalorder %s11, 0
    %p73 = por %p71, %p72
    %p74 = scmp.ne.s32.totalorder %s66, %s68
    %p75 = scmp.eq.s32.totalorder %s16, 1
    %p76 = por %p74, %p75
    %p77 = scmp.ne.s32.totalorder %s68, %s69
    %p78 = scmp.eq.s32.totalorder %s16, 0
    %p79 = por %p77, %p78
    %p80 = scmp.ne.s32.totalorder %s68, %s69
    %p81 = scmp.eq.s32.totalorder %s17, 1
    %p82 = por %p80, %p81
    %p84 = scmp.ne.s32.totalorder %s69, %s83
    %p85 = scmp.eq.s32.totalorder %s17, 0
    %p86 = por %p84, %p85
    %s88 = sadd.s32 %s87, 1
    %p91 = scmp.eq.s32.totalorder %s11, 1
    %p92 = scmp.ne.s32.totalorder %s87, %s89
    %p93 = scmp.eq.s32.totalorder %s11, 0
    %p94 = por %p92, %p93
    %p95 = scmp.ne.s32.totalorder %s87, %s89
    %p96 = scmp.eq.s32.totalorder %s16, 1
    %p97 = por %p95, %p96
    %p98 = scmp.ne.s32.totalorder %s89, %s90
    %p99 = scmp.eq.s32.totalorder %s16, 0
    %p100 = por %p98, %p99
    %p101 = scmp.ne.s32.totalorder %s89, %s90
    %p102 = scmp.eq.s32.totalorder %s17, 1
    %p103 = por %p101, %p102
    %p105 = scmp.ne.s32.totalorder %s90, %s104
    %p106 = scmp.eq.s32.totalorder %s17, 0
    %p107 = por %p105, %p106
    %s109 = sadd.s32 %s108, 1
    %p112 = scmp.eq.s32.totalorder %s11, 1
    %p113 = scmp.ne.s32.totalorder %s108, %s110
    %p114 = scmp.eq.s32.totalorder %s11, 0
    %p115 = por %p113, %p114
    %p116 = scmp.ne.s32.totalorder %s108, %s110
    %p117 = scmp.eq.s32.totalorder %s16, 1
    %p118 = por %p116, %p117
    %p119 = scmp.ne.s32.totalorder %s110, %s111
    %p120 = scmp.eq.s32.totalorder %s16, 0
    %p121 = por %p119, %p120
    %p122 = scmp.ne.s32.totalorder %s110, %s111
    %p123 = scmp.eq.s32.totalorder %s17, 1
    %p124 = por %p122, %p123
    %p126 = scmp.ne.s32.totalorder %s111, %s125
    %p127 = scmp.eq.s32.totalorder %s17, 0
    %p128 = por %p126, %p127
    %s129 = ssub.s32 %s11, %s18
    %p130 = scmp.eq.s32.totalorder %s129, 0
    %s132 = sadd.s32 %s131, 1
    %s133 = scalar_select %p130, %s131, %s132
    %p136 = pneg %p130
    %p137 = scmp.eq.s32.totalorder %s11, 1
    %p138 = por %p136, %p137
    %p139 = scmp.ne.s32.totalorder %s131, %s134
    %p140 = scmp.eq.s32.totalorder %s11, 0
    %p141 = por %p139, %p140
    %p142 = scmp.ne.s32.totalorder %s131, %s134
    %p143 = scmp.eq.s32.totalorder %s16, 1
    %p144 = por %p142, %p143
    %p145 = scmp.ne.s32.totalorder %s134, %s135
    %p146 = scmp.eq.s32.totalorder %s16, 0
    %p147 = por %p145, %p146
    %p148 = scmp.ne.s32.totalorder %s134, %s135
    %p149 = scmp.eq.s32.totalorder %s17, 1
    %p150 = por %p148, %p149
    %p152 = scmp.ne.s32.totalorder %s135, %s151
    %p153 = scmp.eq.s32.totalorder %s17, 0
    %p154 = por %p152, %p153
    %p155 = scmp.le.s32.totalorder 1, %s11
    %p156 = scmp.lt.s32.totalorder %s11, 3
    %p157 = pnand %p155, %p156
    %p158 = pneg %p157
    // Predicated region
    $region9: #{fcab_forward.3} parent=5 // pred_check
      _
    $region10: #{fcab_forward.3} parent=5 // pred_check_branch
      %160 = sbr.rel (%p157) target = $region12
    $region11: #{fcab_forward.3} parent=5 // pred_region
      %s161 = ssub.s32 %s11, 1
      // Predicated region
      $region13: #{fcab_forward.3} parent=11 // pred_check
        %p162 = pneg %p58
      $region14: #{fcab_forward.3} parent=11 // pred_check_branch
        %164 = sbr.rel (%p162) target = $region16
      $region15: #{fcab_forward.3} parent=11 // pred_region
        _
      $region16: #{fcab_forward.3} parent=11 // pred_fallthru
        _
      // Predicated region
      $region17: #{fcab_forward.3} parent=11 // pred_check
        %p165 = pneg %p79
      $region18: #{fcab_forward.3} parent=11 // pred_check_branch
        %167 = sbr.rel (%p165) target = $region20
      $region19: #{fcab_forward.3} parent=11 // pred_region
        _
      $region20: #{fcab_forward.3} parent=11 // pred_fallthru
        _
      // Predicated region
      $region21: #{fcab_forward.3} parent=11 // pred_check
        %p168 = pneg %p100
      $region22: #{fcab_forward.3} parent=11 // pred_check_branch
        %170 = sbr.rel (%p168) target = $region24
      $region23: #{fcab_forward.3} parent=11 // pred_region
        _
      $region24: #{fcab_forward.3} parent=11 // pred_fallthru
        _
      // Predicated region
      $region25: #{fcab_forward.3} parent=11 // pred_check
        %p171 = pneg %p121
      $region26: #{fcab_forward.3} parent=11 // pred_check_branch
        %173 = sbr.rel (%p171) target = $region28
      $region27: #{fcab_forward.3} parent=11 // pred_region
        _
      $region28: #{fcab_forward.3} parent=11 // pred_fallthru
        _
    $region12: #{fcab_forward.3} parent=5 // pred_fallthru
      _
    %p174 = scmp.lt.s32.totalorder %s11, 2
    // Predicated region
    $region29: #{fcab_forward.3} parent=5 // pred_check
      %p175 = pneg %p174
    $region30: #{fcab_forward.3} parent=5 // pred_check_branch
      %177 = sbr.rel (%p175) target = $region32
    $region31: #{fcab_forward.3} parent=5 // pred_region
      // Predicated region
      $region33: #{fcab_forward.3} parent=31 // pred_check
        %p178 = pneg %p31
      $region34: #{fcab_forward.3} parent=31 // pred_check_branch
        %180 = sbr.rel (%p178) target = $region36
      $region35: #{fcab_forward.3} parent=31 // pred_region
        %p181 = scmp.lt.s32.totalorder %s11, 1
        %s182 = scalar_select %p181, %s11, 1
        %s183 = smul.addr %s182, 8
        %s184 = smul.addr %s183, 8
        %s185 = scalar_lea.vmem %s0, %s184
      $region36: #{fcab_forward.3} parent=31 // pred_fallthru
        _
    $region32: #{fcab_forward.3} parent=5 // pred_fallthru
      _
    %p186 = scmp.le.s32.totalorder 1, %s11
    %p187 = scmp.lt.s32.totalorder %s11, 3
    %p188 = pnand %p186, %p187
    %p189 = pneg %p188
    // Predicated region
    $region37: #{fcab_forward.3} parent=5 // pred_check
      _
    $region38: #{fcab_forward.3} parent=5 // pred_check_branch
      %191 = sbr.rel (%p188) target = $region40
    $region39: #{fcab_forward.3} parent=5 // pred_region
      %s192 = ssub.s32 %s11, 1
      %p193 = scmp.lt.s32.totalorder %s16, 1
      %s194 = scalar_select %p193, %s16, 1
      %s195 = smul.addr %s194, 8
      %s196 = smul.addr %s195, 8
      %s197 = scalar_lea.vmem %s0, %s196
      %p198 = pneg %p37
      %p199 = pneg %p34
      %p200 = pneg %p58
      %p201 = pneg %p55
      %p202 = pneg %p79
      %p203 = pneg %p76
      %p204 = pneg %p100
      %p205 = pneg %p97
      %p206 = pneg %p121
      %p207 = pneg %p118
      %p208 = pneg %p147
      %p209 = pneg %p144
      %p210 = scmp.lt.s32.totalorder %s16, 1
      %s211 = scalar_select %p210, %s16, 1
      %s212 = smul.addr %s211, 8
      %s213 = smul.addr %s212, 8
      %s214 = scalar_lea.vmem %s5, %s213
      %p215 = scmp.lt.s32.totalorder %s16, 1
      %s216 = scalar_select %p215, %s16, 1
      %s217 = smul.addr %s216, 8
      %s218 = smul.addr %s217, 8
      %s219 = scalar_lea.vmem %s0, %s218
      %p220 = scmp.lt.s32.totalorder %s16, 1
      %s221 = scalar_select %p220, %s16, 1
      %s222 = smul.addr %s221, 8
      %s223 = smul.addr %s222, 8
      %s224 = scalar_lea.vmem %s5, %s223
      %v226 = vld [vmem:[%s219] sm:$0xff]
      %v227 = vld [vmem:[%s219 + $0x8] sm:$0xff]
      %v228 = vld [vmem:[%s219 + $0x10] sm:$0xff]
      %v229 = vld [vmem:[%s219 + $0x18] sm:$0xff]
      %v230 = vld [vmem:[%s219 + $0x20] sm:$0xff]
      %v231 = vld [vmem:[%s219 + $0x28] sm:$0xff]
      %v232 = vld [vmem:[%s219 + $0x30] sm:$0xff]
      %v233 = vld [vmem:[%s219 + $0x38] sm:$0xff]
      %234 = vxpose.xlu0.b32.start [1/16] %v226, 128
      %235 = vxpose.xlu0.b32.cont [2/16] %v228, 128
      %236 = vxpose.xlu0.b32.cont [3/16] %v230, 128
      %237 = vxpose.xlu0.b32.cont [4/16] %v232, 128
      %238 = vxpose.xlu0.b32.cont [5/16] 0.0, 128
      %239 = vxpose.xlu0.b32.cont [6/16] 0.0, 128
      %240 = vxpose.xlu0.b32.cont [7/16] 0.0, 128
      %241 = vxpose.xlu0.b32.cont [8/16] 0.0, 128
      %242 = vxpose.xlu0.b32.cont [9/16] 0.0, 128
      %243 = vxpose.xlu0.b32.cont [10/16] 0.0, 128
      %244 = vxpose.xlu0.b32.cont [11/16] 0.0, 128
      %245 = vxpose.xlu0.b32.cont [12/16] 0.0, 128
      %246 = vxpose.xlu0.b32.cont [13/16] 0.0, 128
      %247 = vxpose.xlu0.b32.cont [14/16] 0.0, 128
      %248 = vxpose.xlu0.b32.cont [15/16] 0.0, 128
      %249 = vxpose.xlu0.b32.end [16/16] 0.0, 128
      %v250 = vpop.trf.xlu0
      %v251 = vpop.trf.xlu0
      %v252 = vpop.trf.xlu0
      %v253 = vpop.trf.xlu0
      %v254 = vpop.trf.xlu0
      %v255 = vpop.trf.xlu0
      %v256 = vpop.trf.xlu0
      %v257 = vpop.trf.xlu0
      %v258 = vpop.trf.xlu0
      %v259 = vpop.trf.xlu0
      %v260 = vpop.trf.xlu0
      %v261 = vpop.trf.xlu0
      %v262 = vpop.trf.xlu0
      %v263 = vpop.trf.xlu0
      %v264 = vpop.trf.xlu0
      %v265 = vpop.trf.xlu0
      %266 = vxpose.xlu0.b32.start [1/16] %v227, 128
      %267 = vxpose.xlu0.b32.cont [2/16] %v229, 128
      %268 = vxpose.xlu0.b32.cont [3/16] %v231, 128
      %269 = vxpose.xlu0.b32.cont [4/16] %v233, 128
      %270 = vxpose.xlu0.b32.cont [5/16] 0.0, 128
      %271 = vxpose.xlu0.b32.cont [6/16] 0.0, 128
      %272 = vxpose.xlu0.b32.cont [7/16] 0.0, 128
      %273 = vxpose.xlu0.b32.cont [8/16] 0.0, 128
      %274 = vxpose.xlu0.b32.cont [9/16] 0.0, 128
      %275 = vxpose.xlu0.b32.cont [10/16] 0.0, 128
      %276 = vxpose.xlu0.b32.cont [11/16] 0.0, 128
      %277 = vxpose.xlu0.b32.cont [12/16] 0.0, 128
      %278 = vxpose.xlu0.b32.cont [13/16] 0.0, 128
      %279 = vxpose.xlu0.b32.cont [14/16] 0.0, 128
      %280 = vxpose.xlu0.b32.cont [15/16] 0.0, 128
      %281 = vxpose.xlu0.b32.end [16/16] 0.0, 128
      %v282 = vpop.trf.xlu0
      %v283 = vpop.trf.xlu0
      %v284 = vpop.trf.xlu0
      %v285 = vpop.trf.xlu0
      %v286 = vpop.trf.xlu0
      %v287 = vpop.trf.xlu0
      %v288 = vpop.trf.xlu0
      %v289 = vpop.trf.xlu0
      %v290 = vpop.trf.xlu0
      %v291 = vpop.trf.xlu0
      %v292 = vpop.trf.xlu0
      %v293 = vpop.trf.xlu0
      %v294 = vpop.trf.xlu0
      %v295 = vpop.trf.xlu0
      %v296 = vpop.trf.xlu0
      %v297 = vpop.trf.xlu0
      %vm331 = vcmask 1040384
      %v332 = vrot.slane 0.0, 7
      %v333 = vsel %vm331, %v332, %v332
      %v334 = vrot.slane %v250, 7
      %v335 = vrot.slane %v251, 7
      %v336 = vsel %vm331, %v334, %v335
      %v337 = vrot.slane %v252, 7
      %v338 = vrot.slane %v253, 7
      %v339 = vsel %vm331, %v337, %v338
      %v340 = vrot.slane %v254, 7
      %v341 = vrot.slane %v255, 7
      %v342 = vsel %vm331, %v340, %v341
      %v343 = vrot.slane %v256, 7
      %v344 = vrot.slane %v257, 7
      %v345 = vsel %vm331, %v343, %v344
      %v346 = vrot.slane %v258, 7
      %v347 = vrot.slane %v259, 7
      %v348 = vsel %vm331, %v346, %v347
      %v349 = vrot.slane %v260, 7
      %v350 = vrot.slane %v261, 7
      %v351 = vsel %vm331, %v349, %v350
      %v352 = vrot.slane %v262, 7
      %v353 = vrot.slane %v263, 7
      %v354 = vsel %vm331, %v352, %v353
      %v355 = vrot.slane %v264, 7
      %v356 = vrot.slane %v265, 7
      %v357 = vsel %vm331, %v355, %v356
      %v358 = vrot.slane %v282, 7
      %v359 = vrot.slane %v283, 7
      %v360 = vsel %vm331, %v358, %v359
      %v361 = vrot.slane %v284, 7
      %v362 = vrot.slane %v285, 7
      %v363 = vsel %vm331, %v361, %v362
      %v364 = vrot.slane %v286, 7
      %v365 = vrot.slane %v287, 7
      %v366 = vsel %vm331, %v364, %v365
      %v367 = vrot.slane %v288, 7
      %v368 = vrot.slane %v289, 7
      %v369 = vsel %vm331, %v367, %v368
      %v370 = vrot.slane %v290, 7
      %v371 = vrot.slane %v291, 7
      %v372 = vsel %vm331, %v370, %v371
      %v373 = vrot.slane %v292, 7
      %v374 = vrot.slane %v293, 7
      %v375 = vsel %vm331, %v373, %v374
      %v376 = vrot.slane %v294, 7
      %v377 = vrot.slane %v295, 7
      %v378 = vsel %vm331, %v376, %v377
      %v379 = vrot.slane %v296, 7
      %v380 = vrot.slane %v297, 7
      %v381 = vsel %vm331, %v379, %v380
      %v431 = vsel %vm331, 0.0, %v332
      %v432 = vsel %vm331, 0.0, %v334
      %v433 = vsel %vm331, 0.0, %v337
      %v434 = vsel %vm331, 0.0, %v340
      %v435 = vsel %vm331, 0.0, %v343
      %v436 = vsel %vm331, 0.0, %v346
      %v437 = vsel %vm331, 0.0, %v349
      %v438 = vsel %vm331, 0.0, %v352
      %v439 = vsel %vm331, 0.0, %v355
      %v440 = vsel %vm331, 0.0, %v358
      %v441 = vsel %vm331, 0.0, %v361
      %v442 = vsel %vm331, 0.0, %v364
      %v443 = vsel %vm331, 0.0, %v367
      %v444 = vsel %vm331, 0.0, %v370
      %v445 = vsel %vm331, 0.0, %v373
      %v446 = vsel %vm331, 0.0, %v376
      %v447 = vsel %vm331, 0.0, %v379
      %v448 = vsel %vm331, %v332, 0.0
      %v449 = vsel %vm331, %v335, 0.0
      %v450 = vsel %vm331, %v338, 0.0
      %v451 = vsel %vm331, %v341, 0.0
      %v452 = vsel %vm331, %v344, 0.0
      %v453 = vsel %vm331, %v347, 0.0
      %v454 = vsel %vm331, %v350, 0.0
      %v455 = vsel %vm331, %v353, 0.0
      %v456 = vsel %vm331, %v356, 0.0
      %v457 = vsel %vm331, %v359, 0.0
      %v458 = vsel %vm331, %v362, 0.0
      %v459 = vsel %vm331, %v365, 0.0
      %v460 = vsel %vm331, %v368, 0.0
      %v461 = vsel %vm331, %v371, 0.0
      %v462 = vsel %vm331, %v374, 0.0
      %v463 = vsel %vm331, %v377, 0.0
      %v464 = vsel %vm331, %v380, 0.0
      %vm497 = vcmask 1046528
      %v498 = vrot.slane %v431, 1
      %v499 = vrot.slane %v333, 1
      %v500 = vsel %vm497, %v498, %v499
      %v501 = vrot.slane %v448, 1
      %v502 = vsel %vm497, %v499, %v501
      %v503 = vrot.slane %v432, 1
      %v504 = vrot.slane %v336, 1
      %v505 = vsel %vm497, %v503, %v504
      %v506 = vrot.slane %v449, 1
      %v507 = vsel %vm497, %v504, %v506
      %v508 = vrot.slane %v433, 1
      %v509 = vrot.slane %v339, 1
      %v510 = vsel %vm497, %v508, %v509
      %v511 = vrot.slane %v450, 1
      %v512 = vsel %vm497, %v509, %v511
      %v513 = vrot.slane %v434, 1
      %v514 = vrot.slane %v342, 1
      %v515 = vsel %vm497, %v513, %v514
      %v516 = vrot.slane %v451, 1
      %v517 = vsel %vm497, %v514, %v516
      %v518 = vrot.slane %v435, 1
      %v519 = vrot.slane %v345, 1
      %v520 = vsel %vm497, %v518, %v519
      %v521 = vrot.slane %v452, 1
      %v522 = vsel %vm497, %v519, %v521
      %v523 = vrot.slane %v436, 1
      %v524 = vrot.slane %v348, 1
      %v525 = vsel %vm497, %v523, %v524
      %v526 = vrot.slane %v453, 1
      %v527 = vsel %vm497, %v524, %v526
      %v528 = vrot.slane %v437, 1
      %v529 = vrot.slane %v351, 1
      %v530 = vsel %vm497, %v528, %v529
      %v531 = vrot.slane %v454, 1
      %v532 = vsel %vm497, %v529, %v531
      %v533 = vrot.slane %v438, 1
      %v534 = vrot.slane %v354, 1
      %v535 = vsel %vm497, %v533, %v534
      %v536 = vrot.slane %v455, 1
      %v537 = vsel %vm497, %v534, %v536
      %v538 = vrot.slane %v439, 1
      %v539 = vrot.slane %v357, 1
      %v540 = vsel %vm497, %v538, %v539
      %v541 = vrot.slane %v456, 1
      %v542 = vsel %vm497, %v539, %v541
      %v543 = vrot.slane %v440, 1
      %v544 = vrot.slane %v360, 1
      %v545 = vsel %vm497, %v543, %v544
      %v546 = vrot.slane %v457, 1
      %v547 = vsel %vm497, %v544, %v546
      %v548 = vrot.slane %v441, 1
      %v549 = vrot.slane %v363, 1
      %v550 = vsel %vm497, %v548, %v549
      %v551 = vrot.slane %v458, 1
      %v552 = vsel %vm497, %v549, %v551
      %v553 = vrot.slane %v442, 1
      %v554 = vrot.slane %v366, 1
      %v555 = vsel %vm497, %v553, %v554
      %v556 = vrot.slane %v459, 1
      %v557 = vsel %vm497, %v554, %v556
      %v558 = vrot.slane %v443, 1
      %v559 = vrot.slane %v369, 1
      %v560 = vsel %vm497, %v558, %v559
      %v561 = vrot.slane %v460, 1
      %v562 = vsel %vm497, %v559, %v561
      %v563 = vrot.slane %v444, 1
      %v564 = vrot.slane %v372, 1
      %v565 = vsel %vm497, %v563, %v564
      %v566 = vrot.slane %v461, 1
      %v567 = vsel %vm497, %v564, %v566
      %v568 = vrot.slane %v445, 1
      %v569 = vrot.slane %v375, 1
      %v570 = vsel %vm497, %v568, %v569
      %v571 = vrot.slane %v462, 1
      %v572 = vsel %vm497, %v569, %v571
      %v573 = vrot.slane %v446, 1
      %v574 = vrot.slane %v378, 1
      %v575 = vsel %vm497, %v573, %v574
      %v576 = vrot.slane %v463, 1
      %v577 = vsel %vm497, %v574, %v576
      %vm578 = vcmask 1045504
      %v579 = vrot.slane %v431, 2
      %v580 = vrot.slane %v333, 2
      %v581 = vsel %vm578, %v579, %v580
      %v582 = vrot.slane %v448, 2
      %v583 = vsel %vm578, %v580, %v582
      %v584 = vrot.slane %v432, 2
      %v585 = vrot.slane %v336, 2
      %v586 = vsel %vm578, %v584, %v585
      %v587 = vrot.slane %v449, 2
      %v588 = vsel %vm578, %v585, %v587
      %v589 = vrot.slane %v433, 2
      %v590 = vrot.slane %v339, 2
      %v591 = vsel %vm578, %v589, %v590
      %v592 = vrot.slane %v450, 2
      %v593 = vsel %vm578, %v590, %v592
      %v594 = vrot.slane %v434, 2
      %v595 = vrot.slane %v342, 2
      %v596 = vsel %vm578, %v594, %v595
      %v597 = vrot.slane %v451, 2
      %v598 = vsel %vm578, %v595, %v597
      %v599 = vrot.slane %v435, 2
      %v600 = vrot.slane %v345, 2
      %v601 = vsel %vm578, %v599, %v600
      %v602 = vrot.slane %v452, 2
      %v603 = vsel %vm578, %v600, %v602
      %v604 = vrot.slane %v436, 2
      %v605 = vrot.slane %v348, 2
      %v606 = vsel %vm578, %v604, %v605
      %v607 = vrot.slane %v453, 2
      %v608 = vsel %vm578, %v605, %v607
      %v609 = vrot.slane %v437, 2
      %v610 = vrot.slane %v351, 2
      %v611 = vsel %vm578, %v609, %v610
      %v612 = vrot.slane %v454, 2
      %v613 = vsel %vm578, %v610, %v612
      %v614 = vrot.slane %v438, 2
      %v615 = vrot.slane %v354, 2
      %v616 = vsel %vm578, %v614, %v615
      %v617 = vrot.slane %v455, 2
      %v618 = vsel %vm578, %v615, %v617
      %v619 = vrot.slane %v439, 2
      %v620 = vrot.slane %v357, 2
      %v621 = vsel %vm578, %v619, %v620
      %v622 = vrot.slane %v456, 2
      %v623 = vsel %vm578, %v620, %v622
      %v624 = vrot.slane %v440, 2
      %v625 = vrot.slane %v360, 2
      %v626 = vsel %vm578, %v624, %v625
      %v627 = vrot.slane %v457, 2
      %v628 = vsel %vm578, %v625, %v627
      %v629 = vrot.slane %v441, 2
      %v630 = vrot.slane %v363, 2
      %v631 = vsel %vm578, %v629, %v630
      %v632 = vrot.slane %v458, 2
      %v633 = vsel %vm578, %v630, %v632
      %v634 = vrot.slane %v442, 2
      %v635 = vrot.slane %v366, 2
      %v636 = vsel %vm578, %v634, %v635
      %v637 = vrot.slane %v459, 2
      %v638 = vsel %vm578, %v635, %v637
      %v639 = vrot.slane %v443, 2
      %v640 = vrot.slane %v369, 2
      %v641 = vsel %vm578, %v639, %v640
      %v642 = vrot.slane %v460, 2
      %v643 = vsel %vm578, %v640, %v642
      %v644 = vrot.slane %v444, 2
      %v645 = vrot.slane %v372, 2
      %v646 = vsel %vm578, %v644, %v645
      %v647 = vrot.slane %v461, 2
      %v648 = vsel %vm578, %v645, %v647
      %v649 = vrot.slane %v445, 2
      %v650 = vrot.slane %v375, 2
      %v651 = vsel %vm578, %v649, %v650
      %v652 = vrot.slane %v462, 2
      %v653 = vsel %vm578, %v650, %v652
      %v654 = vrot.slane %v446, 2
      %v655 = vrot.slane %v378, 2
      %v656 = vsel %vm578, %v654, %v655
      %v657 = vrot.slane %v463, 2
      %v658 = vsel %vm578, %v655, %v657
      %v661 = vrot.slane %v447, 1
      %v662 = vrot.slane %v381, 1
      %v663 = vsel %vm497, %v661, %v662
      %v664 = vrot.slane %v464, 1
      %v665 = vsel %vm497, %v662, %v664
      %v698 = vrot.slane %v447, 2
      %v699 = vrot.slane %v381, 2
      %v700 = vsel %vm578, %v698, %v699
      %v701 = vrot.slane %v464, 2
      %v702 = vsel %vm578, %v699, %v701
      %735 = vrot.lane.b32.xlu0 %v500, 32
      %v736 = vpop.permute.xlu0 %735
      %737 = vrot.lane.b32.xlu0 %v502, 32
      %v738 = vpop.permute.xlu0 %737
      %739 = vrot.lane.b32.xlu0 %v505, 32
      %v740 = vpop.permute.xlu0 %739
      %741 = vrot.lane.b32.xlu0 %v507, 32
      %v742 = vpop.permute.xlu0 %741
      %743 = vrot.lane.b32.xlu0 %v510, 32
      %v744 = vpop.permute.xlu0 %743
      %745 = vrot.lane.b32.xlu0 %v512, 32
      %v746 = vpop.permute.xlu0 %745
      %747 = vrot.lane.b32.xlu0 %v515, 32
      %v748 = vpop.permute.xlu0 %747
      %749 = vrot.lane.b32.xlu0 %v517, 32
      %v750 = vpop.permute.xlu0 %749
      %751 = vrot.lane.b32.xlu0 %v520, 32
      %v752 = vpop.permute.xlu0 %751
      %753 = vrot.lane.b32.xlu0 %v522, 32
      %v754 = vpop.permute.xlu0 %753
      %755 = vrot.lane.b32.xlu0 %v525, 32
      %v756 = vpop.permute.xlu0 %755
      %757 = vrot.lane.b32.xlu0 %v527, 32
      %v758 = vpop.permute.xlu0 %757
      %759 = vrot.lane.b32.xlu0 %v530, 32
      %v760 = vpop.permute.xlu0 %759
      %761 = vrot.lane.b32.xlu0 %v532, 32
      %v762 = vpop.permute.xlu0 %761
      %763 = vrot.lane.b32.xlu0 %v535, 32
      %v764 = vpop.permute.xlu0 %763
      %765 = vrot.lane.b32.xlu0 %v537, 32
      %v766 = vpop.permute.xlu0 %765
      %767 = vrot.lane.b32.xlu0 %v540, 32
      %v768 = vpop.permute.xlu0 %767
      %769 = vrot.lane.b32.xlu0 %v542, 32
      %v770 = vpop.permute.xlu0 %769
      %771 = vrot.lane.b32.xlu0 %v545, 32
      %v772 = vpop.permute.xlu0 %771
      %773 = vrot.lane.b32.xlu0 %v547, 32
      %v774 = vpop.permute.xlu0 %773
      %775 = vrot.lane.b32.xlu0 %v550, 32
      %v776 = vpop.permute.xlu0 %775
      %777 = vrot.lane.b32.xlu0 %v552, 32
      %v778 = vpop.permute.xlu0 %777
      %779 = vrot.lane.b32.xlu0 %v555, 32
      %v780 = vpop.permute.xlu0 %779
      %781 = vrot.lane.b32.xlu0 %v557, 32
      %v782 = vpop.permute.xlu0 %781
      %783 = vrot.lane.b32.xlu0 %v560, 32
      %v784 = vpop.permute.xlu0 %783
      %785 = vrot.lane.b32.xlu0 %v562, 32
      %v786 = vpop.permute.xlu0 %785
      %787 = vrot.lane.b32.xlu0 %v565, 32
      %v788 = vpop.permute.xlu0 %787
      %789 = vrot.lane.b32.xlu0 %v567, 32
      %v790 = vpop.permute.xlu0 %789
      %791 = vrot.lane.b32.xlu0 %v570, 32
      %v792 = vpop.permute.xlu0 %791
      %793 = vrot.lane.b32.xlu0 %v572, 32
      %v794 = vpop.permute.xlu0 %793
      %795 = vrot.lane.b32.xlu0 %v575, 32
      %v796 = vpop.permute.xlu0 %795
      %797 = vrot.lane.b32.xlu0 %v577, 32
      %v798 = vpop.permute.xlu0 %797
      %831 = vrot.lane.b32.xlu0 %v581, 64
      %v832 = vpop.permute.xlu0 %831
      %833 = vrot.lane.b32.xlu0 %v583, 64
      %v834 = vpop.permute.xlu0 %833
      %835 = vrot.lane.b32.xlu0 %v586, 64
      %v836 = vpop.permute.xlu0 %835
      %837 = vrot.lane.b32.xlu0 %v588, 64
      %v838 = vpop.permute.xlu0 %837
      %839 = vrot.lane.b32.xlu0 %v591, 64
      %v840 = vpop.permute.xlu0 %839
      %841 = vrot.lane.b32.xlu0 %v593, 64
      %v842 = vpop.permute.xlu0 %841
      %843 = vrot.lane.b32.xlu0 %v596, 64
      %v844 = vpop.permute.xlu0 %843
      %845 = vrot.lane.b32.xlu0 %v598, 64
      %v846 = vpop.permute.xlu0 %845
      %847 = vrot.lane.b32.xlu0 %v601, 64
      %v848 = vpop.permute.xlu0 %847
      %849 = vrot.lane.b32.xlu0 %v603, 64
      %v850 = vpop.permute.xlu0 %849
      %851 = vrot.lane.b32.xlu0 %v606, 64
      %v852 = vpop.permute.xlu0 %851
      %853 = vrot.lane.b32.xlu0 %v608, 64
      %v854 = vpop.permute.xlu0 %853
      %855 = vrot.lane.b32.xlu0 %v611, 64
      %v856 = vpop.permute.xlu0 %855
      %857 = vrot.lane.b32.xlu0 %v613, 64
      %v858 = vpop.permute.xlu0 %857
      %859 = vrot.lane.b32.xlu0 %v616, 64
      %v860 = vpop.permute.xlu0 %859
      %861 = vrot.lane.b32.xlu0 %v618, 64
      %v862 = vpop.permute.xlu0 %861
      %863 = vrot.lane.b32.xlu0 %v621, 64
      %v864 = vpop.permute.xlu0 %863
      %865 = vrot.lane.b32.xlu0 %v623, 64
      %v866 = vpop.permute.xlu0 %865
      %867 = vrot.lane.b32.xlu0 %v626, 64
      %v868 = vpop.permute.xlu0 %867
      %869 = vrot.lane.b32.xlu0 %v628, 64
      %v870 = vpop.permute.xlu0 %869
      %871 = vrot.lane.b32.xlu0 %v631, 64
      %v872 = vpop.permute.xlu0 %871
      %873 = vrot.lane.b32.xlu0 %v633, 64
      %v874 = vpop.permute.xlu0 %873
      %875 = vrot.lane.b32.xlu0 %v636, 64
      %v876 = vpop.permute.xlu0 %875
      %877 = vrot.lane.b32.xlu0 %v638, 64
      %v878 = vpop.permute.xlu0 %877
      %879 = vrot.lane.b32.xlu0 %v641, 64
      %v880 = vpop.permute.xlu0 %879
      %881 = vrot.lane.b32.xlu0 %v643, 64
      %v882 = vpop.permute.xlu0 %881
      %883 = vrot.lane.b32.xlu0 %v646, 64
      %v884 = vpop.permute.xlu0 %883
      %885 = vrot.lane.b32.xlu0 %v648, 64
      %v886 = vpop.permute.xlu0 %885
      %887 = vrot.lane.b32.xlu0 %v651, 64
      %v888 = vpop.permute.xlu0 %887
      %889 = vrot.lane.b32.xlu0 %v653, 64
      %v890 = vpop.permute.xlu0 %889
      %891 = vrot.lane.b32.xlu0 %v656, 64
      %v892 = vpop.permute.xlu0 %891
      %893 = vrot.lane.b32.xlu0 %v658, 64
      %v894 = vpop.permute.xlu0 %893
      %927 = vrot.lane.b32.xlu0 %v432, 96
      %v928 = vpop.permute.xlu0 %927
      %929 = vrot.lane.b32.xlu0 %v336, 96
      %v930 = vpop.permute.xlu0 %929
      %931 = vrot.lane.b32.xlu0 %v433, 96
      %v932 = vpop.permute.xlu0 %931
      %933 = vrot.lane.b32.xlu0 %v339, 96
      %v934 = vpop.permute.xlu0 %933
      %935 = vrot.lane.b32.xlu0 %v434, 96
      %v936 = vpop.permute.xlu0 %935
      %937 = vrot.lane.b32.xlu0 %v342, 96
      %v938 = vpop.permute.xlu0 %937
      %939 = vrot.lane.b32.xlu0 %v435, 96
      %v940 = vpop.permute.xlu0 %939
      %941 = vrot.lane.b32.xlu0 %v345, 96
      %v942 = vpop.permute.xlu0 %941
      %943 = vrot.lane.b32.xlu0 %v436, 96
      %v944 = vpop.permute.xlu0 %943
      %945 = vrot.lane.b32.xlu0 %v348, 96
      %v946 = vpop.permute.xlu0 %945
      %947 = vrot.lane.b32.xlu0 %v437, 96
      %v948 = vpop.permute.xlu0 %947
      %949 = vrot.lane.b32.xlu0 %v351, 96
      %v950 = vpop.permute.xlu0 %949
      %951 = vrot.lane.b32.xlu0 %v438, 96
      %v952 = vpop.permute.xlu0 %951
      %953 = vrot.lane.b32.xlu0 %v354, 96
      %v954 = vpop.permute.xlu0 %953
      %955 = vrot.lane.b32.xlu0 %v439, 96
      %v956 = vpop.permute.xlu0 %955
      %957 = vrot.lane.b32.xlu0 %v357, 96
      %v958 = vpop.permute.xlu0 %957
      %959 = vrot.lane.b32.xlu0 %v440, 96
      %v960 = vpop.permute.xlu0 %959
      %961 = vrot.lane.b32.xlu0 %v360, 96
      %v962 = vpop.permute.xlu0 %961
      %963 = vrot.lane.b32.xlu0 %v441, 96
      %v964 = vpop.permute.xlu0 %963
      %965 = vrot.lane.b32.xlu0 %v363, 96
      %v966 = vpop.permute.xlu0 %965
      %967 = vrot.lane.b32.xlu0 %v442, 96
      %v968 = vpop.permute.xlu0 %967
      %969 = vrot.lane.b32.xlu0 %v366, 96
      %v970 = vpop.permute.xlu0 %969
      %971 = vrot.lane.b32.xlu0 %v443, 96
      %v972 = vpop.permute.xlu0 %971
      %973 = vrot.lane.b32.xlu0 %v369, 96
      %v974 = vpop.permute.xlu0 %973
      %975 = vrot.lane.b32.xlu0 %v444, 96
      %v976 = vpop.permute.xlu0 %975
      %977 = vrot.lane.b32.xlu0 %v372, 96
      %v978 = vpop.permute.xlu0 %977
      %979 = vrot.lane.b32.xlu0 %v445, 96
      %v980 = vpop.permute.xlu0 %979
      %981 = vrot.lane.b32.xlu0 %v375, 96
      %v982 = vpop.permute.xlu0 %981
      %983 = vrot.lane.b32.xlu0 %v446, 96
      %v984 = vpop.permute.xlu0 %983
      %985 = vrot.lane.b32.xlu0 %v378, 96
      %v986 = vpop.permute.xlu0 %985
      %987 = vrot.lane.b32.xlu0 %v447, 96
      %v988 = vpop.permute.xlu0 %987
      %989 = vrot.lane.b32.xlu0 %v381, 96
      %v990 = vpop.permute.xlu0 %989
      %1023 = vrot.lane.b32.xlu0 %v586, 32
      %v1024 = vpop.permute.xlu0 %1023
      %1025 = vrot.lane.b32.xlu0 %v588, 32
      %v1026 = vpop.permute.xlu0 %1025
      %1027 = vrot.lane.b32.xlu0 %v591, 32
      %v1028 = vpop.permute.xlu0 %1027
      %1029 = vrot.lane.b32.xlu0 %v593, 32
      %v1030 = vpop.permute.xlu0 %1029
      %1031 = vrot.lane.b32.xlu0 %v596, 32
      %v1032 = vpop.permute.xlu0 %1031
      %1033 = vrot.lane.b32.xlu0 %v598, 32
      %v1034 = vpop.permute.xlu0 %1033
      %1035 = vrot.lane.b32.xlu0 %v601, 32
      %v1036 = vpop.permute.xlu0 %1035
      %1037 = vrot.lane.b32.xlu0 %v603, 32
      %v1038 = vpop.permute.xlu0 %1037
      %1039 = vrot.lane.b32.xlu0 %v606, 32
      %v1040 = vpop.permute.xlu0 %1039
      %1041 = vrot.lane.b32.xlu0 %v608, 32
      %v1042 = vpop.permute.xlu0 %1041
      %1043 = vrot.lane.b32.xlu0 %v611, 32
      %v1044 = vpop.permute.xlu0 %1043
      %1045 = vrot.lane.b32.xlu0 %v613, 32
      %v1046 = vpop.permute.xlu0 %1045
      %1047 = vrot.lane.b32.xlu0 %v616, 32
      %v1048 = vpop.permute.xlu0 %1047
      %1049 = vrot.lane.b32.xlu0 %v618, 32
      %v1050 = vpop.permute.xlu0 %1049
      %1051 = vrot.lane.b32.xlu0 %v621, 32
      %v1052 = vpop.permute.xlu0 %1051
      %1053 = vrot.lane.b32.xlu0 %v623, 32
      %v1054 = vpop.permute.xlu0 %1053
      %1055 = vrot.lane.b32.xlu0 %v626, 32
      %v1056 = vpop.permute.xlu0 %1055
      %1057 = vrot.lane.b32.xlu0 %v628, 32
      %v1058 = vpop.permute.xlu0 %1057
      %1059 = vrot.lane.b32.xlu0 %v631, 32
      %v1060 = vpop.permute.xlu0 %1059
      %1061 = vrot.lane.b32.xlu0 %v633, 32
      %v1062 = vpop.permute.xlu0 %1061
      %1063 = vrot.lane.b32.xlu0 %v636, 32
      %v1064 = vpop.permute.xlu0 %1063
      %1065 = vrot.lane.b32.xlu0 %v638, 32
      %v1066 = vpop.permute.xlu0 %1065
      %1067 = vrot.lane.b32.xlu0 %v641, 32
      %v1068 = vpop.permute.xlu0 %1067
      %1069 = vrot.lane.b32.xlu0 %v643, 32
      %v1070 = vpop.permute.xlu0 %1069
      %1071 = vrot.lane.b32.xlu0 %v646, 32
      %v1072 = vpop.permute.xlu0 %1071
      %1073 = vrot.lane.b32.xlu0 %v648, 32
      %v1074 = vpop.permute.xlu0 %1073
      %1075 = vrot.lane.b32.xlu0 %v651, 32
      %v1076 = vpop.permute.xlu0 %1075
      %1077 = vrot.lane.b32.xlu0 %v653, 32
      %v1078 = vpop.permute.xlu0 %1077
      %1079 = vrot.lane.b32.xlu0 %v656, 32
      %v1080 = vpop.permute.xlu0 %1079
      %1081 = vrot.lane.b32.xlu0 %v658, 32
      %v1082 = vpop.permute.xlu0 %1081
      %1083 = vrot.lane.b32.xlu0 %v700, 32
      %v1084 = vpop.permute.xlu0 %1083
      %1085 = vrot.lane.b32.xlu0 %v702, 32
      %v1086 = vpop.permute.xlu0 %1085
      %1119 = vrot.lane.b32.xlu0 %v433, 64
      %v1120 = vpop.permute.xlu0 %1119
      %1121 = vrot.lane.b32.xlu0 %v339, 64
      %v1122 = vpop.permute.xlu0 %1121
      %1123 = vrot.lane.b32.xlu0 %v434, 64
      %v1124 = vpop.permute.xlu0 %1123
      %1125 = vrot.lane.b32.xlu0 %v342, 64
      %v1126 = vpop.permute.xlu0 %1125
      %1127 = vrot.lane.b32.xlu0 %v435, 64
      %v1128 = vpop.permute.xlu0 %1127
      %1129 = vrot.lane.b32.xlu0 %v345, 64
      %v1130 = vpop.permute.xlu0 %1129
      %1131 = vrot.lane.b32.xlu0 %v436, 64
      %v1132 = vpop.permute.xlu0 %1131
      %1133 = vrot.lane.b32.xlu0 %v348, 64
      %v1134 = vpop.permute.xlu0 %1133
      %1135 = vrot.lane.b32.xlu0 %v437, 64
      %v1136 = vpop.permute.xlu0 %1135
      %1137 = vrot.lane.b32.xlu0 %v351, 64
      %v1138 = vpop.permute.xlu0 %1137
      %1139 = vrot.lane.b32.xlu0 %v438, 64
      %v1140 = vpop.permute.xlu0 %1139
      %1141 = vrot.lane.b32.xlu0 %v354, 64
      %v1142 = vpop.permute.xlu0 %1141
      %1143 = vrot.lane.b32.xlu0 %v439, 64
      %v1144 = vpop.permute.xlu0 %1143
      %1145 = vrot.lane.b32.xlu0 %v357, 64
      %v1146 = vpop.permute.xlu0 %1145
      %1147 = vrot.lane.b32.xlu0 %v440, 64
      %v1148 = vpop.permute.xlu0 %1147
      %1149 = vrot.lane.b32.xlu0 %v360, 64
      %v1150 = vpop.permute.xlu0 %1149
      %1151 = vrot.lane.b32.xlu0 %v441, 64
      %v1152 = vpop.permute.xlu0 %1151
      %1153 = vrot.lane.b32.xlu0 %v363, 64
      %v1154 = vpop.permute.xlu0 %1153
      %1155 = vrot.lane.b32.xlu0 %v442, 64
      %v1156 = vpop.permute.xlu0 %1155
      %1157 = vrot.lane.b32.xlu0 %v366, 64
      %v1158 = vpop.permute.xlu0 %1157
      %1159 = vrot.lane.b32.xlu0 %v443, 64
      %v1160 = vpop.permute.xlu0 %1159
      %1161 = vrot.lane.b32.xlu0 %v369, 64
      %v1162 = vpop.permute.xlu0 %1161
      %1163 = vrot.lane.b32.xlu0 %v444, 64
      %v1164 = vpop.permute.xlu0 %1163
      %1165 = vrot.lane.b32.xlu0 %v372, 64
      %v1166 = vpop.permute.xlu0 %1165
      %1167 = vrot.lane.b32.xlu0 %v445, 64
      %v1168 = vpop.permute.xlu0 %1167
      %1169 = vrot.lane.b32.xlu0 %v375, 64
      %v1170 = vpop.permute.xlu0 %1169
      %1171 = vrot.lane.b32.xlu0 %v446, 64
      %v1172 = vpop.permute.xlu0 %1171
      %1173 = vrot.lane.b32.xlu0 %v378, 64
      %v1174 = vpop.permute.xlu0 %1173
      %1175 = vrot.lane.b32.xlu0 %v447, 64
      %v1176 = vpop.permute.xlu0 %1175
      %1177 = vrot.lane.b32.xlu0 %v381, 64
      %v1178 = vpop.permute.xlu0 %1177
      %1179 = vrot.lane.b32.xlu0 %v431, 64
      %v1180 = vpop.permute.xlu0 %1179
      %1181 = vrot.lane.b32.xlu0 %v333, 64
      %v1182 = vpop.permute.xlu0 %1181
      %1215 = vrot.lane.b32.xlu0 %v510, 96
      %v1216 = vpop.permute.xlu0 %1215
      %1217 = vrot.lane.b32.xlu0 %v512, 96
      %v1218 = vpop.permute.xlu0 %1217
      %1219 = vrot.lane.b32.xlu0 %v515, 96
      %v1220 = vpop.permute.xlu0 %1219
      %1221 = vrot.lane.b32.xlu0 %v517, 96
      %v1222 = vpop.permute.xlu0 %1221
      %1223 = vrot.lane.b32.xlu0 %v520, 96
      %v1224 = vpop.permute.xlu0 %1223
      %1225 = vrot.lane.b32.xlu0 %v522, 96
      %v1226 = vpop.permute.xlu0 %1225
      %1227 = vrot.lane.b32.xlu0 %v525, 96
      %v1228 = vpop.permute.xlu0 %1227
      %1229 = vrot.lane.b32.xlu0 %v527, 96
      %v1230 = vpop.permute.xlu0 %1229
      %1231 = vrot.lane.b32.xlu0 %v530, 96
      %v1232 = vpop.permute.xlu0 %1231
      %1233 = vrot.lane.b32.xlu0 %v532, 96
      %v1234 = vpop.permute.xlu0 %1233
      %1235 = vrot.lane.b32.xlu0 %v535, 96
      %v1236 = vpop.permute.xlu0 %1235
      %1237 = vrot.lane.b32.xlu0 %v537, 96
      %v1238 = vpop.permute.xlu0 %1237
      %1239 = vrot.lane.b32.xlu0 %v540, 96
      %v1240 = vpop.permute.xlu0 %1239
      %1241 = vrot.lane.b32.xlu0 %v542, 96
      %v1242 = vpop.permute.xlu0 %1241
      %1243 = vrot.lane.b32.xlu0 %v545, 96
      %v1244 = vpop.permute.xlu0 %1243
      %1245 = vrot.lane.b32.xlu0 %v547, 96
      %v1246 = vpop.permute.xlu0 %1245
      %1247 = vrot.lane.b32.xlu0 %v550, 96
      %v1248 = vpop.permute.xlu0 %1247
      %1249 = vrot.lane.b32.xlu0 %v552, 96
      %v1250 = vpop.permute.xlu0 %1249
      %1251 = vrot.lane.b32.xlu0 %v555, 96
      %v1252 = vpop.permute.xlu0 %1251
      %1253 = vrot.lane.b32.xlu0 %v557, 96
      %v1254 = vpop.permute.xlu0 %1253
      %1255 = vrot.lane.b32.xlu0 %v560, 96
      %v1256 = vpop.permute.xlu0 %1255
      %1257 = vrot.lane.b32.xlu0 %v562, 96
      %v1258 = vpop.permute.xlu0 %1257
      %1259 = vrot.lane.b32.xlu0 %v565, 96
      %v1260 = vpop.permute.xlu0 %1259
      %1261 = vrot.lane.b32.xlu0 %v567, 96
      %v1262 = vpop.permute.xlu0 %1261
      %1263 = vrot.lane.b32.xlu0 %v570, 96
      %v1264 = vpop.permute.xlu0 %1263
      %1265 = vrot.lane.b32.xlu0 %v572, 96
      %v1266 = vpop.permute.xlu0 %1265
      %1267 = vrot.lane.b32.xlu0 %v575, 96
      %v1268 = vpop.permute.xlu0 %1267
      %1269 = vrot.lane.b32.xlu0 %v577, 96
      %v1270 = vpop.permute.xlu0 %1269
      %1271 = vrot.lane.b32.xlu0 %v663, 96
      %v1272 = vpop.permute.xlu0 %1271
      %1273 = vrot.lane.b32.xlu0 %v665, 96
      %v1274 = vpop.permute.xlu0 %1273
      %1275 = vrot.lane.b32.xlu0 %v500, 96
      %v1276 = vpop.permute.xlu0 %1275
      %1277 = vrot.lane.b32.xlu0 %v502, 96
      %v1278 = vpop.permute.xlu0 %1277
      %vm1311 = vcmask 261120
      %v1312 = vsel %vm1311, %v431, %v736
      %v1313 = vsel %vm1311, %v333, %v738
      %v1314 = vsel %vm1311, %v432, %v740
      %v1315 = vsel %vm1311, %v336, %v742
      %v1316 = vsel %vm1311, %v433, %v744
      %v1317 = vsel %vm1311, %v339, %v746
      %v1318 = vsel %vm1311, %v434, %v748
      %v1319 = vsel %vm1311, %v342, %v750
      %v1320 = vsel %vm1311, %v435, %v752
      %v1321 = vsel %vm1311, %v345, %v754
      %v1322 = vsel %vm1311, %v436, %v756
      %v1323 = vsel %vm1311, %v348, %v758
      %v1324 = vsel %vm1311, %v437, %v760
      %v1325 = vsel %vm1311, %v351, %v762
      %v1326 = vsel %vm1311, %v438, %v764
      %v1327 = vsel %vm1311, %v354, %v766
      %v1328 = vsel %vm1311, %v439, %v768
      %v1329 = vsel %vm1311, %v357, %v770
      %v1330 = vsel %vm1311, %v440, %v772
      %v1331 = vsel %vm1311, %v360, %v774
      %v1332 = vsel %vm1311, %v441, %v776
      %v1333 = vsel %vm1311, %v363, %v778
      %v1334 = vsel %vm1311, %v442, %v780
      %v1335 = vsel %vm1311, %v366, %v782
      %v1336 = vsel %vm1311, %v443, %v784
      %v1337 = vsel %vm1311, %v369, %v786
      %v1338 = vsel %vm1311, %v444, %v788
      %v1339 = vsel %vm1311, %v372, %v790
      %v1340 = vsel %vm1311, %v445, %v792
      %v1341 = vsel %vm1311, %v375, %v794
      %v1342 = vsel %vm1311, %v446, %v796
      %v1343 = vsel %vm1311, %v378, %v798
      %vm1344 = vcmask 523264
      %v1345 = vsel %vm1344, %v1312, %v832
      %v1346 = vsel %vm1344, %v1313, %v834
      %v1347 = vsel %vm1344, %v1314, %v836
      %v1348 = vsel %vm1344, %v1315, %v838
      %v1349 = vsel %vm1344, %v1316, %v840
      %v1350 = vsel %vm1344, %v1317, %v842
      %v1351 = vsel %vm1344, %v1318, %v844
      %v1352 = vsel %vm1344, %v1319, %v846
      %v1353 = vsel %vm1344, %v1320, %v848
      %v1354 = vsel %vm1344, %v1321, %v850
      %v1355 = vsel %vm1344, %v1322, %v852
      %v1356 = vsel %vm1344, %v1323, %v854
      %v1357 = vsel %vm1344, %v1324, %v856
      %v1358 = vsel %vm1344, %v1325, %v858
      %v1359 = vsel %vm1344, %v1326, %v860
      %v1360 = vsel %vm1344, %v1327, %v862
      %v1361 = vsel %vm1344, %v1328, %v864
      %v1362 = vsel %vm1344, %v1329, %v866
      %v1363 = vsel %vm1344, %v1330, %v868
      %v1364 = vsel %vm1344, %v1331, %v870
      %v1365 = vsel %vm1344, %v1332, %v872
      %v1366 = vsel %vm1344, %v1333, %v874
      %v1367 = vsel %vm1344, %v1334, %v876
      %v1368 = vsel %vm1344, %v1335, %v878
      %v1369 = vsel %vm1344, %v1336, %v880
      %v1370 = vsel %vm1344, %v1337, %v882
      %v1371 = vsel %vm1344, %v1338, %v884
      %v1372 = vsel %vm1344, %v1339, %v886
      %v1373 = vsel %vm1344, %v1340, %v888
      %v1374 = vsel %vm1344, %v1341, %v890
      %v1375 = vsel %vm1344, %v1342, %v892
      %v1376 = vsel %vm1344, %v1343, %v894
      %vm1377 = vcmask 785408
      %v1378 = vsel %vm1377, %v1345, %v928
      %v1379 = vsel %vm1377, %v1346, %v930
      %v1380 = vsel %vm1377, %v1347, %v932
      %v1381 = vsel %vm1377, %v1348, %v934
      %v1382 = vsel %vm1377, %v1349, %v936
      %v1383 = vsel %vm1377, %v1350, %v938
      %v1384 = vsel %vm1377, %v1351, %v940
      %v1385 = vsel %vm1377, %v1352, %v942
      %v1386 = vsel %vm1377, %v1353, %v944
      %v1387 = vsel %vm1377, %v1354, %v946
      %v1388 = vsel %vm1377, %v1355, %v948
      %v1389 = vsel %vm1377, %v1356, %v950
      %v1390 = vsel %vm1377, %v1357, %v952
      %v1391 = vsel %vm1377, %v1358, %v954
      %v1392 = vsel %vm1377, %v1359, %v956
      %v1393 = vsel %vm1377, %v1360, %v958
      %v1394 = vsel %vm1377, %v1361, %v960
      %v1395 = vsel %vm1377, %v1362, %v962
      %v1396 = vsel %vm1377, %v1363, %v964
      %v1397 = vsel %vm1377, %v1364, %v966
      %v1398 = vsel %vm1377, %v1365, %v968
      %v1399 = vsel %vm1377, %v1366, %v970
      %v1400 = vsel %vm1377, %v1367, %v972
      %v1401 = vsel %vm1377, %v1368, %v974
      %v1402 = vsel %vm1377, %v1369, %v976
      %v1403 = vsel %vm1377, %v1370, %v978
      %v1404 = vsel %vm1377, %v1371, %v980
      %v1405 = vsel %vm1377, %v1372, %v982
      %v1406 = vsel %vm1377, %v1373, %v984
      %v1407 = vsel %vm1377, %v1374, %v986
      %v1408 = vsel %vm1377, %v1375, %v988
      %v1409 = vsel %vm1377, %v1376, %v990
      %v1410 = vsel %vm1311, %v505, %v1024
      %v1411 = vsel %vm1311, %v507, %v1026
      %v1412 = vsel %vm1311, %v510, %v1028
      %v1413 = vsel %vm1311, %v512, %v1030
      %v1414 = vsel %vm1311, %v515, %v1032
      %v1415 = vsel %vm1311, %v517, %v1034
      %v1416 = vsel %vm1311, %v520, %v1036
      %v1417 = vsel %vm1311, %v522, %v1038
      %v1418 = vsel %vm1311, %v525, %v1040
      %v1419 = vsel %vm1311, %v527, %v1042
      %v1420 = vsel %vm1311, %v530, %v1044
      %v1421 = vsel %vm1311, %v532, %v1046
      %v1422 = vsel %vm1311, %v535, %v1048
      %v1423 = vsel %vm1311, %v537, %v1050
      %v1424 = vsel %vm1311, %v540, %v1052
      %v1425 = vsel %vm1311, %v542, %v1054
      %v1426 = vsel %vm1311, %v545, %v1056
      %v1427 = vsel %vm1311, %v547, %v1058
      %v1428 = vsel %vm1311, %v550, %v1060
      %v1429 = vsel %vm1311, %v552, %v1062
      %v1430 = vsel %vm1311, %v555, %v1064
      %v1431 = vsel %vm1311, %v557, %v1066
      %v1432 = vsel %vm1311, %v560, %v1068
      %v1433 = vsel %vm1311, %v562, %v1070
      %v1434 = vsel %vm1311, %v565, %v1072
      %v1435 = vsel %vm1311, %v567, %v1074
      %v1436 = vsel %vm1311, %v570, %v1076
      %v1437 = vsel %vm1311, %v572, %v1078
      %v1438 = vsel %vm1311, %v575, %v1080
      %v1439 = vsel %vm1311, %v577, %v1082
      %v1440 = vsel %vm1311, %v663, %v1084
      %v1441 = vsel %vm1311, %v665, %v1086
      %v1442 = vsel %vm1344, %v1410, %v1120
      %v1443 = vsel %vm1344, %v1411, %v1122
      %v1444 = vsel %vm1344, %v1412, %v1124
      %v1445 = vsel %vm1344, %v1413, %v1126
      %v1446 = vsel %vm1344, %v1414, %v1128
      %v1447 = vsel %vm1344, %v1415, %v1130
      %v1448 = vsel %vm1344, %v1416, %v1132
      %v1449 = vsel %vm1344, %v1417, %v1134
      %v1450 = vsel %vm1344, %v1418, %v1136
      %v1451 = vsel %vm1344, %v1419, %v1138
      %v1452 = vsel %vm1344, %v1420, %v1140
      %v1453 = vsel %vm1344, %v1421, %v1142
      %v1454 = vsel %vm1344, %v1422, %v1144
      %v1455 = vsel %vm1344, %v1423, %v1146
      %v1456 = vsel %vm1344, %v1424, %v1148
      %v1457 = vsel %vm1344, %v1425, %v1150
      %v1458 = vsel %vm1344, %v1426, %v1152
      %v1459 = vsel %vm1344, %v1427, %v1154
      %v1460 = vsel %vm1344, %v1428, %v1156
      %v1461 = vsel %vm1344, %v1429, %v1158
      %v1462 = vsel %vm1344, %v1430, %v1160
      %v1463 = vsel %vm1344, %v1431, %v1162
      %v1464 = vsel %vm1344, %v1432, %v1164
      %v1465 = vsel %vm1344, %v1433, %v1166
      %v1466 = vsel %vm1344, %v1434, %v1168
      %v1467 = vsel %vm1344, %v1435, %v1170
      %v1468 = vsel %vm1344, %v1436, %v1172
      %v1469 = vsel %vm1344, %v1437, %v1174
      %v1470 = vsel %vm1344, %v1438, %v1176
      %v1471 = vsel %vm1344, %v1439, %v1178
      %v1472 = vsel %vm1344, %v1440, %v1180
      %v1473 = vsel %vm1344, %v1441, %v1182
      %v1474 = vsel %vm1377, %v1442, %v1216
      %v1475 = vsel %vm1377, %v1443, %v1218
      %v1476 = vsel %vm1377, %v1444, %v1220
      %v1477 = vsel %vm1377, %v1445, %v1222
      %v1478 = vsel %vm1377, %v1446, %v1224
      %v1479 = vsel %vm1377, %v1447, %v1226
      %v1480 = vsel %vm1377, %v1448, %v1228
      %v1481 = vsel %vm1377, %v1449, %v1230
      %v1482 = vsel %vm1377, %v1450, %v1232
      %v1483 = vsel %vm1377, %v1451, %v1234
      %v1484 = vsel %vm1377, %v1452, %v1236
      %v1485 = vsel %vm1377, %v1453, %v1238
      %v1486 = vsel %vm1377, %v1454, %v1240
      %v1487 = vsel %vm1377, %v1455, %v1242
      %v1488 = vsel %vm1377, %v1456, %v1244
      %v1489 = vsel %vm1377, %v1457, %v1246
      %v1490 = vsel %vm1377, %v1458, %v1248
      %v1491 = vsel %vm1377, %v1459, %v1250
      %v1492 = vsel %vm1377, %v1460, %v1252
      %v1493 = vsel %vm1377, %v1461, %v1254
      %v1494 = vsel %vm1377, %v1462, %v1256
      %v1495 = vsel %vm1377, %v1463, %v1258
      %v1496 = vsel %vm1377, %v1464, %v1260
      %v1497 = vsel %vm1377, %v1465, %v1262
      %v1498 = vsel %vm1377, %v1466, %v1264
      %v1499 = vsel %vm1377, %v1467, %v1266
      %v1500 = vsel %vm1377, %v1468, %v1268
      %v1501 = vsel %vm1377, %v1469, %v1270
      %v1502 = vsel %vm1377, %v1470, %v1272
      %v1503 = vsel %vm1377, %v1471, %v1274
      %v1504 = vsel %vm1377, %v1472, %v1276
      %v1505 = vsel %vm1377, %v1473, %v1278
      %v1506 = vpack.c.bf16 %v1379, %v1378
      %v1507 = vpack.c.bf16 %v1475, %v1474
      %v1508 = vpack.c.bf16 %v593, %v591
      %v1509 = vpack.c.bf16 %v1381, %v1380
      %v1510 = vpack.c.bf16 %v1477, %v1476
      %v1511 = vpack.c.bf16 %v598, %v596
      %v1512 = vpack.c.bf16 %v1383, %v1382
      %v1513 = vpack.c.bf16 %v1479, %v1478
      %v1514 = vpack.c.bf16 %v603, %v601
      %v1515 = vpack.c.bf16 %v1385, %v1384
      %v1516 = vpack.c.bf16 %v1481, %v1480
      %v1517 = vpack.c.bf16 %v608, %v606
      %v1518 = vpack.c.bf16 %v1387, %v1386
      %v1519 = vpack.c.bf16 %v1483, %v1482
      %v1520 = vpack.c.bf16 %v613, %v611
      %v1521 = vpack.c.bf16 %v1389, %v1388
      %v1522 = vpack.c.bf16 %v1485, %v1484
      %v1523 = vpack.c.bf16 %v618, %v616
      %v1524 = vpack.c.bf16 %v1391, %v1390
      %v1525 = vpack.c.bf16 %v1487, %v1486
      %v1526 = vpack.c.bf16 %v623, %v621
      %v1527 = vpack.c.bf16 %v1393, %v1392
      %v1528 = vpack.c.bf16 %v1489, %v1488
      %v1529 = vpack.c.bf16 %v628, %v626
      %v1530 = vpack.c.bf16 %v1395, %v1394
      %v1531 = vpack.c.bf16 %v1491, %v1490
      %v1532 = vpack.c.bf16 %v633, %v631
      %v1533 = vpack.c.bf16 %v1397, %v1396
      %v1534 = vpack.c.bf16 %v1493, %v1492
      %v1535 = vpack.c.bf16 %v638, %v636
      %v1536 = vpack.c.bf16 %v1399, %v1398
      %v1537 = vpack.c.bf16 %v1495, %v1494
      %v1538 = vpack.c.bf16 %v643, %v641
      %v1539 = vpack.c.bf16 %v1401, %v1400
      %v1540 = vpack.c.bf16 %v1497, %v1496
      %v1541 = vpack.c.bf16 %v648, %v646
      %v1542 = vpack.c.bf16 %v1403, %v1402
      %v1543 = vpack.c.bf16 %v1499, %v1498
      %v1544 = vpack.c.bf16 %v653, %v651
      %v1545 = vpack.c.bf16 %v1405, %v1404
      %v1546 = vpack.c.bf16 %v1501, %v1500
      %v1547 = vpack.c.bf16 %v658, %v656
      %v1548 = vpack.c.bf16 %v1407, %v1406
      %v1549 = vpack.c.bf16 %v1503, %v1502
      %v1550 = vpack.c.bf16 %v702, %v700
      %v1551 = vpack.c.bf16 %v1409, %v1408
      %v1552 = vpack.c.bf16 %v1505, %v1504
      %v1553 = vpack.c.bf16 %v583, %v581
      %v1554 = vld [vmem:[%s1] sm:$0xf]
      %v1555 = vld [vmem:[%s1 + $0x4] sm:$0xf]
      %v1556 = vld [vmem:[%s1 + $0x8] sm:$0xf]
      %v1557 = vld [vmem:[%s1 + $0xc] sm:$0xf]
      %v1558 = vld [vmem:[%s1 + $0x10] sm:$0xf]
      %v1559 = vld [vmem:[%s1 + $0x14] sm:$0xf]
      %v1560 = vld [vmem:[%s1 + $0x18] sm:$0xf]
      %v1561 = vld [vmem:[%s1 + $0x1c] sm:$0xf]
      %v1562 = vld [vmem:[%s1 + $0x20] sm:$0xf]
      %v1563 = vld [vmem:[%s1 + $0x24] sm:$0xf]
      %v1564 = vld [vmem:[%s1 + $0x28] sm:$0xf]
      %v1565 = vld [vmem:[%s1 + $0x2c] sm:$0xf]
      %v1566 = vld [vmem:[%s1 + $0x30] sm:$0xf]
      %v1567 = vld [vmem:[%s1 + $0x34] sm:$0xf]
      %v1568 = vld [vmem:[%s1 + $0x38] sm:$0xf]
      %v1569 = vld [vmem:[%s1 + $0x3c] sm:$0xf]
      %v1570 = vld [vmem:[%s1 + $0x40] sm:$0xf]
      %v1571 = vld [vmem:[%s1 + $0x44] sm:$0xf]
      %v1572 = vld [vmem:[%s1 + $0x48] sm:$0xf]
      %v1573 = vld [vmem:[%s1 + $0x4c] sm:$0xf]
      %v1574 = vld [vmem:[%s1 + $0x50] sm:$0xf]
      %v1575 = vld [vmem:[%s1 + $0x54] sm:$0xf]
      %v1576 = vld [vmem:[%s1 + $0x58] sm:$0xf]
      %v1577 = vld [vmem:[%s1 + $0x5c] sm:$0xf]
      %v1578 = vld [vmem:[%s1 + $0x60] sm:$0xf]
      %v1579 = vld [vmem:[%s1 + $0x64] sm:$0xf]
      %v1580 = vld [vmem:[%s1 + $0x68] sm:$0xf]
      %v1581 = vld [vmem:[%s1 + $0x6c] sm:$0xf]
      %v1582 = vld [vmem:[%s1 + $0x70] sm:$0xf]
      %v1583 = vld [vmem:[%s1 + $0x74] sm:$0xf]
      %v1584 = vld [vmem:[%s1 + $0x78] sm:$0xf]
      %v1585 = vld [vmem:[%s1 + $0x7c] sm:$0xf]
      %v1586 = vld [vmem:[%s1 + $0x80] sm:$0xf]
      %v1587 = vld [vmem:[%s1 + $0x84] sm:$0xf]
      %v1588 = vld [vmem:[%s1 + $0x88] sm:$0xf]
      %v1589 = vld [vmem:[%s1 + $0x8c] sm:$0xf]
      %v1590 = vld [vmem:[%s2] sm:$0x1]
      %v1592 = vlaneseq
      %v1593 = vshrl.u32 %v1592, 7
      %v1594 = vsub.s32 0, %v1593
      %v1595 = vrot.slane %v1590, %v1594
      %v1633 = vunpack.c.l.b16 %v1554
      %v1634 = vunpack.c.l.b16 %v1555
      %v1635 = vunpack.c.l.b16 %v1556
      %v1636 = vunpack.c.l.b16 %v1557
      %v1637 = vunpack.c.l.b16 %v1558
      %v1638 = vunpack.c.l.b16 %v1559
      %v1639 = vunpack.c.l.b16 %v1560
      %v1640 = vunpack.c.l.b16 %v1561
      %v1641 = vunpack.c.l.b16 %v1562
      %v1642 = vunpack.c.l.b16 %v1563
      %v1643 = vunpack.c.l.b16 %v1564
      %v1644 = vunpack.c.l.b16 %v1565
      %v1645 = vunpack.c.l.b16 %v1566
      %v1646 = vunpack.c.l.b16 %v1567
      %v1647 = vunpack.c.l.b16 %v1568
      %v1648 = vunpack.c.l.b16 %v1569
      %v1649 = vunpack.c.l.b16 %v1570
      %v1650 = vunpack.c.l.b16 %v1571
      %v1651 = vunpack.c.l.b16 %v1572
      %v1652 = vunpack.c.l.b16 %v1573
      %v1653 = vunpack.c.l.b16 %v1574
      %v1654 = vunpack.c.l.b16 %v1575
      %v1655 = vunpack.c.l.b16 %v1576
      %v1656 = vunpack.c.l.b16 %v1577
      %v1657 = vunpack.c.l.b16 %v1578
      %v1658 = vunpack.c.l.b16 %v1579
      %v1659 = vunpack.c.l.b16 %v1580
      %v1660 = vunpack.c.l.b16 %v1581
      %v1661 = vunpack.c.l.b16 %v1582
      %v1662 = vunpack.c.l.b16 %v1583
      %v1663 = vunpack.c.l.b16 %v1584
      %v1664 = vunpack.c.l.b16 %v1585
      %v1665 = vunpack.c.l.b16 %v1586
      %v1666 = vunpack.c.l.b16 %v1587
      %v1667 = vunpack.c.l.b16 %v1588
      %v1668 = vunpack.c.l.b16 %v1589
      %v1669 = vpack.c.b16 %v1634, %v1633
      %v1670 = vpack.c.b16 %v1636, %v1635
      %v1671 = vpack.c.b16 %v1638, %v1637
      %v1672 = vpack.c.b16 %v1640, %v1639
      %v1673 = vpack.c.b16 %v1642, %v1641
      %v1674 = vpack.c.b16 %v1644, %v1643
      %v1675 = vpack.c.b16 %v1646, %v1645
      %v1676 = vpack.c.b16 %v1648, %v1647
      %v1677 = vpack.c.b16 %v1650, %v1649
      %v1678 = vpack.c.b16 %v1652, %v1651
      %v1679 = vpack.c.b16 %v1654, %v1653
      %v1680 = vpack.c.b16 %v1656, %v1655
      %v1681 = vpack.c.b16 %v1658, %v1657
      %v1682 = vpack.c.b16 %v1660, %v1659
      %v1683 = vpack.c.b16 %v1662, %v1661
      %v1684 = vpack.c.b16 %v1664, %v1663
      %v1685 = vpack.c.b16 %v1666, %v1665
      %v1686 = vpack.c.b16 %v1668, %v1667
      %v1706 = vsel %vm1311, %v1508, 0
      %v1709 = vsel %vm1311, %v1511, 0
      %v1712 = vsel %vm1311, %v1514, 0
      %v1715 = vsel %vm1311, %v1517, 0
      %v1718 = vsel %vm1311, %v1520, 0
      %v1721 = vsel %vm1311, %v1523, 0
      %v1724 = vsel %vm1311, %v1526, 0
      %v1727 = vsel %vm1311, %v1529, 0
      %v1730 = vsel %vm1311, %v1532, 0
      %v1733 = vsel %vm1311, %v1535, 0
      %v1736 = vsel %vm1311, %v1538, 0
      %v1739 = vsel %vm1311, %v1541, 0
      %v1742 = vsel %vm1311, %v1544, 0
      %v1745 = vsel %vm1311, %v1547, 0
      %v1748 = vsel %vm1311, %v1550, 0
      %v1751 = vsel %vm1311, %v1553, 0
      %1753 = vmatprep.subr.bf16.mxu0 0
      %1754 = vmatpush1.bf16.msra.mxu0 %v1669
      %1755 = vmatprep.subr.bf16.mxu0 0
      %1756 = vmatpush1.bf16.msra.mxu0 %v1670
      %1757 = vmatprep.subr.bf16.mxu0 0
      %1758 = vmatpush1.bf16.msra.mxu0 %v1671
      %1759 = vmatprep.subr.bf16.mxu0 0
      %1760 = vmatpush1.bf16.msra.mxu0 %v1672
      %1761 = vmatprep.subr.bf16.mxu0 0
      %1762 = vmatpush1.bf16.msra.mxu0 %v1673
      %1763 = vmatprep.subr.bf16.mxu0 0
      %1764 = vmatpush1.bf16.msra.mxu0 %v1674
      %1765 = vmatprep.subr.bf16.mxu0 0
      %1766 = vmatpush1.bf16.msra.mxu0 %v1675
      %1767 = vmatprep.subr.bf16.mxu0 0
      %1768 = vmatpush1.bf16.msra.mxu0 %v1676
      %1769 = vmatprep.subr.bf16.mxu0 0
      %1770 = vmatpush1.bf16.msra.mxu0 %v1677
      %1771 = vmatprep.subr.bf16.mxu0 0
      %1772 = vmatpush1.bf16.msra.mxu0 %v1678
      %1773 = vmatprep.subr.bf16.mxu0 0
      %1774 = vmatpush1.bf16.msra.mxu0 %v1679
      %1775 = vmatprep.subr.bf16.mxu0 0
      %1776 = vmatpush1.bf16.msra.mxu0 %v1680
      %1777 = vmatprep.subr.bf16.mxu0 0
      %1778 = vmatpush1.bf16.msra.mxu0 %v1681
      %1779 = vmatprep.subr.bf16.mxu0 0
      %1780 = vmatpush1.bf16.msra.mxu0 %v1682
      %1781 = vmatprep.subr.bf16.mxu0 0
      %1782 = vmatpush1.bf16.msra.mxu0 %v1683
      %1783 = vmatprep.subr.bf16.mxu0 0
      %1784 = vmatpush1.bf16.msra.mxu0 %v1684
      %1785 = vmatprep.mubr.bf16.mxu0 %v1507
      %1786 = vmatmul.mubr.bf16.gmra.mrb[0].mxu0 %v1506
      %v1787 = vpop.f32.mrb[0].mxu0
      %v1788 = vadd.f32 %v1595, %v1787
      %v1789 = vpop.f32.mrb[0].mxu0
      %v1790 = vpop.f32.mrb[0].mxu0
      %v1791 = vadd.f32 %v1595, %v1790
      %v1792 = vpop.f32.mrb[0].mxu0
      %1793 = vmatprep.mubr.bf16.mxu0 %v1510
      %1794 = vmatmul.mubr.bf16.gmra.mrb[0].mxu0 %v1509
      %v1795 = vpop.f32.mrb[0].mxu0
      %v1796 = vadd.f32 %v1595, %v1795
      %v1797 = vpop.f32.mrb[0].mxu0
      %v1798 = vpop.f32.mrb[0].mxu0
      %v1799 = vadd.f32 %v1595, %v1798
      %v1800 = vpop.f32.mrb[0].mxu0
      %1801 = vmatprep.mubr.bf16.mxu0 %v1513
      %1802 = vmatmul.mubr.bf16.gmra.mrb[0].mxu0 %v1512
      %v1803 = vpop.f32.mrb[0].mxu0
      %v1804 = vadd.f32 %v1595, %v1803
      %v1805 = vpop.f32.mrb[0].mxu0
      %v1806 = vpop.f32.mrb[0].mxu0
      %v1807 = vadd.f32 %v1595, %v1806
      %v1808 = vpop.f32.mrb[0].mxu0
      %1809 = vmatprep.mubr.bf16.mxu0 %v1516
      %1810 = vmatmul.mubr.bf16.gmra.mrb[0].mxu0 %v1515
      %v1811 = vpop.f32.mrb[0].mxu0
      %v1812 = vadd.f32 %v1595, %v1811
      %v1813 = vpop.f32.mrb[0].mxu0
      %v1814 = vpop.f32.mrb[0].mxu0
      %v1815 = vadd.f32 %v1595, %v1814
      %v1816 = vpop.f32.mrb[0].mxu0
      %1817 = vmatprep.mubr.bf16.mxu0 %v1519
      %1818 = vmatmul.mubr.bf16.gmra.mrb[0].mxu0 %v1518
      %v1819 = vpop.f32.mrb[0].mxu0
      %v1820 = vadd.f32 %v1595, %v1819
      %v1821 = vpop.f32.mrb[0].mxu0
      %v1822 = vpop.f32.mrb[0].mxu0
      %v1823 = vadd.f32 %v1595, %v1822
      %v1824 = vpop.f32.mrb[0].mxu0
      %1825 = vmatprep.mubr.bf16.mxu0 %v1522
      %1826 = vmatmul.mubr.bf16.gmra.mrb[0].mxu0 %v1521
      %v1827 = vpop.f32.mrb[0].mxu0
      %v1828 = vadd.f32 %v1595, %v1827
      %v1829 = vpop.f32.mrb[0].mxu0
      %v1830 = vpop.f32.mrb[0].mxu0
      %v1831 = vadd.f32 %v1595, %v1830
      %v1832 = vpop.f32.mrb[0].mxu0
      %1833 = vmatprep.mubr.bf16.mxu0 %v1525
      %1834 = vmatmul.mubr.bf16.gmra.mrb[0].mxu0 %v1524
      %v1835 = vpop.f32.mrb[0].mxu0
      %v1836 = vadd.f32 %v1595, %v1835
      %v1837 = vpop.f32.mrb[0].mxu0
      %v1838 = vpop.f32.mrb[0].mxu0
      %v1839 = vadd.f32 %v1595, %v1838
      %v1840 = vpop.f32.mrb[0].mxu0
      %1841 = vmatprep.mubr.bf16.mxu0 %v1528
      %1842 = vmatmul.mubr.bf16.gmra.mrb[0].mxu0 %v1527
      %v1843 = vpop.f32.mrb[0].mxu0
      %v1844 = vadd.f32 %v1595, %v1843
      %v1845 = vpop.f32.mrb[0].mxu0
      %v1846 = vpop.f32.mrb[0].mxu0
      %v1847 = vadd.f32 %v1595, %v1846
      %v1848 = vpop.f32.mrb[0].mxu0
      %1849 = vmatprep.mubr.bf16.mxu0 %v1531
      %1850 = vmatmul.mubr.bf16.gmra.mrb[0].mxu0 %v1530
      %v1851 = vpop.f32.mrb[0].mxu0
      %v1852 = vadd.f32 %v1595, %v1851
      %v1853 = vpop.f32.mrb[0].mxu0
      %v1854 = vpop.f32.mrb[0].mxu0
      %v1855 = vadd.f32 %v1595, %v1854
      %v1856 = vpop.f32.mrb[0].mxu0
      %1857 = vmatprep.mubr.bf16.mxu0 %v1534
      %1858 = vmatmul.mubr.bf16.gmra.mrb[0].mxu0 %v1533
      %v1859 = vpop.f32.mrb[0].mxu0
      %v1860 = vadd.f32 %v1595, %v1859
      %v1861 = vpop.f32.mrb[0].mxu0
      %v1862 = vpop.f32.mrb[0].mxu0
      %v1863 = vadd.f32 %v1595, %v1862
      %v1864 = vpop.f32.mrb[0].mxu0
      %1865 = vmatprep.mubr.bf16.mxu0 %v1537
      %1866 = vmatmul.mubr.bf16.gmra.mrb[0].mxu0 %v1536
      %v1867 = vpop.f32.mrb[0].mxu0
      %v1868 = vadd.f32 %v1595, %v1867
      %v1869 = vpop.f32.mrb[0].mxu0
      %v1870 = vpop.f32.mrb[0].mxu0
      %v1871 = vadd.f32 %v1595, %v1870
      %v1872 = vpop.f32.mrb[0].mxu0
      %1873 = vmatprep.mubr.bf16.mxu0 %v1540
      %1874 = vmatmul.mubr.bf16.gmra.mrb[0].mxu0 %v1539
      %v1875 = vpop.f32.mrb[0].mxu0
      %v1876 = vadd.f32 %v1595, %v1875
      %v1877 = vpop.f32.mrb[0].mxu0
      %v1878 = vpop.f32.mrb[0].mxu0
      %v1879 = vadd.f32 %v1595, %v1878
      %v1880 = vpop.f32.mrb[0].mxu0
      %1881 = vmatprep.mubr.bf16.mxu0 %v1543
      %1882 = vmatmul.mubr.bf16.gmra.mrb[0].mxu0 %v1542
      %v1883 = vpop.f32.mrb[0].mxu0
      %v1884 = vadd.f32 %v1595, %v1883
      %v1885 = vpop.f32.mrb[0].mxu0
      %v1886 = vpop.f32.mrb[0].mxu0
      %v1887 = vadd.f32 %v1595, %v1886
      %v1888 = vpop.f32.mrb[0].mxu0
      %1889 = vmatprep.mubr.bf16.mxu0 %v1546
      %1890 = vmatmul.mubr.bf16.gmra.mrb[0].mxu0 %v1545
      %v1891 = vpop.f32.mrb[0].mxu0
      %v1892 = vadd.f32 %v1595, %v1891
      %v1893 = vpop.f32.mrb[0].mxu0
      %v1894 = vpop.f32.mrb[0].mxu0
      %v1895 = vadd.f32 %v1595, %v1894
      %v1896 = vpop.f32.mrb[0].mxu0
      %1897 = vmatprep.mubr.bf16.mxu0 %v1549
      %1898 = vmatmul.mubr.bf16.gmra.mrb[0].mxu0 %v1548
      %v1899 = vpop.f32.mrb[0].mxu0
      %v1900 = vadd.f32 %v1595, %v1899
      %v1901 = vpop.f32.mrb[0].mxu0
      %v1902 = vpop.f32.mrb[0].mxu0
      %v1903 = vadd.f32 %v1595, %v1902
      %v1904 = vpop.f32.mrb[0].mxu0
      %1905 = vmatprep.mubr.bf16.mxu0 %v1552
      %1906 = vmatmul.mubr.bf16.gmra.mrb[0].mxu0 %v1551
      %v1907 = vpop.f32.mrb[0].mxu0
      %v1908 = vadd.f32 %v1595, %v1907
      %v1909 = vpop.f32.mrb[0].mxu0
      %v1910 = vpop.f32.mrb[0].mxu0
      %v1911 = vadd.f32 %v1595, %v1910
      %v1912 = vpop.f32.mrb[0].mxu0
      %1913 = vdwg.mxu0
      %1914 = vmatprep.subr.bf16.mxu0 0
      %1915 = vmatpush1.bf16.msra.mxu0 %v1685
      %1916 = vmatprep.subr.bf16.mxu0 0
      %1917 = vmatpush1.bf16.msra.mxu0 %v1686
      %1918 = vmatprep.subr.bf16.mxu0 0
      %1919 = vmatpush1.bf16.msra.mxu0 0
      %1920 = vmatprep.subr.bf16.mxu0 0
      %1921 = vmatpush1.bf16.msra.mxu0 0
      %1922 = vmatprep.subr.bf16.mxu0 0
      %1923 = vmatpush1.bf16.msra.mxu0 0
      %1924 = vmatprep.subr.bf16.mxu0 0
      %1925 = vmatpush1.bf16.msra.mxu0 0
      %1926 = vmatprep.subr.bf16.mxu0 0
      %1927 = vmatpush1.bf16.msra.mxu0 0
      %1928 = vmatprep.subr.bf16.mxu0 0
      %1929 = vmatpush1.bf16.msra.mxu0 0
      %1930 = vmatprep.subr.bf16.mxu0 0
      %1931 = vmatpush1.bf16.msra.mxu0 0
      %1932 = vmatprep.subr.bf16.mxu0 0
      %1933 = vmatpush1.bf16.msra.mxu0 0
      %1934 = vmatprep.subr.bf16.mxu0 0
      %1935 = vmatpush1.bf16.msra.mxu0 0
      %1936 = vmatprep.subr.bf16.mxu0 0
      %1937 = vmatpush1.bf16.msra.mxu0 0
      %1938 = vmatprep.subr.bf16.mxu0 0
      %1939 = vmatpush1.bf16.msra.mxu0 0
      %1940 = vmatprep.subr.bf16.mxu0 0
      %1941 = vmatpush1.bf16.msra.mxu0 0
      %1942 = vmatprep.subr.bf16.mxu0 0
      %1943 = vmatpush1.bf16.msra.mxu0 0
      %1944 = vmatprep.subr.bf16.mxu0 0
      %1945 = vmatpush1.bf16.msra.mxu0 0
      %1946 = vmatprep.mubr.bf16.mxu0 0
      %1947 = vmatmul.mubr.bf16.gmra.mrb[0].mxu0 %v1706
      %v1948 = vpop.f32.mrb[0].mxu0
      %v1949 = vadd.f32 %v1788, %v1948
      %v1950 = vpop.f32.mrb[0].mxu0
      %v1951 = vpop.f32.mrb[0].mxu0
      %v1952 = vadd.f32 %v1791, %v1951
      %v1953 = vpop.f32.mrb[0].mxu0
      %1954 = vmatprep.mubr.bf16.mxu0 0
      %1955 = vmatmul.mubr.bf16.gmra.mrb[0].mxu0 %v1709
      %v1956 = vpop.f32.mrb[0].mxu0
      %v1957 = vadd.f32 %v1796, %v1956
      %v1958 = vpop.f32.mrb[0].mxu0
      %v1959 = vpop.f32.mrb[0].mxu0
      %v1960 = vadd.f32 %v1799, %v1959
      %v1961 = vpop.f32.mrb[0].mxu0
      %1962 = vmatprep.mubr.bf16.mxu0 0
      %1963 = vmatmul.mubr.bf16.gmra.mrb[0].mxu0 %v1712
      %v1964 = vpop.f32.mrb[0].mxu0
      %v1965 = vadd.f32 %v1804, %v1964
      %v1966 = vpop.f32.mrb[0].mxu0
      %v1967 = vpop.f32.mrb[0].mxu0
      %v1968 = vadd.f32 %v1807, %v1967
      %v1969 = vpop.f32.mrb[0].mxu0
      %1970 = vmatprep.mubr.bf16.mxu0 0
      %1971 = vmatmul.mubr.bf16.gmra.mrb[0].mxu0 %v1715
      %v1972 = vpop.f32.mrb[0].mxu0
      %v1973 = vadd.f32 %v1812, %v1972
      %v1974 = vpop.f32.mrb[0].mxu0
      %v1975 = vpop.f32.mrb[0].mxu0
      %v1976 = vadd.f32 %v1815, %v1975
      %v1977 = vpop.f32.mrb[0].mxu0
      %1978 = vmatprep.mubr.bf16.mxu0 0
      %1979 = vmatmul.mubr.bf16.gmra.mrb[0].mxu0 %v1718
      %v1980 = vpop.f32.mrb[0].mxu0
      %v1981 = vadd.f32 %v1820, %v1980
      %v1982 = vpop.f32.mrb[0].mxu0
      %v1983 = vpop.f32.mrb[0].mxu0
      %v1984 = vadd.f32 %v1823, %v1983
      %v1985 = vpop.f32.mrb[0].mxu0
      %1986 = vmatprep.mubr.bf16.mxu0 0
      %1987 = vmatmul.mubr.bf16.gmra.mrb[0].mxu0 %v1721
      %v1988 = vpop.f32.mrb[0].mxu0
      %v1989 = vadd.f32 %v1828, %v1988
      %v1990 = vpop.f32.mrb[0].mxu0
      %v1991 = vpop.f32.mrb[0].mxu0
      %v1992 = vadd.f32 %v1831, %v1991
      %v1993 = vpop.f32.mrb[0].mxu0
      %1994 = vmatprep.mubr.bf16.mxu0 0
      %1995 = vmatmul.mubr.bf16.gmra.mrb[0].mxu0 %v1724
      %v1996 = vpop.f32.mrb[0].mxu0
      %v1997 = vadd.f32 %v1836, %v1996
      %v1998 = vpop.f32.mrb[0].mxu0
      %v1999 = vpop.f32.mrb[0].mxu0
      %v2000 = vadd.f32 %v1839, %v1999
      %v2001 = vpop.f32.mrb[0].mxu0
      %2002 = vmatprep.mubr.bf16.mxu0 0
      %2003 = vmatmul.mubr.bf16.gmra.mrb[0].mxu0 %v1727
      %v2004 = vpop.f32.mrb[0].mxu0
      %v2005 = vadd.f32 %v1844, %v2004
      %v2006 = vpop.f32.mrb[0].mxu0
      %v2007 = vpop.f32.mrb[0].mxu0
      %v2008 = vadd.f32 %v1847, %v2007
      %v2009 = vpop.f32.mrb[0].mxu0
      %2010 = vmatprep.mubr.bf16.mxu0 0
      %2011 = vmatmul.mubr.bf16.gmra.mrb[0].mxu0 %v1730
      %v2012 = vpop.f32.mrb[0].mxu0
      %v2013 = vadd.f32 %v1852, %v2012
      %v2014 = vpop.f32.mrb[0].mxu0
      %v2015 = vpop.f32.mrb[0].mxu0
      %v2016 = vadd.f32 %v1855, %v2015
      %v2017 = vpop.f32.mrb[0].mxu0
      %2018 = vmatprep.mubr.bf16.mxu0 0
      %2019 = vmatmul.mubr.bf16.gmra.mrb[0].mxu0 %v1733
      %v2020 = vpop.f32.mrb[0].mxu0
      %v2021 = vadd.f32 %v1860, %v2020
      %v2022 = vpop.f32.mrb[0].mxu0
      %v2023 = vpop.f32.mrb[0].mxu0
      %v2024 = vadd.f32 %v1863, %v2023
      %v2025 = vpop.f32.mrb[0].mxu0
      %2026 = vmatprep.mubr.bf16.mxu0 0
      %2027 = vmatmul.mubr.bf16.gmra.mrb[0].mxu0 %v1736
      %v2028 = vpop.f32.mrb[0].mxu0
      %v2029 = vadd.f32 %v1868, %v2028
      %v2030 = vpop.f32.mrb[0].mxu0
      %v2031 = vpop.f32.mrb[0].mxu0
      %v2032 = vadd.f32 %v1871, %v2031
      %v2033 = vpop.f32.mrb[0].mxu0
      %2034 = vmatprep.mubr.bf16.mxu0 0
      %2035 = vmatmul.mubr.bf16.gmra.mrb[0].mxu0 %v1739
      %v2036 = vpop.f32.mrb[0].mxu0
      %v2037 = vadd.f32 %v1876, %v2036
      %v2038 = vpop.f32.mrb[0].mxu0
      %v2039 = vpop.f32.mrb[0].mxu0
      %v2040 = vadd.f32 %v1879, %v2039
      %v2041 = vpop.f32.mrb[0].mxu0
      %2042 = vmatprep.mubr.bf16.mxu0 0
      %2043 = vmatmul.mubr.bf16.gmra.mrb[0].mxu0 %v1742
      %v2044 = vpop.f32.mrb[0].mxu0
      %v2045 = vadd.f32 %v1884, %v2044
      %v2046 = vpop.f32.mrb[0].mxu0
      %v2047 = vpop.f32.mrb[0].mxu0
      %v2048 = vadd.f32 %v1887, %v2047
      %v2049 = vpop.f32.mrb[0].mxu0
      %2050 = vmatprep.mubr.bf16.mxu0 0
      %2051 = vmatmul.mubr.bf16.gmra.mrb[0].mxu0 %v1745
      %v2052 = vpop.f32.mrb[0].mxu0
      %v2053 = vadd.f32 %v1892, %v2052
      %v2054 = vpop.f32.mrb[0].mxu0
      %v2055 = vpop.f32.mrb[0].mxu0
      %v2056 = vadd.f32 %v1895, %v2055
      %v2057 = vpop.f32.mrb[0].mxu0
      %2058 = vmatprep.mubr.bf16.mxu0 0
      %2059 = vmatmul.mubr.bf16.gmra.mrb[0].mxu0 %v1748
      %v2060 = vpop.f32.mrb[0].mxu0
      %v2061 = vadd.f32 %v1900, %v2060
      %v2062 = vpop.f32.mrb[0].mxu0
      %v2063 = vpop.f32.mrb[0].mxu0
      %v2064 = vadd.f32 %v1903, %v2063
      %v2065 = vpop.f32.mrb[0].mxu0
      %2066 = vmatprep.mubr.bf16.mxu0 0
      %2067 = vmatmul.mubr.bf16.gmra.mrb[0].mxu0 %v1751
      %v2068 = vpop.f32.mrb[0].mxu0
      %v2069 = vadd.f32 %v1908, %v2068
      %v2070 = vpop.f32.mrb[0].mxu0
      %v2071 = vpop.f32.mrb[0].mxu0
      %v2072 = vadd.f32 %v1911, %v2071
      %v2073 = vpop.f32.mrb[0].mxu0
      %2074 = vdwg.mxu0
      %v2075 = vmul.f32 %v1949, 0.5
      %v2076 = vmul.f32 %v1952, 0.5
      %v2077 = vmul.f32 %v1957, 0.5
      %v2078 = vmul.f32 %v1960, 0.5
      %v2079 = vmul.f32 %v1965, 0.5
      %v2080 = vmul.f32 %v1968, 0.5
      %v2081 = vmul.f32 %v1973, 0.5
      %v2082 = vmul.f32 %v1976, 0.5
      %v2083 = vmul.f32 %v1981, 0.5
      %v2084 = vmul.f32 %v1984, 0.5
      %v2085 = vmul.f32 %v1989, 0.5
      %v2086 = vmul.f32 %v1992, 0.5
      %v2087 = vmul.f32 %v1997, 0.5
      %v2088 = vmul.f32 %v2000, 0.5
      %v2089 = vmul.f32 %v2005, 0.5
      %v2090 = vmul.f32 %v2008, 0.5
      %v2091 = vmul.f32 %v2013, 0.5
      %v2092 = vmul.f32 %v2016, 0.5
      %v2093 = vmul.f32 %v2021, 0.5
      %v2094 = vmul.f32 %v2024, 0.5
      %v2095 = vmul.f32 %v2029, 0.5
      %v2096 = vmul.f32 %v2032, 0.5
      %v2097 = vmul.f32 %v2037, 0.5
      %v2098 = vmul.f32 %v2040, 0.5
      %v2099 = vmul.f32 %v2045, 0.5
      %v2100 = vmul.f32 %v2048, 0.5
      %v2101 = vmul.f32 %v2053, 0.5
      %v2102 = vmul.f32 %v2056, 0.5
      %v2103 = vmul.f32 %v2061, 0.5
      %v2104 = vmul.f32 %v2064, 0.5
      %v2105 = vmul.f32 %v2069, 0.5
      %v2106 = vmul.f32 %v2072, 0.5
      %v2107 = vmul.f32 %v1949, 0.044715
      %v2108 = vmul.f32 %v1952, 0.044715
      %v2109 = vmul.f32 %v1957, 0.044715
      %v2110 = vmul.f32 %v1960, 0.044715
      %v2111 = vmul.f32 %v1965, 0.044715
      %v2112 = vmul.f32 %v1968, 0.044715
      %v2113 = vmul.f32 %v1973, 0.044715
      %v2114 = vmul.f32 %v1976, 0.044715
      %v2115 = vmul.f32 %v1981, 0.044715
      %v2116 = vmul.f32 %v1984, 0.044715
      %v2117 = vmul.f32 %v1989, 0.044715
      %v2118 = vmul.f32 %v1992, 0.044715
      %v2119 = vmul.f32 %v1997, 0.044715
      %v2120 = vmul.f32 %v2000, 0.044715
      %v2121 = vmul.f32 %v2005, 0.044715
      %v2122 = vmul.f32 %v2008, 0.044715
      %v2123 = vmul.f32 %v2013, 0.044715
      %v2124 = vmul.f32 %v2016, 0.044715
      %v2125 = vmul.f32 %v2021, 0.044715
      %v2126 = vmul.f32 %v2024, 0.044715
      %v2127 = vmul.f32 %v2029, 0.044715
      %v2128 = vmul.f32 %v2032, 0.044715
      %v2129 = vmul.f32 %v2037, 0.044715
      %v2130 = vmul.f32 %v2040, 0.044715
      %v2131 = vmul.f32 %v2045, 0.044715
      %v2132 = vmul.f32 %v2048, 0.044715
      %v2133 = vmul.f32 %v2053, 0.044715
      %v2134 = vmul.f32 %v2056, 0.044715
      %v2135 = vmul.f32 %v2061, 0.044715
      %v2136 = vmul.f32 %v2064, 0.044715
      %v2137 = vmul.f32 %v2069, 0.044715
      %v2138 = vmul.f32 %v2072, 0.044715
      %v2139 = vmul.f32 %v2107, %v1949
      %v2140 = vmul.f32 %v2108, %v1952
      %v2141 = vmul.f32 %v2109, %v1957
      %v2142 = vmul.f32 %v2110, %v1960
      %v2143 = vmul.f32 %v2111, %v1965
      %v2144 = vmul.f32 %v2112, %v1968
      %v2145 = vmul.f32 %v2113, %v1973
      %v2146 = vmul.f32 %v2114, %v1976
      %v2147 = vmul.f32 %v2115, %v1981
      %v2148 = vmul.f32 %v2116, %v1984
      %v2149 = vmul.f32 %v2117, %v1989
      %v2150 = vmul.f32 %v2118, %v1992
      %v2151 = vmul.f32 %v2119, %v1997
      %v2152 = vmul.f32 %v2120, %v2000
      %v2153 = vmul.f32 %v2121, %v2005
      %v2154 = vmul.f32 %v2122, %v2008
      %v2155 = vmul.f32 %v2123, %v2013
      %v2156 = vmul.f32 %v2124, %v2016
      %v2157 = vmul.f32 %v2125, %v2021
      %v2158 = vmul.f32 %v2126, %v2024
      %v2159 = vmul.f32 %v2127, %v2029
      %v2160 = vmul.f32 %v2128, %v2032
      %v2161 = vmul.f32 %v2129, %v2037
      %v2162 = vmul.f32 %v2130, %v2040
      %v2163 = vmul.f32 %v2131, %v2045
      %v2164 = vmul.f32 %v2132, %v2048
      %v2165 = vmul.f32 %v2133, %v2053
      %v2166 = vmul.f32 %v2134, %v2056
      %v2167 = vmul.f32 %v2135, %v2061
      %v2168 = vmul.f32 %v2136, %v2064
      %v2169 = vmul.f32 %v2137, %v2069
      %v2170 = vmul.f32 %v2138, %v2072
      %v2171 = vmul.f32 %v2139, %v1949
      %v2172 = vmul.f32 %v2140, %v1952
      %v2173 = vmul.f32 %v2141, %v1957
      %v2174 = vmul.f32 %v2142, %v1960
      %v2175 = vmul.f32 %v2143, %v1965
      %v2176 = vmul.f32 %v2144, %v1968
      %v2177 = vmul.f32 %v2145, %v1973
      %v2178 = vmul.f32 %v2146, %v1976
      %v2179 = vmul.f32 %v2147, %v1981
      %v2180 = vmul.f32 %v2148, %v1984
      %v2181 = vmul.f32 %v2149, %v1989
      %v2182 = vmul.f32 %v2150, %v1992
      %v2183 = vmul.f32 %v2151, %v1997
      %v2184 = vmul.f32 %v2152, %v2000
      %v2185 = vmul.f32 %v2153, %v2005
      %v2186 = vmul.f32 %v2154, %v2008
      %v2187 = vmul.f32 %v2155, %v2013
      %v2188 = vmul.f32 %v2156, %v2016
      %v2189 = vmul.f32 %v2157, %v2021
      %v2190 = vmul.f32 %v2158, %v2024
      %v2191 = vmul.f32 %v2159, %v2029
      %v2192 = vmul.f32 %v2160, %v2032
      %v2193 = vmul.f32 %v2161, %v2037
      %v2194 = vmul.f32 %v2162, %v2040
      %v2195 = vmul.f32 %v2163, %v2045
      %v2196 = vmul.f32 %v2164, %v2048
      %v2197 = vmul.f32 %v2165, %v2053
      %v2198 = vmul.f32 %v2166, %v2056
      %v2199 = vmul.f32 %v2167, %v2061
      %v2200 = vmul.f32 %v2168, %v2064
      %v2201 = vmul.f32 %v2169, %v2069
      %v2202 = vmul.f32 %v2170, %v2072
      %v2203 = vadd.f32 %v1949, %v2171
      %v2204 = vadd.f32 %v1952, %v2172
      %v2205 = vadd.f32 %v1957, %v2173
      %v2206 = vadd.f32 %v1960, %v2174
      %v2207 = vadd.f32 %v1965, %v2175
      %v2208 = vadd.f32 %v1968, %v2176
      %v2209 = vadd.f32 %v1973, %v2177
      %v2210 = vadd.f32 %v1976, %v2178
      %v2211 = vadd.f32 %v1981, %v2179
      %v2212 = vadd.f32 %v1984, %v2180
      %v2213 = vadd.f32 %v1989, %v2181
      %v2214 = vadd.f32 %v1992, %v2182
      %v2215 = vadd.f32 %v1997, %v2183
      %v2216 = vadd.f32 %v2000, %v2184
      %v2217 = vadd.f32 %v2005, %v2185
      %v2218 = vadd.f32 %v2008, %v2186
      %v2219 = vadd.f32 %v2013, %v2187
      %v2220 = vadd.f32 %v2016, %v2188
      %v2221 = vadd.f32 %v2021, %v2189
      %v2222 = vadd.f32 %v2024, %v2190
      %v2223 = vadd.f32 %v2029, %v2191
      %v2224 = vadd.f32 %v2032, %v2192
      %v2225 = vadd.f32 %v2037, %v2193
      %v2226 = vadd.f32 %v2040, %v2194
      %v2227 = vadd.f32 %v2045, %v2195
      %v2228 = vadd.f32 %v2048, %v2196
      %v2229 = vadd.f32 %v2053, %v2197
      %v2230 = vadd.f32 %v2056, %v2198
      %v2231 = vadd.f32 %v2061, %v2199
      %v2232 = vadd.f32 %v2064, %v2200
      %v2233 = vadd.f32 %v2069, %v2201
      %v2234 = vadd.f32 %v2072, %v2202
      %v2235 = vmul.f32 %v2203, 0.7978846
      %v2236 = vmul.f32 %v2204, 0.7978846
      %v2237 = vmul.f32 %v2205, 0.7978846
      %v2238 = vmul.f32 %v2206, 0.7978846
      %v2239 = vmul.f32 %v2207, 0.7978846
      %v2240 = vmul.f32 %v2208, 0.7978846
      %v2241 = vmul.f32 %v2209, 0.7978846
      %v2242 = vmul.f32 %v2210, 0.7978846
      %v2243 = vmul.f32 %v2211, 0.7978846
      %v2244 = vmul.f32 %v2212, 0.7978846
      %v2245 = vmul.f32 %v2213, 0.7978846
      %v2246 = vmul.f32 %v2214, 0.7978846
      %v2247 = vmul.f32 %v2215, 0.7978846
      %v2248 = vmul.f32 %v2216, 0.7978846
      %v2249 = vmul.f32 %v2217, 0.7978846
      %v2250 = vmul.f32 %v2218, 0.7978846
      %v2251 = vmul.f32 %v2219, 0.7978846
      %v2252 = vmul.f32 %v2220, 0.7978846
      %v2253 = vmul.f32 %v2221, 0.7978846
      %v2254 = vmul.f32 %v2222, 0.7978846
      %v2255 = vmul.f32 %v2223, 0.7978846
      %v2256 = vmul.f32 %v2224, 0.7978846
      %v2257 = vmul.f32 %v2225, 0.7978846
      %v2258 = vmul.f32 %v2226, 0.7978846
      %v2259 = vmul.f32 %v2227, 0.7978846
      %v2260 = vmul.f32 %v2228, 0.7978846
      %v2261 = vmul.f32 %v2229, 0.7978846
      %v2262 = vmul.f32 %v2230, 0.7978846
      %v2263 = vmul.f32 %v2231, 0.7978846
      %v2264 = vmul.f32 %v2232, 0.7978846
      %v2265 = vmul.f32 %v2233, 0.7978846
      %v2266 = vmul.f32 %v2234, 0.7978846
      %v2267 = vtanh.pop %v2235
      %v2268 = vtanh.pop %v2236
      %v2269 = vtanh.pop %v2237
      %v2270 = vtanh.pop %v2238
      %v2271 = vtanh.pop %v2239
      %v2272 = vtanh.pop %v2240
      %v2273 = vtanh.pop %v2241
      %v2274 = vtanh.pop %v2242
      %v2275 = vtanh.pop %v2243
      %v2276 = vtanh.pop %v2244
      %v2277 = vtanh.pop %v2245
      %v2278 = vtanh.pop %v2246
      %v2279 = vtanh.pop %v2247
      %v2280 = vtanh.pop %v2248
      %v2281 = vtanh.pop %v2249
      %v2282 = vtanh.pop %v2250
      %v2283 = vtanh.pop %v2251
      %v2284 = vtanh.pop %v2252
      %v2285 = vtanh.pop %v2253
      %v2286 = vtanh.pop %v2254
      %v2287 = vtanh.pop %v2255
      %v2288 = vtanh.pop %v2256
      %v2289 = vtanh.pop %v2257
      %v2290 = vtanh.pop %v2258
      %v2291 = vtanh.pop %v2259
      %v2292 = vtanh.pop %v2260
      %v2293 = vtanh.pop %v2261
      %v2294 = vtanh.pop %v2262
      %v2295 = vtanh.pop %v2263
      %v2296 = vtanh.pop %v2264
      %v2297 = vtanh.pop %v2265
      %v2298 = vtanh.pop %v2266
      %v2299 = vadd.f32 %v2267, 1.0
      %v2300 = vadd.f32 %v2268, 1.0
      %v2301 = vadd.f32 %v2269, 1.0
      %v2302 = vadd.f32 %v2270, 1.0
      %v2303 = vadd.f32 %v2271, 1.0
      %v2304 = vadd.f32 %v2272, 1.0
      %v2305 = vadd.f32 %v2273, 1.0
      %v2306 = vadd.f32 %v2274, 1.0
      %v2307 = vadd.f32 %v2275, 1.0
      %v2308 = vadd.f32 %v2276, 1.0
      %v2309 = vadd.f32 %v2277, 1.0
      %v2310 = vadd.f32 %v2278, 1.0
      %v2311 = vadd.f32 %v2279, 1.0
      %v2312 = vadd.f32 %v2280, 1.0
      %v2313 = vadd.f32 %v2281, 1.0
      %v2314 = vadd.f32 %v2282, 1.0
      %v2315 = vadd.f32 %v2283, 1.0
      %v2316 = vadd.f32 %v2284, 1.0
      %v2317 = vadd.f32 %v2285, 1.0
      %v2318 = vadd.f32 %v2286, 1.0
      %v2319 = vadd.f32 %v2287, 1.0
      %v2320 = vadd.f32 %v2288, 1.0
      %v2321 = vadd.f32 %v2289, 1.0
      %v2322 = vadd.f32 %v2290, 1.0
      %v2323 = vadd.f32 %v2291, 1.0
      %v2324 = vadd.f32 %v2292, 1.0
      %v2325 = vadd.f32 %v2293, 1.0
      %v2326 = vadd.f32 %v2294, 1.0
      %v2327 = vadd.f32 %v2295, 1.0
      %v2328 = vadd.f32 %v2296, 1.0
      %v2329 = vadd.f32 %v2297, 1.0
      %v2330 = vadd.f32 %v2298, 1.0
      %v2331 = vmul.f32 %v2075, %v2299
      %v2332 = vmul.f32 %v2076, %v2300
      %v2333 = vmul.f32 %v2077, %v2301
      %v2334 = vmul.f32 %v2078, %v2302
      %v2335 = vmul.f32 %v2079, %v2303
      %v2336 = vmul.f32 %v2080, %v2304
      %v2337 = vmul.f32 %v2081, %v2305
      %v2338 = vmul.f32 %v2082, %v2306
      %v2339 = vmul.f32 %v2083, %v2307
      %v2340 = vmul.f32 %v2084, %v2308
      %v2341 = vmul.f32 %v2085, %v2309
      %v2342 = vmul.f32 %v2086, %v2310
      %v2343 = vmul.f32 %v2087, %v2311
      %v2344 = vmul.f32 %v2088, %v2312
      %v2345 = vmul.f32 %v2089, %v2313
      %v2346 = vmul.f32 %v2090, %v2314
      %v2347 = vmul.f32 %v2091, %v2315
      %v2348 = vmul.f32 %v2092, %v2316
      %v2349 = vmul.f32 %v2093, %v2317
      %v2350 = vmul.f32 %v2094, %v2318
      %v2351 = vmul.f32 %v2095, %v2319
      %v2352 = vmul.f32 %v2096, %v2320
      %v2353 = vmul.f32 %v2097, %v2321
      %v2354 = vmul.f32 %v2098, %v2322
      %v2355 = vmul.f32 %v2099, %v2323
      %v2356 = vmul.f32 %v2100, %v2324
      %v2357 = vmul.f32 %v2101, %v2325
      %v2358 = vmul.f32 %v2102, %v2326
      %v2359 = vmul.f32 %v2103, %v2327
      %v2360 = vmul.f32 %v2104, %v2328
      %v2361 = vmul.f32 %v2105, %v2329
      %v2362 = vmul.f32 %v2106, %v2330
      %v2395 = vrot.slane %v2331, 7
      %v2396 = vrot.slane %v2332, 7
      %v2397 = vsel %vm331, %v2395, %v2396
      %v2398 = vrot.slane %v2333, 7
      %v2399 = vrot.slane %v2334, 7
      %v2400 = vsel %vm331, %v2398, %v2399
      %v2401 = vrot.slane %v2335, 7
      %v2402 = vrot.slane %v2336, 7
      %v2403 = vsel %vm331, %v2401, %v2402
      %v2404 = vrot.slane %v2337, 7
      %v2405 = vrot.slane %v2338, 7
      %v2406 = vsel %vm331, %v2404, %v2405
      %v2407 = vrot.slane %v2339, 7
      %v2408 = vrot.slane %v2340, 7
      %v2409 = vsel %vm331, %v2407, %v2408
      %v2410 = vrot.slane %v2341, 7
      %v2411 = vrot.slane %v2342, 7
      %v2412 = vsel %vm331, %v2410, %v2411
      %v2413 = vrot.slane %v2343, 7
      %v2414 = vrot.slane %v2344, 7
      %v2415 = vsel %vm331, %v2413, %v2414
      %v2416 = vrot.slane %v2345, 7
      %v2417 = vrot.slane %v2346, 7
      %v2418 = vsel %vm331, %v2416, %v2417
      %v2419 = vrot.slane %v2347, 7
      %v2420 = vrot.slane %v2348, 7
      %v2421 = vsel %vm331, %v2419, %v2420
      %v2422 = vrot.slane %v2349, 7
      %v2423 = vrot.slane %v2350, 7
      %v2424 = vsel %vm331, %v2422, %v2423
      %v2425 = vrot.slane %v2351, 7
      %v2426 = vrot.slane %v2352, 7
      %v2427 = vsel %vm331, %v2425, %v2426
      %v2428 = vrot.slane %v2353, 7
      %v2429 = vrot.slane %v2354, 7
      %v2430 = vsel %vm331, %v2428, %v2429
      %v2431 = vrot.slane %v2355, 7
      %v2432 = vrot.slane %v2356, 7
      %v2433 = vsel %vm331, %v2431, %v2432
      %v2434 = vrot.slane %v2357, 7
      %v2435 = vrot.slane %v2358, 7
      %v2436 = vsel %vm331, %v2434, %v2435
      %v2437 = vrot.slane %v2359, 7
      %v2438 = vrot.slane %v2360, 7
      %v2439 = vsel %vm331, %v2437, %v2438
      %v2440 = vrot.slane %v2361, 7
      %v2441 = vrot.slane %v2362, 7
      %v2442 = vsel %vm331, %v2440, %v2441
      %v2490 = vsel %vm331, 0.0, %v2395
      %v2491 = vsel %vm331, 0.0, %v2398
      %v2492 = vsel %vm331, 0.0, %v2401
      %v2493 = vsel %vm331, 0.0, %v2404
      %v2494 = vsel %vm331, 0.0, %v2407
      %v2495 = vsel %vm331, 0.0, %v2410
      %v2496 = vsel %vm331, 0.0, %v2413
      %v2497 = vsel %vm331, 0.0, %v2416
      %v2498 = vsel %vm331, 0.0, %v2419
      %v2499 = vsel %vm331, 0.0, %v2422
      %v2500 = vsel %vm331, 0.0, %v2425
      %v2501 = vsel %vm331, 0.0, %v2428
      %v2502 = vsel %vm331, 0.0, %v2431
      %v2503 = vsel %vm331, 0.0, %v2434
      %v2504 = vsel %vm331, 0.0, %v2437
      %v2505 = vsel %vm331, 0.0, %v2440
      %v2506 = vsel %vm331, %v2396, 0.0
      %v2507 = vsel %vm331, %v2399, 0.0
      %v2508 = vsel %vm331, %v2402, 0.0
      %v2509 = vsel %vm331, %v2405, 0.0
      %v2510 = vsel %vm331, %v2408, 0.0
      %v2511 = vsel %vm331, %v2411, 0.0
      %v2512 = vsel %vm331, %v2414, 0.0
      %v2513 = vsel %vm331, %v2417, 0.0
      %v2514 = vsel %vm331, %v2420, 0.0
      %v2515 = vsel %vm331, %v2423, 0.0
      %v2516 = vsel %vm331, %v2426, 0.0
      %v2517 = vsel %vm331, %v2429, 0.0
      %v2518 = vsel %vm331, %v2432, 0.0
      %v2519 = vsel %vm331, %v2435, 0.0
      %v2520 = vsel %vm331, %v2438, 0.0
      %v2521 = vsel %vm331, %v2441, 0.0
      %v2552 = vrot.slane %v2490, 1
      %v2553 = vrot.slane %v2397, 1
      %v2554 = vsel %vm497, %v2552, %v2553
      %v2555 = vrot.slane %v2506, 1
      %v2556 = vsel %vm497, %v2553, %v2555
      %v2557 = vrot.slane %v2491, 1
      %v2558 = vrot.slane %v2400, 1
      %v2559 = vsel %vm497, %v2557, %v2558
      %v2560 = vrot.slane %v2507, 1
      %v2561 = vsel %vm497, %v2558, %v2560
      %v2562 = vrot.slane %v2492, 1
      %v2563 = vrot.slane %v2403, 1
      %v2564 = vsel %vm497, %v2562, %v2563
      %v2565 = vrot.slane %v2508, 1
      %v2566 = vsel %vm497, %v2563, %v2565
      %v2567 = vrot.slane %v2493, 1
      %v2568 = vrot.slane %v2406, 1
      %v2569 = vsel %vm497, %v2567, %v2568
      %v2570 = vrot.slane %v2509, 1
      %v2571 = vsel %vm497, %v2568, %v2570
      %v2572 = vrot.slane %v2494, 1
      %v2573 = vrot.slane %v2409, 1
      %v2574 = vsel %vm497, %v2572, %v2573
      %v2575 = vrot.slane %v2510, 1
      %v2576 = vsel %vm497, %v2573, %v2575
      %v2577 = vrot.slane %v2495, 1
      %v2578 = vrot.slane %v2412, 1
      %v2579 = vsel %vm497, %v2577, %v2578
      %v2580 = vrot.slane %v2511, 1
      %v2581 = vsel %vm497, %v2578, %v2580
      %v2582 = vrot.slane %v2496, 1
      %v2583 = vrot.slane %v2415, 1
      %v2584 = vsel %vm497, %v2582, %v2583
      %v2585 = vrot.slane %v2512, 1
      %v2586 = vsel %vm497, %v2583, %v2585
      %v2587 = vrot.slane %v2497, 1
      %v2588 = vrot.slane %v2418, 1
      %v2589 = vsel %vm497, %v2587, %v2588
      %v2590 = vrot.slane %v2513, 1
      %v2591 = vsel %vm497, %v2588, %v2590
      %v2592 = vrot.slane %v2498, 1
      %v2593 = vrot.slane %v2421, 1
      %v2594 = vsel %vm497, %v2592, %v2593
      %v2595 = vrot.slane %v2514, 1
      %v2596 = vsel %vm497, %v2593, %v2595
      %v2597 = vrot.slane %v2499, 1
      %v2598 = vrot.slane %v2424, 1
      %v2599 = vsel %vm497, %v2597, %v2598
      %v2600 = vrot.slane %v2515, 1
      %v2601 = vsel %vm497, %v2598, %v2600
      %v2602 = vrot.slane %v2500, 1
      %v2603 = vrot.slane %v2427, 1
      %v2604 = vsel %vm497, %v2602, %v2603
      %v2605 = vrot.slane %v2516, 1
      %v2606 = vsel %vm497, %v2603, %v2605
      %v2607 = vrot.slane %v2501, 1
      %v2608 = vrot.slane %v2430, 1
      %v2609 = vsel %vm497, %v2607, %v2608
      %v2610 = vrot.slane %v2517, 1
      %v2611 = vsel %vm497, %v2608, %v2610
      %v2612 = vrot.slane %v2502, 1
      %v2613 = vrot.slane %v2433, 1
      %v2614 = vsel %vm497, %v2612, %v2613
      %v2615 = vrot.slane %v2518, 1
      %v2616 = vsel %vm497, %v2613, %v2615
      %v2617 = vrot.slane %v2503, 1
      %v2618 = vrot.slane %v2436, 1
      %v2619 = vsel %vm497, %v2617, %v2618
      %v2620 = vrot.slane %v2519, 1
      %v2621 = vsel %vm497, %v2618, %v2620
      %v2622 = vrot.slane %v2504, 1
      %v2623 = vrot.slane %v2439, 1
      %v2624 = vsel %vm497, %v2622, %v2623
      %v2625 = vrot.slane %v2520, 1
      %v2626 = vsel %vm497, %v2623, %v2625
      %v2627 = vrot.slane %v2490, 2
      %v2628 = vrot.slane %v2397, 2
      %v2629 = vsel %vm578, %v2627, %v2628
      %v2630 = vrot.slane %v2506, 2
      %v2631 = vsel %vm578, %v2628, %v2630
      %v2632 = vrot.slane %v2491, 2
      %v2633 = vrot.slane %v2400, 2
      %v2634 = vsel %vm578, %v2632, %v2633
      %v2635 = vrot.slane %v2507, 2
      %v2636 = vsel %vm578, %v2633, %v2635
      %v2637 = vrot.slane %v2492, 2
      %v2638 = vrot.slane %v2403, 2
      %v2639 = vsel %vm578, %v2637, %v2638
      %v2640 = vrot.slane %v2508, 2
      %v2641 = vsel %vm578, %v2638, %v2640
      %v2642 = vrot.slane %v2493, 2
      %v2643 = vrot.slane %v2406, 2
      %v2644 = vsel %vm578, %v2642, %v2643
      %v2645 = vrot.slane %v2509, 2
      %v2646 = vsel %vm578, %v2643, %v2645
      %v2647 = vrot.slane %v2494, 2
      %v2648 = vrot.slane %v2409, 2
      %v2649 = vsel %vm578, %v2647, %v2648
      %v2650 = vrot.slane %v2510, 2
      %v2651 = vsel %vm578, %v2648, %v2650
      %v2652 = vrot.slane %v2495, 2
      %v2653 = vrot.slane %v2412, 2
      %v2654 = vsel %vm578, %v2652, %v2653
      %v2655 = vrot.slane %v2511, 2
      %v2656 = vsel %vm578, %v2653, %v2655
      %v2657 = vrot.slane %v2496, 2
      %v2658 = vrot.slane %v2415, 2
      %v2659 = vsel %vm578, %v2657, %v2658
      %v2660 = vrot.slane %v2512, 2
      %v2661 = vsel %vm578, %v2658, %v2660
      %v2662 = vrot.slane %v2497, 2
      %v2663 = vrot.slane %v2418, 2
      %v2664 = vsel %vm578, %v2662, %v2663
      %v2665 = vrot.slane %v2513, 2
      %v2666 = vsel %vm578, %v2663, %v2665
      %v2667 = vrot.slane %v2498, 2
      %v2668 = vrot.slane %v2421, 2
      %v2669 = vsel %vm578, %v2667, %v2668
      %v2670 = vrot.slane %v2514, 2
      %v2671 = vsel %vm578, %v2668, %v2670
      %v2672 = vrot.slane %v2499, 2
      %v2673 = vrot.slane %v2424, 2
      %v2674 = vsel %vm578, %v2672, %v2673
      %v2675 = vrot.slane %v2515, 2
      %v2676 = vsel %vm578, %v2673, %v2675
      %v2677 = vrot.slane %v2500, 2
      %v2678 = vrot.slane %v2427, 2
      %v2679 = vsel %vm578, %v2677, %v2678
      %v2680 = vrot.slane %v2516, 2
      %v2681 = vsel %vm578, %v2678, %v2680
      %v2682 = vrot.slane %v2501, 2
      %v2683 = vrot.slane %v2430, 2
      %v2684 = vsel %vm578, %v2682, %v2683
      %v2685 = vrot.slane %v2517, 2
      %v2686 = vsel %vm578, %v2683, %v2685
      %v2687 = vrot.slane %v2502, 2
      %v2688 = vrot.slane %v2433, 2
      %v2689 = vsel %vm578, %v2687, %v2688
      %v2690 = vrot.slane %v2518, 2
      %v2691 = vsel %vm578, %v2688, %v2690
      %v2692 = vrot.slane %v2503, 2
      %v2693 = vrot.slane %v2436, 2
      %v2694 = vsel %vm578, %v2692, %v2693
      %v2695 = vrot.slane %v2519, 2
      %v2696 = vsel %vm578, %v2693, %v2695
      %v2697 = vrot.slane %v2504, 2
      %v2698 = vrot.slane %v2439, 2
      %v2699 = vsel %vm578, %v2697, %v2698
      %v2700 = vrot.slane %v2520, 2
      %v2701 = vsel %vm578, %v2698, %v2700
      %v2704 = vrot.slane %v2505, 1
      %v2705 = vrot.slane %v2442, 1
      %v2706 = vsel %vm497, %v2704, %v2705
      %v2707 = vrot.slane %v2521, 1
      %v2708 = vsel %vm497, %v2705, %v2707
      %v2741 = vrot.slane %v2505, 2
      %v2742 = vrot.slane %v2442, 2
      %v2743 = vsel %vm578, %v2741, %v2742
      %v2744 = vrot.slane %v2521, 2
      %v2745 = vsel %vm578, %v2742, %v2744
      %2776 = vrot.lane.b32.xlu0 %v2554, 32
      %v2777 = vpop.permute.xlu0 %2776
      %2778 = vrot.lane.b32.xlu0 %v2556, 32
      %v2779 = vpop.permute.xlu0 %2778
      %2780 = vrot.lane.b32.xlu0 %v2559, 32
      %v2781 = vpop.permute.xlu0 %2780
      %2782 = vrot.lane.b32.xlu0 %v2561, 32
      %v2783 = vpop.permute.xlu0 %2782
      %2784 = vrot.lane.b32.xlu0 %v2564, 32
      %v2785 = vpop.permute.xlu0 %2784
      %2786 = vrot.lane.b32.xlu0 %v2566, 32
      %v2787 = vpop.permute.xlu0 %2786
      %2788 = vrot.lane.b32.xlu0 %v2569, 32
      %v2789 = vpop.permute.xlu0 %2788
      %2790 = vrot.lane.b32.xlu0 %v2571, 32
      %v2791 = vpop.permute.xlu0 %2790
      %2792 = vrot.lane.b32.xlu0 %v2574, 32
      %v2793 = vpop.permute.xlu0 %2792
      %2794 = vrot.lane.b32.xlu0 %v2576, 32
      %v2795 = vpop.permute.xlu0 %2794
      %2796 = vrot.lane.b32.xlu0 %v2579, 32
      %v2797 = vpop.permute.xlu0 %2796
      %2798 = vrot.lane.b32.xlu0 %v2581, 32
      %v2799 = vpop.permute.xlu0 %2798
      %2800 = vrot.lane.b32.xlu0 %v2584, 32
      %v2801 = vpop.permute.xlu0 %2800
      %2802 = vrot.lane.b32.xlu0 %v2586, 32
      %v2803 = vpop.permute.xlu0 %2802
      %2804 = vrot.lane.b32.xlu0 %v2589, 32
      %v2805 = vpop.permute.xlu0 %2804
      %2806 = vrot.lane.b32.xlu0 %v2591, 32
      %v2807 = vpop.permute.xlu0 %2806
      %2808 = vrot.lane.b32.xlu0 %v2594, 32
      %v2809 = vpop.permute.xlu0 %2808
      %2810 = vrot.lane.b32.xlu0 %v2596, 32
      %v2811 = vpop.permute.xlu0 %2810
      %2812 = vrot.lane.b32.xlu0 %v2599, 32
      %v2813 = vpop.permute.xlu0 %2812
      %2814 = vrot.lane.b32.xlu0 %v2601, 32
      %v2815 = vpop.permute.xlu0 %2814
      %2816 = vrot.lane.b32.xlu0 %v2604, 32
      %v2817 = vpop.permute.xlu0 %2816
      %2818 = vrot.lane.b32.xlu0 %v2606, 32
      %v2819 = vpop.permute.xlu0 %2818
      %2820 = vrot.lane.b32.xlu0 %v2609, 32
      %v2821 = vpop.permute.xlu0 %2820
      %2822 = vrot.lane.b32.xlu0 %v2611, 32
      %v2823 = vpop.permute.xlu0 %2822
      %2824 = vrot.lane.b32.xlu0 %v2614, 32
      %v2825 = vpop.permute.xlu0 %2824
      %2826 = vrot.lane.b32.xlu0 %v2616, 32
      %v2827 = vpop.permute.xlu0 %2826
      %2828 = vrot.lane.b32.xlu0 %v2619, 32
      %v2829 = vpop.permute.xlu0 %2828
      %2830 = vrot.lane.b32.xlu0 %v2621, 32
      %v2831 = vpop.permute.xlu0 %2830
      %2832 = vrot.lane.b32.xlu0 %v2624, 32
      %v2833 = vpop.permute.xlu0 %2832
      %2834 = vrot.lane.b32.xlu0 %v2626, 32
      %v2835 = vpop.permute.xlu0 %2834
      %2866 = vrot.lane.b32.xlu0 %v2629, 64
      %v2867 = vpop.permute.xlu0 %2866
      %2868 = vrot.lane.b32.xlu0 %v2631, 64
      %v2869 = vpop.permute.xlu0 %2868
      %2870 = vrot.lane.b32.xlu0 %v2634, 64
      %v2871 = vpop.permute.xlu0 %2870
      %2872 = vrot.lane.b32.xlu0 %v2636, 64
      %v2873 = vpop.permute.xlu0 %2872
      %2874 = vrot.lane.b32.xlu0 %v2639, 64
      %v2875 = vpop.permute.xlu0 %2874
      %2876 = vrot.lane.b32.xlu0 %v2641, 64
      %v2877 = vpop.permute.xlu0 %2876
      %2878 = vrot.lane.b32.xlu0 %v2644, 64
      %v2879 = vpop.permute.xlu0 %2878
      %2880 = vrot.lane.b32.xlu0 %v2646, 64
      %v2881 = vpop.permute.xlu0 %2880
      %2882 = vrot.lane.b32.xlu0 %v2649, 64
      %v2883 = vpop.permute.xlu0 %2882
      %2884 = vrot.lane.b32.xlu0 %v2651, 64
      %v2885 = vpop.permute.xlu0 %2884
      %2886 = vrot.lane.b32.xlu0 %v2654, 64
      %v2887 = vpop.permute.xlu0 %2886
      %2888 = vrot.lane.b32.xlu0 %v2656, 64
      %v2889 = vpop.permute.xlu0 %2888
      %2890 = vrot.lane.b32.xlu0 %v2659, 64
      %v2891 = vpop.permute.xlu0 %2890
      %2892 = vrot.lane.b32.xlu0 %v2661, 64
      %v2893 = vpop.permute.xlu0 %2892
      %2894 = vrot.lane.b32.xlu0 %v2664, 64
      %v2895 = vpop.permute.xlu0 %2894
      %2896 = vrot.lane.b32.xlu0 %v2666, 64
      %v2897 = vpop.permute.xlu0 %2896
      %2898 = vrot.lane.b32.xlu0 %v2669, 64
      %v2899 = vpop.permute.xlu0 %2898
      %2900 = vrot.lane.b32.xlu0 %v2671, 64
      %v2901 = vpop.permute.xlu0 %2900
      %2902 = vrot.lane.b32.xlu0 %v2674, 64
      %v2903 = vpop.permute.xlu0 %2902
      %2904 = vrot.lane.b32.xlu0 %v2676, 64
      %v2905 = vpop.permute.xlu0 %2904
      %2906 = vrot.lane.b32.xlu0 %v2679, 64
      %v2907 = vpop.permute.xlu0 %2906
      %2908 = vrot.lane.b32.xlu0 %v2681, 64
      %v2909 = vpop.permute.xlu0 %2908
      %2910 = vrot.lane.b32.xlu0 %v2684, 64
      %v2911 = vpop.permute.xlu0 %2910
      %2912 = vrot.lane.b32.xlu0 %v2686, 64
      %v2913 = vpop.permute.xlu0 %2912
      %2914 = vrot.lane.b32.xlu0 %v2689, 64
      %v2915 = vpop.permute.xlu0 %2914
      %2916 = vrot.lane.b32.xlu0 %v2691, 64
      %v2917 = vpop.permute.xlu0 %2916
      %2918 = vrot.lane.b32.xlu0 %v2694, 64
      %v2919 = vpop.permute.xlu0 %2918
      %2920 = vrot.lane.b32.xlu0 %v2696, 64
      %v2921 = vpop.permute.xlu0 %2920
      %2922 = vrot.lane.b32.xlu0 %v2699, 64
      %v2923 = vpop.permute.xlu0 %2922
      %2924 = vrot.lane.b32.xlu0 %v2701, 64
      %v2925 = vpop.permute.xlu0 %2924
      %2956 = vrot.lane.b32.xlu0 %v2490, 96
      %v2957 = vpop.permute.xlu0 %2956
      %2958 = vrot.lane.b32.xlu0 %v2397, 96
      %v2959 = vpop.permute.xlu0 %2958
      %2960 = vrot.lane.b32.xlu0 %v2491, 96
      %v2961 = vpop.permute.xlu0 %2960
      %2962 = vrot.lane.b32.xlu0 %v2400, 96
      %v2963 = vpop.permute.xlu0 %2962
      %2964 = vrot.lane.b32.xlu0 %v2492, 96
      %v2965 = vpop.permute.xlu0 %2964
      %2966 = vrot.lane.b32.xlu0 %v2403, 96
      %v2967 = vpop.permute.xlu0 %2966
      %2968 = vrot.lane.b32.xlu0 %v2493, 96
      %v2969 = vpop.permute.xlu0 %2968
      %2970 = vrot.lane.b32.xlu0 %v2406, 96
      %v2971 = vpop.permute.xlu0 %2970
      %2972 = vrot.lane.b32.xlu0 %v2494, 96
      %v2973 = vpop.permute.xlu0 %2972
      %2974 = vrot.lane.b32.xlu0 %v2409, 96
      %v2975 = vpop.permute.xlu0 %2974
      %2976 = vrot.lane.b32.xlu0 %v2495, 96
      %v2977 = vpop.permute.xlu0 %2976
      %2978 = vrot.lane.b32.xlu0 %v2412, 96
      %v2979 = vpop.permute.xlu0 %2978
      %2980 = vrot.lane.b32.xlu0 %v2496, 96
      %v2981 = vpop.permute.xlu0 %2980
      %2982 = vrot.lane.b32.xlu0 %v2415, 96
      %v2983 = vpop.permute.xlu0 %2982
      %2984 = vrot.lane.b32.xlu0 %v2497, 96
      %v2985 = vpop.permute.xlu0 %2984
      %2986 = vrot.lane.b32.xlu0 %v2418, 96
      %v2987 = vpop.permute.xlu0 %2986
      %2988 = vrot.lane.b32.xlu0 %v2498, 96
      %v2989 = vpop.permute.xlu0 %2988
      %2990 = vrot.lane.b32.xlu0 %v2421, 96
      %v2991 = vpop.permute.xlu0 %2990
      %2992 = vrot.lane.b32.xlu0 %v2499, 96
      %v2993 = vpop.permute.xlu0 %2992
      %2994 = vrot.lane.b32.xlu0 %v2424, 96
      %v2995 = vpop.permute.xlu0 %2994
      %2996 = vrot.lane.b32.xlu0 %v2500, 96
      %v2997 = vpop.permute.xlu0 %2996
      %2998 = vrot.lane.b32.xlu0 %v2427, 96
      %v2999 = vpop.permute.xlu0 %2998
      %3000 = vrot.lane.b32.xlu0 %v2501, 96
      %v3001 = vpop.permute.xlu0 %3000
      %3002 = vrot.lane.b32.xlu0 %v2430, 96
      %v3003 = vpop.permute.xlu0 %3002
      %3004 = vrot.lane.b32.xlu0 %v2502, 96
      %v3005 = vpop.permute.xlu0 %3004
      %3006 = vrot.lane.b32.xlu0 %v2433, 96
      %v3007 = vpop.permute.xlu0 %3006
      %3008 = vrot.lane.b32.xlu0 %v2503, 96
      %v3009 = vpop.permute.xlu0 %3008
      %3010 = vrot.lane.b32.xlu0 %v2436, 96
      %v3011 = vpop.permute.xlu0 %3010
      %3012 = vrot.lane.b32.xlu0 %v2504, 96
      %v3013 = vpop.permute.xlu0 %3012
      %3014 = vrot.lane.b32.xlu0 %v2439, 96
      %v3015 = vpop.permute.xlu0 %3014
      %3016 = vrot.lane.b32.xlu0 %v2505, 96
      %v3017 = vpop.permute.xlu0 %3016
      %3018 = vrot.lane.b32.xlu0 %v2442, 96
      %v3019 = vpop.permute.xlu0 %3018
      %3052 = vrot.lane.b32.xlu0 %v2629, 32
      %v3053 = vpop.permute.xlu0 %3052
      %3054 = vrot.lane.b32.xlu0 %v2631, 32
      %v3055 = vpop.permute.xlu0 %3054
      %3056 = vrot.lane.b32.xlu0 %v2634, 32
      %v3057 = vpop.permute.xlu0 %3056
      %3058 = vrot.lane.b32.xlu0 %v2636, 32
      %v3059 = vpop.permute.xlu0 %3058
      %3060 = vrot.lane.b32.xlu0 %v2639, 32
      %v3061 = vpop.permute.xlu0 %3060
      %3062 = vrot.lane.b32.xlu0 %v2641, 32
      %v3063 = vpop.permute.xlu0 %3062
      %3064 = vrot.lane.b32.xlu0 %v2644, 32
      %v3065 = vpop.permute.xlu0 %3064
      %3066 = vrot.lane.b32.xlu0 %v2646, 32
      %v3067 = vpop.permute.xlu0 %3066
      %3068 = vrot.lane.b32.xlu0 %v2649, 32
      %v3069 = vpop.permute.xlu0 %3068
      %3070 = vrot.lane.b32.xlu0 %v2651, 32
      %v3071 = vpop.permute.xlu0 %3070
      %3072 = vrot.lane.b32.xlu0 %v2654, 32
      %v3073 = vpop.permute.xlu0 %3072
      %3074 = vrot.lane.b32.xlu0 %v2656, 32
      %v3075 = vpop.permute.xlu0 %3074
      %3076 = vrot.lane.b32.xlu0 %v2659, 32
      %v3077 = vpop.permute.xlu0 %3076
      %3078 = vrot.lane.b32.xlu0 %v2661, 32
      %v3079 = vpop.permute.xlu0 %3078
      %3080 = vrot.lane.b32.xlu0 %v2664, 32
      %v3081 = vpop.permute.xlu0 %3080
      %3082 = vrot.lane.b32.xlu0 %v2666, 32
      %v3083 = vpop.permute.xlu0 %3082
      %3084 = vrot.lane.b32.xlu0 %v2669, 32
      %v3085 = vpop.permute.xlu0 %3084
      %3086 = vrot.lane.b32.xlu0 %v2671, 32
      %v3087 = vpop.permute.xlu0 %3086
      %3088 = vrot.lane.b32.xlu0 %v2674, 32
      %v3089 = vpop.permute.xlu0 %3088
      %3090 = vrot.lane.b32.xlu0 %v2676, 32
      %v3091 = vpop.permute.xlu0 %3090
      %3092 = vrot.lane.b32.xlu0 %v2679, 32
      %v3093 = vpop.permute.xlu0 %3092
      %3094 = vrot.lane.b32.xlu0 %v2681, 32
      %v3095 = vpop.permute.xlu0 %3094
      %3096 = vrot.lane.b32.xlu0 %v2684, 32
      %v3097 = vpop.permute.xlu0 %3096
      %3098 = vrot.lane.b32.xlu0 %v2686, 32
      %v3099 = vpop.permute.xlu0 %3098
      %3100 = vrot.lane.b32.xlu0 %v2689, 32
      %v3101 = vpop.permute.xlu0 %3100
      %3102 = vrot.lane.b32.xlu0 %v2691, 32
      %v3103 = vpop.permute.xlu0 %3102
      %3104 = vrot.lane.b32.xlu0 %v2694, 32
      %v3105 = vpop.permute.xlu0 %3104
      %3106 = vrot.lane.b32.xlu0 %v2696, 32
      %v3107 = vpop.permute.xlu0 %3106
      %3108 = vrot.lane.b32.xlu0 %v2699, 32
      %v3109 = vpop.permute.xlu0 %3108
      %3110 = vrot.lane.b32.xlu0 %v2701, 32
      %v3111 = vpop.permute.xlu0 %3110
      %3112 = vrot.lane.b32.xlu0 %v2743, 32
      %v3113 = vpop.permute.xlu0 %3112
      %3114 = vrot.lane.b32.xlu0 %v2745, 32
      %v3115 = vpop.permute.xlu0 %3114
      %3148 = vrot.lane.b32.xlu0 %v2491, 64
      %v3149 = vpop.permute.xlu0 %3148
      %3150 = vrot.lane.b32.xlu0 %v2400, 64
      %v3151 = vpop.permute.xlu0 %3150
      %3152 = vrot.lane.b32.xlu0 %v2492, 64
      %v3153 = vpop.permute.xlu0 %3152
      %3154 = vrot.lane.b32.xlu0 %v2403, 64
      %v3155 = vpop.permute.xlu0 %3154
      %3156 = vrot.lane.b32.xlu0 %v2493, 64
      %v3157 = vpop.permute.xlu0 %3156
      %3158 = vrot.lane.b32.xlu0 %v2406, 64
      %v3159 = vpop.permute.xlu0 %3158
      %3160 = vrot.lane.b32.xlu0 %v2494, 64
      %v3161 = vpop.permute.xlu0 %3160
      %3162 = vrot.lane.b32.xlu0 %v2409, 64
      %v3163 = vpop.permute.xlu0 %3162
      %3164 = vrot.lane.b32.xlu0 %v2495, 64
      %v3165 = vpop.permute.xlu0 %3164
      %3166 = vrot.lane.b32.xlu0 %v2412, 64
      %v3167 = vpop.permute.xlu0 %3166
      %3168 = vrot.lane.b32.xlu0 %v2496, 64
      %v3169 = vpop.permute.xlu0 %3168
      %3170 = vrot.lane.b32.xlu0 %v2415, 64
      %v3171 = vpop.permute.xlu0 %3170
      %3172 = vrot.lane.b32.xlu0 %v2497, 64
      %v3173 = vpop.permute.xlu0 %3172
      %3174 = vrot.lane.b32.xlu0 %v2418, 64
      %v3175 = vpop.permute.xlu0 %3174
      %3176 = vrot.lane.b32.xlu0 %v2498, 64
      %v3177 = vpop.permute.xlu0 %3176
      %3178 = vrot.lane.b32.xlu0 %v2421, 64
      %v3179 = vpop.permute.xlu0 %3178
      %3180 = vrot.lane.b32.xlu0 %v2499, 64
      %v3181 = vpop.permute.xlu0 %3180
      %3182 = vrot.lane.b32.xlu0 %v2424, 64
      %v3183 = vpop.permute.xlu0 %3182
      %3184 = vrot.lane.b32.xlu0 %v2500, 64
      %v3185 = vpop.permute.xlu0 %3184
      %3186 = vrot.lane.b32.xlu0 %v2427, 64
      %v3187 = vpop.permute.xlu0 %3186
      %3188 = vrot.lane.b32.xlu0 %v2501, 64
      %v3189 = vpop.permute.xlu0 %3188
      %3190 = vrot.lane.b32.xlu0 %v2430, 64
      %v3191 = vpop.permute.xlu0 %3190
      %3192 = vrot.lane.b32.xlu0 %v2502, 64
      %v3193 = vpop.permute.xlu0 %3192
      %3194 = vrot.lane.b32.xlu0 %v2433, 64
      %v3195 = vpop.permute.xlu0 %3194
      %3196 = vrot.lane.b32.xlu0 %v2503, 64
      %v3197 = vpop.permute.xlu0 %3196
      %3198 = vrot.lane.b32.xlu0 %v2436, 64
      %v3199 = vpop.permute.xlu0 %3198
      %3200 = vrot.lane.b32.xlu0 %v2504, 64
      %v3201 = vpop.permute.xlu0 %3200
      %3202 = vrot.lane.b32.xlu0 %v2439, 64
      %v3203 = vpop.permute.xlu0 %3202
      %3204 = vrot.lane.b32.xlu0 %v2505, 64
      %v3205 = vpop.permute.xlu0 %3204
      %3206 = vrot.lane.b32.xlu0 %v2442, 64
      %v3207 = vpop.permute.xlu0 %3206
      %3238 = vrot.lane.b32.xlu0 %v2559, 96
      %v3239 = vpop.permute.xlu0 %3238
      %3240 = vrot.lane.b32.xlu0 %v2561, 96
      %v3241 = vpop.permute.xlu0 %3240
      %3242 = vrot.lane.b32.xlu0 %v2564, 96
      %v3243 = vpop.permute.xlu0 %3242
      %3244 = vrot.lane.b32.xlu0 %v2566, 96
      %v3245 = vpop.permute.xlu0 %3244
      %3246 = vrot.lane.b32.xlu0 %v2569, 96
      %v3247 = vpop.permute.xlu0 %3246
      %3248 = vrot.lane.b32.xlu0 %v2571, 96
      %v3249 = vpop.permute.xlu0 %3248
      %3250 = vrot.lane.b32.xlu0 %v2574, 96
      %v3251 = vpop.permute.xlu0 %3250
      %3252 = vrot.lane.b32.xlu0 %v2576, 96
      %v3253 = vpop.permute.xlu0 %3252
      %3254 = vrot.lane.b32.xlu0 %v2579, 96
      %v3255 = vpop.permute.xlu0 %3254
      %3256 = vrot.lane.b32.xlu0 %v2581, 96
      %v3257 = vpop.permute.xlu0 %3256
      %3258 = vrot.lane.b32.xlu0 %v2584, 96
      %v3259 = vpop.permute.xlu0 %3258
      %3260 = vrot.lane.b32.xlu0 %v2586, 96
      %v3261 = vpop.permute.xlu0 %3260
      %3262 = vrot.lane.b32.xlu0 %v2589, 96
      %v3263 = vpop.permute.xlu0 %3262
      %3264 = vrot.lane.b32.xlu0 %v2591, 96
      %v3265 = vpop.permute.xlu0 %3264
      %3266 = vrot.lane.b32.xlu0 %v2594, 96
      %v3267 = vpop.permute.xlu0 %3266
      %3268 = vrot.lane.b32.xlu0 %v2596, 96
      %v3269 = vpop.permute.xlu0 %3268
      %3270 = vrot.lane.b32.xlu0 %v2599, 96
      %v3271 = vpop.permute.xlu0 %3270
      %3272 = vrot.lane.b32.xlu0 %v2601, 96
      %v3273 = vpop.permute.xlu0 %3272
      %3274 = vrot.lane.b32.xlu0 %v2604, 96
      %v3275 = vpop.permute.xlu0 %3274
      %3276 = vrot.lane.b32.xlu0 %v2606, 96
      %v3277 = vpop.permute.xlu0 %3276
      %3278 = vrot.lane.b32.xlu0 %v2609, 96
      %v3279 = vpop.permute.xlu0 %3278
      %3280 = vrot.lane.b32.xlu0 %v2611, 96
      %v3281 = vpop.permute.xlu0 %3280
      %3282 = vrot.lane.b32.xlu0 %v2614, 96
      %v3283 = vpop.permute.xlu0 %3282
      %3284 = vrot.lane.b32.xlu0 %v2616, 96
      %v3285 = vpop.permute.xlu0 %3284
      %3286 = vrot.lane.b32.xlu0 %v2619, 96
      %v3287 = vpop.permute.xlu0 %3286
      %3288 = vrot.lane.b32.xlu0 %v2621, 96
      %v3289 = vpop.permute.xlu0 %3288
      %3290 = vrot.lane.b32.xlu0 %v2624, 96
      %v3291 = vpop.permute.xlu0 %3290
      %3292 = vrot.lane.b32.xlu0 %v2626, 96
      %v3293 = vpop.permute.xlu0 %3292
      %3294 = vrot.lane.b32.xlu0 %v2706, 96
      %v3295 = vpop.permute.xlu0 %3294
      %3296 = vrot.lane.b32.xlu0 %v2708, 96
      %v3297 = vpop.permute.xlu0 %3296
      %v3328 = vsel %vm1311, %v2490, %v2777
      %v3329 = vsel %vm1311, %v2397, %v2779
      %v3330 = vsel %vm1311, %v2491, %v2781
      %v3331 = vsel %vm1311, %v2400, %v2783
      %v3332 = vsel %vm1311, %v2492, %v2785
      %v3333 = vsel %vm1311, %v2403, %v2787
      %v3334 = vsel %vm1311, %v2493, %v2789
      %v3335 = vsel %vm1311, %v2406, %v2791
      %v3336 = vsel %vm1311, %v2494, %v2793
      %v3337 = vsel %vm1311, %v2409, %v2795
      %v3338 = vsel %vm1311, %v2495, %v2797
      %v3339 = vsel %vm1311, %v2412, %v2799
      %v3340 = vsel %vm1311, %v2496, %v2801
      %v3341 = vsel %vm1311, %v2415, %v2803
      %v3342 = vsel %vm1311, %v2497, %v2805
      %v3343 = vsel %vm1311, %v2418, %v2807
      %v3344 = vsel %vm1311, %v2498, %v2809
      %v3345 = vsel %vm1311, %v2421, %v2811
      %v3346 = vsel %vm1311, %v2499, %v2813
      %v3347 = vsel %vm1311, %v2424, %v2815
      %v3348 = vsel %vm1311, %v2500, %v2817
      %v3349 = vsel %vm1311, %v2427, %v2819
      %v3350 = vsel %vm1311, %v2501, %v2821
      %v3351 = vsel %vm1311, %v2430, %v2823
      %v3352 = vsel %vm1311, %v2502, %v2825
      %v3353 = vsel %vm1311, %v2433, %v2827
      %v3354 = vsel %vm1311, %v2503, %v2829
      %v3355 = vsel %vm1311, %v2436, %v2831
      %v3356 = vsel %vm1311, %v2504, %v2833
      %v3357 = vsel %vm1311, %v2439, %v2835
      %v3358 = vsel %vm1344, %v3328, %v2867
      %v3359 = vsel %vm1344, %v3329, %v2869
      %v3360 = vsel %vm1344, %v3330, %v2871
      %v3361 = vsel %vm1344, %v3331, %v2873
      %v3362 = vsel %vm1344, %v3332, %v2875
      %v3363 = vsel %vm1344, %v3333, %v2877
      %v3364 = vsel %vm1344, %v3334, %v2879
      %v3365 = vsel %vm1344, %v3335, %v2881
      %v3366 = vsel %vm1344, %v3336, %v2883
      %v3367 = vsel %vm1344, %v3337, %v2885
      %v3368 = vsel %vm1344, %v3338, %v2887
      %v3369 = vsel %vm1344, %v3339, %v2889
      %v3370 = vsel %vm1344, %v3340, %v2891
      %v3371 = vsel %vm1344, %v3341, %v2893
      %v3372 = vsel %vm1344, %v3342, %v2895
      %v3373 = vsel %vm1344, %v3343, %v2897
      %v3374 = vsel %vm1344, %v3344, %v2899
      %v3375 = vsel %vm1344, %v3345, %v2901
      %v3376 = vsel %vm1344, %v3346, %v2903
      %v3377 = vsel %vm1344, %v3347, %v2905
      %v3378 = vsel %vm1344, %v3348, %v2907
      %v3379 = vsel %vm1344, %v3349, %v2909
      %v3380 = vsel %vm1344, %v3350, %v2911
      %v3381 = vsel %vm1344, %v3351, %v2913
      %v3382 = vsel %vm1344, %v3352, %v2915
      %v3383 = vsel %vm1344, %v3353, %v2917
      %v3384 = vsel %vm1344, %v3354, %v2919
      %v3385 = vsel %vm1344, %v3355, %v2921
      %v3386 = vsel %vm1344, %v3356, %v2923
      %v3387 = vsel %vm1344, %v3357, %v2925
      %v3388 = vsel %vm1377, %v1345, %v2957
      %v3389 = vsel %vm1377, %v1346, %v2959
      %v3390 = vsel %vm1377, %v3358, %v2961
      %v3391 = vsel %vm1377, %v3359, %v2963
      %v3392 = vsel %vm1377, %v3360, %v2965
      %v3393 = vsel %vm1377, %v3361, %v2967
      %v3394 = vsel %vm1377, %v3362, %v2969
      %v3395 = vsel %vm1377, %v3363, %v2971
      %v3396 = vsel %vm1377, %v3364, %v2973
      %v3397 = vsel %vm1377, %v3365, %v2975
      %v3398 = vsel %vm1377, %v3366, %v2977
      %v3399 = vsel %vm1377, %v3367, %v2979
      %v3400 = vsel %vm1377, %v3368, %v2981
      %v3401 = vsel %vm1377, %v3369, %v2983
      %v3402 = vsel %vm1377, %v3370, %v2985
      %v3403 = vsel %vm1377, %v3371, %v2987
      %v3404 = vsel %vm1377, %v3372, %v2989
      %v3405 = vsel %vm1377, %v3373, %v2991
      %v3406 = vsel %vm1377, %v3374, %v2993
      %v3407 = vsel %vm1377, %v3375, %v2995
      %v3408 = vsel %vm1377, %v3376, %v2997
      %v3409 = vsel %vm1377, %v3377, %v2999
      %v3410 = vsel %vm1377, %v3378, %v3001
      %v3411 = vsel %vm1377, %v3379, %v3003
      %v3412 = vsel %vm1377, %v3380, %v3005
      %v3413 = vsel %vm1377, %v3381, %v3007
      %v3414 = vsel %vm1377, %v3382, %v3009
      %v3415 = vsel %vm1377, %v3383, %v3011
      %v3416 = vsel %vm1377, %v3384, %v3013
      %v3417 = vsel %vm1377, %v3385, %v3015
      %v3418 = vsel %vm1377, %v3386, %v3017
      %v3419 = vsel %vm1377, %v3387, %v3019
      %v3420 = vsel %vm1311, %v2554, %v3053
      %v3421 = vsel %vm1311, %v2556, %v3055
      %v3422 = vsel %vm1311, %v2559, %v3057
      %v3423 = vsel %vm1311, %v2561, %v3059
      %v3424 = vsel %vm1311, %v2564, %v3061
      %v3425 = vsel %vm1311, %v2566, %v3063
      %v3426 = vsel %vm1311, %v2569, %v3065
      %v3427 = vsel %vm1311, %v2571, %v3067
      %v3428 = vsel %vm1311, %v2574, %v3069
      %v3429 = vsel %vm1311, %v2576, %v3071
      %v3430 = vsel %vm1311, %v2579, %v3073
      %v3431 = vsel %vm1311, %v2581, %v3075
      %v3432 = vsel %vm1311, %v2584, %v3077
      %v3433 = vsel %vm1311, %v2586, %v3079
      %v3434 = vsel %vm1311, %v2589, %v3081
      %v3435 = vsel %vm1311, %v2591, %v3083
      %v3436 = vsel %vm1311, %v2594, %v3085
      %v3437 = vsel %vm1311, %v2596, %v3087
      %v3438 = vsel %vm1311, %v2599, %v3089
      %v3439 = vsel %vm1311, %v2601, %v3091
      %v3440 = vsel %vm1311, %v2604, %v3093
      %v3441 = vsel %vm1311, %v2606, %v3095
      %v3442 = vsel %vm1311, %v2609, %v3097
      %v3443 = vsel %vm1311, %v2611, %v3099
      %v3444 = vsel %vm1311, %v2614, %v3101
      %v3445 = vsel %vm1311, %v2616, %v3103
      %v3446 = vsel %vm1311, %v2619, %v3105
      %v3447 = vsel %vm1311, %v2621, %v3107
      %v3448 = vsel %vm1311, %v2624, %v3109
      %v3449 = vsel %vm1311, %v2626, %v3111
      %v3450 = vsel %vm1311, %v2706, %v3113
      %v3451 = vsel %vm1311, %v2708, %v3115
      %v3452 = vsel %vm1344, %v3420, %v3149
      %v3453 = vsel %vm1344, %v3421, %v3151
      %v3454 = vsel %vm1344, %v3422, %v3153
      %v3455 = vsel %vm1344, %v3423, %v3155
      %v3456 = vsel %vm1344, %v3424, %v3157
      %v3457 = vsel %vm1344, %v3425, %v3159
      %v3458 = vsel %vm1344, %v3426, %v3161
      %v3459 = vsel %vm1344, %v3427, %v3163
      %v3460 = vsel %vm1344, %v3428, %v3165
      %v3461 = vsel %vm1344, %v3429, %v3167
      %v3462 = vsel %vm1344, %v3430, %v3169
      %v3463 = vsel %vm1344, %v3431, %v3171
      %v3464 = vsel %vm1344, %v3432, %v3173
      %v3465 = vsel %vm1344, %v3433, %v3175
      %v3466 = vsel %vm1344, %v3434, %v3177
      %v3467 = vsel %vm1344, %v3435, %v3179
      %v3468 = vsel %vm1344, %v3436, %v3181
      %v3469 = vsel %vm1344, %v3437, %v3183
      %v3470 = vsel %vm1344, %v3438, %v3185
      %v3471 = vsel %vm1344, %v3439, %v3187
      %v3472 = vsel %vm1344, %v3440, %v3189
      %v3473 = vsel %vm1344, %v3441, %v3191
      %v3474 = vsel %vm1344, %v3442, %v3193
      %v3475 = vsel %vm1344, %v3443, %v3195
      %v3476 = vsel %vm1344, %v3444, %v3197
      %v3477 = vsel %vm1344, %v3445, %v3199
      %v3478 = vsel %vm1344, %v3446, %v3201
      %v3479 = vsel %vm1344, %v3447, %v3203
      %v3480 = vsel %vm1344, %v3448, %v3205
      %v3481 = vsel %vm1344, %v3449, %v3207
      %v3482 = vsel %vm1344, %v3450, %v1180
      %v3483 = vsel %vm1344, %v3451, %v1182
      %v3484 = vsel %vm1377, %v3452, %v3239
      %v3485 = vsel %vm1377, %v3453, %v3241
      %v3486 = vsel %vm1377, %v3454, %v3243
      %v3487 = vsel %vm1377, %v3455, %v3245
      %v3488 = vsel %vm1377, %v3456, %v3247
      %v3489 = vsel %vm1377, %v3457, %v3249
      %v3490 = vsel %vm1377, %v3458, %v3251
      %v3491 = vsel %vm1377, %v3459, %v3253
      %v3492 = vsel %vm1377, %v3460, %v3255
      %v3493 = vsel %vm1377, %v3461, %v3257
      %v3494 = vsel %vm1377, %v3462, %v3259
      %v3495 = vsel %vm1377, %v3463, %v3261
      %v3496 = vsel %vm1377, %v3464, %v3263
      %v3497 = vsel %vm1377, %v3465, %v3265
      %v3498 = vsel %vm1377, %v3466, %v3267
      %v3499 = vsel %vm1377, %v3467, %v3269
      %v3500 = vsel %vm1377, %v3468, %v3271
      %v3501 = vsel %vm1377, %v3469, %v3273
      %v3502 = vsel %vm1377, %v3470, %v3275
      %v3503 = vsel %vm1377, %v3471, %v3277
      %v3504 = vsel %vm1377, %v3472, %v3279
      %v3505 = vsel %vm1377, %v3473, %v3281
      %v3506 = vsel %vm1377, %v3474, %v3283
      %v3507 = vsel %vm1377, %v3475, %v3285
      %v3508 = vsel %vm1377, %v3476, %v3287
      %v3509 = vsel %vm1377, %v3477, %v3289
      %v3510 = vsel %vm1377, %v3478, %v3291
      %v3511 = vsel %vm1377, %v3479, %v3293
      %v3512 = vsel %vm1377, %v3480, %v3295
      %v3513 = vsel %vm1377, %v3481, %v3297
      %v3514 = vsel %vm1377, %v3482, %v1276
      %v3515 = vsel %vm1377, %v3483, %v1278
      %v3516 = vpack.c.bf16 %v3389, %v3388
      %v3517 = vpack.c.bf16 %v3485, %v3484
      %v3518 = vpack.c.bf16 %v2636, %v2634
      %v3519 = vpack.c.bf16 %v3391, %v3390
      %v3520 = vpack.c.bf16 %v3487, %v3486
      %v3521 = vpack.c.bf16 %v2641, %v2639
      %v3522 = vpack.c.bf16 %v3393, %v3392
      %v3523 = vpack.c.bf16 %v3489, %v3488
      %v3524 = vpack.c.bf16 %v2646, %v2644
      %v3525 = vpack.c.bf16 %v3395, %v3394
      %v3526 = vpack.c.bf16 %v3491, %v3490
      %v3527 = vpack.c.bf16 %v2651, %v2649
      %v3528 = vpack.c.bf16 %v3397, %v3396
      %v3529 = vpack.c.bf16 %v3493, %v3492
      %v3530 = vpack.c.bf16 %v2656, %v2654
      %v3531 = vpack.c.bf16 %v3399, %v3398
      %v3532 = vpack.c.bf16 %v3495, %v3494
      %v3533 = vpack.c.bf16 %v2661, %v2659
      %v3534 = vpack.c.bf16 %v3401, %v3400
      %v3535 = vpack.c.bf16 %v3497, %v3496
      %v3536 = vpack.c.bf16 %v2666, %v2664
      %v3537 = vpack.c.bf16 %v3403, %v3402
      %v3538 = vpack.c.bf16 %v3499, %v3498
      %v3539 = vpack.c.bf16 %v2671, %v2669
      %v3540 = vpack.c.bf16 %v3405, %v3404
      %v3541 = vpack.c.bf16 %v3501, %v3500
      %v3542 = vpack.c.bf16 %v2676, %v2674
      %v3543 = vpack.c.bf16 %v3407, %v3406
      %v3544 = vpack.c.bf16 %v3503, %v3502
      %v3545 = vpack.c.bf16 %v2681, %v2679
      %v3546 = vpack.c.bf16 %v3409, %v3408
      %v3547 = vpack.c.bf16 %v3505, %v3504
      %v3548 = vpack.c.bf16 %v2686, %v2684
      %v3549 = vpack.c.bf16 %v3411, %v3410
      %v3550 = vpack.c.bf16 %v3507, %v3506
      %v3551 = vpack.c.bf16 %v2691, %v2689
      %v3552 = vpack.c.bf16 %v3413, %v3412
      %v3553 = vpack.c.bf16 %v3509, %v3508
      %v3554 = vpack.c.bf16 %v2696, %v2694
      %v3555 = vpack.c.bf16 %v3415, %v3414
      %v3556 = vpack.c.bf16 %v3511, %v3510
      %v3557 = vpack.c.bf16 %v2701, %v2699
      %v3558 = vpack.c.bf16 %v3417, %v3416
      %v3559 = vpack.c.bf16 %v3513, %v3512
      %v3560 = vpack.c.bf16 %v2745, %v2743
      %v3561 = vpack.c.bf16 %v3419, %v3418
      %v3562 = vpack.c.bf16 %v3515, %v3514
      %v3563 = vld [vmem:[%s3] sm:$0xf]
      %v3564 = vld [vmem:[%s3 + $0x4] sm:$0xf]
      %v3565 = vld [vmem:[%s3 + $0x8] sm:$0xf]
      %v3566 = vld [vmem:[%s3 + $0xc] sm:$0xf]
      %v3567 = vld [vmem:[%s3 + $0x10] sm:$0xf]
      %v3568 = vld [vmem:[%s3 + $0x14] sm:$0xf]
      %v3569 = vld [vmem:[%s3 + $0x18] sm:$0xf]
      %v3570 = vld [vmem:[%s3 + $0x1c] sm:$0xf]
      %v3571 = vld [vmem:[%s3 + $0x20] sm:$0xf]
      %v3572 = vld [vmem:[%s3 + $0x24] sm:$0xf]
      %v3573 = vld [vmem:[%s3 + $0x28] sm:$0xf]
      %v3574 = vld [vmem:[%s3 + $0x2c] sm:$0xf]
      %v3575 = vld [vmem:[%s3 + $0x30] sm:$0xf]
      %v3576 = vld [vmem:[%s3 + $0x34] sm:$0xf]
      %v3577 = vld [vmem:[%s3 + $0x38] sm:$0xf]
      %v3578 = vld [vmem:[%s3 + $0x3c] sm:$0xf]
      %v3579 = vld [vmem:[%s3 + $0x40] sm:$0xf]
      %v3580 = vld [vmem:[%s3 + $0x44] sm:$0xf]
      %v3581 = vld [vmem:[%s3 + $0x48] sm:$0xf]
      %v3582 = vld [vmem:[%s3 + $0x4c] sm:$0xf]
      %v3583 = vld [vmem:[%s3 + $0x50] sm:$0xf]
      %v3584 = vld [vmem:[%s3 + $0x54] sm:$0xf]
      %v3585 = vld [vmem:[%s3 + $0x58] sm:$0xf]
      %v3586 = vld [vmem:[%s3 + $0x5c] sm:$0xf]
      %v3587 = vld [vmem:[%s3 + $0x60] sm:$0xf]
      %v3588 = vld [vmem:[%s3 + $0x64] sm:$0xf]
      %v3589 = vld [vmem:[%s3 + $0x68] sm:$0xf]
      %v3590 = vld [vmem:[%s3 + $0x6c] sm:$0xf]
      %v3591 = vld [vmem:[%s3 + $0x70] sm:$0xf]
      %v3592 = vld [vmem:[%s3 + $0x74] sm:$0xf]
      %v3593 = vld [vmem:[%s3 + $0x78] sm:$0xf]
      %v3594 = vld [vmem:[%s3 + $0x7c] sm:$0xf]
      %v3595 = vld [vmem:[%s3 + $0x80] sm:$0xf]
      %v3596 = vld [vmem:[%s3 + $0x84] sm:$0xf]
      %v3597 = vld [vmem:[%s3 + $0x88] sm:$0xf]
      %v3598 = vld [vmem:[%s3 + $0x8c] sm:$0xf]
      %v3599 = vld [vmem:[%s4] sm:$0x1]
      %v3601 = vlaneseq
      %v3602 = vshrl.u32 %v3601, 7
      %v3603 = vsub.s32 0, %v3602
      %v3604 = vrot.slane %v3599, %v3603
      %v3642 = vunpack.c.l.b16 %v3563
      %v3643 = vunpack.c.l.b16 %v3564
      %v3644 = vunpack.c.l.b16 %v3565
      %v3645 = vunpack.c.l.b16 %v3566
      %v3646 = vunpack.c.l.b16 %v3567
      %v3647 = vunpack.c.l.b16 %v3568
      %v3648 = vunpack.c.l.b16 %v3569
      %v3649 = vunpack.c.l.b16 %v3570
      %v3650 = vunpack.c.l.b16 %v3571
      %v3651 = vunpack.c.l.b16 %v3572
      %v3652 = vunpack.c.l.b16 %v3573
      %v3653 = vunpack.c.l.b16 %v3574
      %v3654 = vunpack.c.l.b16 %v3575
      %v3655 = vunpack.c.l.b16 %v3576
      %v3656 = vunpack.c.l.b16 %v3577
      %v3657 = vunpack.c.l.b16 %v3578
      %v3658 = vunpack.c.l.b16 %v3579
      %v3659 = vunpack.c.l.b16 %v3580
      %v3660 = vunpack.c.l.b16 %v3581
      %v3661 = vunpack.c.l.b16 %v3582
      %v3662 = vunpack.c.l.b16 %v3583
      %v3663 = vunpack.c.l.b16 %v3584
      %v3664 = vunpack.c.l.b16 %v3585
      %v3665 = vunpack.c.l.b16 %v3586
      %v3666 = vunpack.c.l.b16 %v3587
      %v3667 = vunpack.c.l.b16 %v3588
      %v3668 = vunpack.c.l.b16 %v3589
      %v3669 = vunpack.c.l.b16 %v3590
      %v3670 = vunpack.c.l.b16 %v3591
      %v3671 = vunpack.c.l.b16 %v3592
      %v3672 = vunpack.c.l.b16 %v3593
      %v3673 = vunpack.c.l.b16 %v3594
      %v3674 = vunpack.c.l.b16 %v3595
      %v3675 = vunpack.c.l.b16 %v3596
      %v3676 = vunpack.c.l.b16 %v3597
      %v3677 = vunpack.c.l.b16 %v3598
      %v3678 = vpack.c.b16 %v3643, %v3642
      %v3679 = vpack.c.b16 %v3645, %v3644
      %v3680 = vpack.c.b16 %v3647, %v3646
      %v3681 = vpack.c.b16 %v3649, %v3648
      %v3682 = vpack.c.b16 %v3651, %v3650
      %v3683 = vpack.c.b16 %v3653, %v3652
      %v3684 = vpack.c.b16 %v3655, %v3654
      %v3685 = vpack.c.b16 %v3657, %v3656
      %v3686 = vpack.c.b16 %v3659, %v3658
      %v3687 = vpack.c.b16 %v3661, %v3660
      %v3688 = vpack.c.b16 %v3663, %v3662
      %v3689 = vpack.c.b16 %v3665, %v3664
      %v3690 = vpack.c.b16 %v3667, %v3666
      %v3691 = vpack.c.b16 %v3669, %v3668
      %v3692 = vpack.c.b16 %v3671, %v3670
      %v3693 = vpack.c.b16 %v3673, %v3672
      %v3694 = vpack.c.b16 %v3675, %v3674
      %v3695 = vpack.c.b16 %v3677, %v3676
      %v3715 = vsel %vm1311, %v3518, 0
      %v3718 = vsel %vm1311, %v3521, 0
      %v3721 = vsel %vm1311, %v3524, 0
      %v3724 = vsel %vm1311, %v3527, 0
      %v3727 = vsel %vm1311, %v3530, 0
      %v3730 = vsel %vm1311, %v3533, 0
      %v3733 = vsel %vm1311, %v3536, 0
      %v3736 = vsel %vm1311, %v3539, 0
      %v3739 = vsel %vm1311, %v3542, 0
      %v3742 = vsel %vm1311, %v3545, 0
      %v3745 = vsel %vm1311, %v3548, 0
      %v3748 = vsel %vm1311, %v3551, 0
      %v3751 = vsel %vm1311, %v3554, 0
      %v3754 = vsel %vm1311, %v3557, 0
      %v3757 = vsel %vm1311, %v3560, 0
      %3759 = vmatprep.subr.bf16.mxu0 0
      %3760 = vmatpush1.bf16.msra.mxu0 %v3678
      %3761 = vmatprep.subr.bf16.mxu0 0
      %3762 = vmatpush1.bf16.msra.mxu0 %v3679
      %3763 = vmatprep.subr.bf16.mxu0 0
      %3764 = vmatpush1.bf16.msra.mxu0 %v3680
      %3765 = vmatprep.subr.bf16.mxu0 0
      %3766 = vmatpush1.bf16.msra.mxu0 %v3681
      %3767 = vmatprep.subr.bf16.mxu0 0
      %3768 = vmatpush1.bf16.msra.mxu0 %v3682
      %3769 = vmatprep.subr.bf16.mxu0 0
      %3770 = vmatpush1.bf16.msra.mxu0 %v3683
      %3771 = vmatprep.subr.bf16.mxu0 0
      %3772 = vmatpush1.bf16.msra.mxu0 %v3684
      %3773 = vmatprep.subr.bf16.mxu0 0
      %3774 = vmatpush1.bf16.msra.mxu0 %v3685
      %3775 = vmatprep.subr.bf16.mxu0 0
      %3776 = vmatpush1.bf16.msra.mxu0 %v3686
      %3777 = vmatprep.subr.bf16.mxu0 0
      %3778 = vmatpush1.bf16.msra.mxu0 %v3687
      %3779 = vmatprep.subr.bf16.mxu0 0
      %3780 = vmatpush1.bf16.msra.mxu0 %v3688
      %3781 = vmatprep.subr.bf16.mxu0 0
      %3782 = vmatpush1.bf16.msra.mxu0 %v3689
      %3783 = vmatprep.subr.bf16.mxu0 0
      %3784 = vmatpush1.bf16.msra.mxu0 %v3690
      %3785 = vmatprep.subr.bf16.mxu0 0
      %3786 = vmatpush1.bf16.msra.mxu0 %v3691
      %3787 = vmatprep.subr.bf16.mxu0 0
      %3788 = vmatpush1.bf16.msra.mxu0 %v3692
      %3789 = vmatprep.subr.bf16.mxu0 0
      %3790 = vmatpush1.bf16.msra.mxu0 %v3693
      %3791 = vmatprep.mubr.bf16.mxu0 %v3517
      %3792 = vmatmul.mubr.bf16.gmra.mrb[0].mxu0 %v3516
      %v3793 = vpop.f32.mrb[0].mxu0
      %v3794 = vadd.f32 %v3604, %v3793
      %v3795 = vpop.f32.mrb[0].mxu0
      %v3796 = vpop.f32.mrb[0].mxu0
      %v3797 = vadd.f32 %v3604, %v3796
      %v3798 = vpop.f32.mrb[0].mxu0
      %3799 = vmatprep.mubr.bf16.mxu0 %v3520
      %3800 = vmatmul.mubr.bf16.gmra.mrb[0].mxu0 %v3519
      %v3801 = vpop.f32.mrb[0].mxu0
      %v3802 = vadd.f32 %v3604, %v3801
      %v3803 = vpop.f32.mrb[0].mxu0
      %v3804 = vpop.f32.mrb[0].mxu0
      %v3805 = vadd.f32 %v3604, %v3804
      %v3806 = vpop.f32.mrb[0].mxu0
      %3807 = vmatprep.mubr.bf16.mxu0 %v3523
      %3808 = vmatmul.mubr.bf16.gmra.mrb[0].mxu0 %v3522
      %v3809 = vpop.f32.mrb[0].mxu0
      %v3810 = vadd.f32 %v3604, %v3809
      %v3811 = vpop.f32.mrb[0].mxu0
      %v3812 = vpop.f32.mrb[0].mxu0
      %v3813 = vadd.f32 %v3604, %v3812
      %v3814 = vpop.f32.mrb[0].mxu0
      %3815 = vmatprep.mubr.bf16.mxu0 %v3526
      %3816 = vmatmul.mubr.bf16.gmra.mrb[0].mxu0 %v3525
      %v3817 = vpop.f32.mrb[0].mxu0
      %v3818 = vadd.f32 %v3604, %v3817
      %v3819 = vpop.f32.mrb[0].mxu0
      %v3820 = vpop.f32.mrb[0].mxu0
      %v3821 = vadd.f32 %v3604, %v3820
      %v3822 = vpop.f32.mrb[0].mxu0
      %3823 = vmatprep.mubr.bf16.mxu0 %v3529
      %3824 = vmatmul.mubr.bf16.gmra.mrb[0].mxu0 %v3528
      %v3825 = vpop.f32.mrb[0].mxu0
      %v3826 = vadd.f32 %v3604, %v3825
      %v3827 = vpop.f32.mrb[0].mxu0
      %v3828 = vpop.f32.mrb[0].mxu0
      %v3829 = vadd.f32 %v3604, %v3828
      %v3830 = vpop.f32.mrb[0].mxu0
      %3831 = vmatprep.mubr.bf16.mxu0 %v3532
      %3832 = vmatmul.mubr.bf16.gmra.mrb[0].mxu0 %v3531
      %v3833 = vpop.f32.mrb[0].mxu0
      %v3834 = vadd.f32 %v3604, %v3833
      %v3835 = vpop.f32.mrb[0].mxu0
      %v3836 = vpop.f32.mrb[0].mxu0
      %v3837 = vadd.f32 %v3604, %v3836
      %v3838 = vpop.f32.mrb[0].mxu0
      %3839 = vmatprep.mubr.bf16.mxu0 %v3535
      %3840 = vmatmul.mubr.bf16.gmra.mrb[0].mxu0 %v3534
      %v3841 = vpop.f32.mrb[0].mxu0
      %v3842 = vadd.f32 %v3604, %v3841
      %v3843 = vpop.f32.mrb[0].mxu0
      %v3844 = vpop.f32.mrb[0].mxu0
      %v3845 = vadd.f32 %v3604, %v3844
      %v3846 = vpop.f32.mrb[0].mxu0
      %3847 = vmatprep.mubr.bf16.mxu0 %v3538
      %3848 = vmatmul.mubr.bf16.gmra.mrb[0].mxu0 %v3537
      %v3849 = vpop.f32.mrb[0].mxu0
      %v3850 = vadd.f32 %v3604, %v3849
      %v3851 = vpop.f32.mrb[0].mxu0
      %v3852 = vpop.f32.mrb[0].mxu0
      %v3853 = vadd.f32 %v3604, %v3852
      %v3854 = vpop.f32.mrb[0].mxu0
      %3855 = vmatprep.mubr.bf16.mxu0 %v3541
      %3856 = vmatmul.mubr.bf16.gmra.mrb[0].mxu0 %v3540
      %v3857 = vpop.f32.mrb[0].mxu0
      %v3858 = vadd.f32 %v3604, %v3857
      %v3859 = vpop.f32.mrb[0].mxu0
      %v3860 = vpop.f32.mrb[0].mxu0
      %v3861 = vadd.f32 %v3604, %v3860
      %v3862 = vpop.f32.mrb[0].mxu0
      %3863 = vmatprep.mubr.bf16.mxu0 %v3544
      %3864 = vmatmul.mubr.bf16.gmra.mrb[0].mxu0 %v3543
      %v3865 = vpop.f32.mrb[0].mxu0
      %v3866 = vadd.f32 %v3604, %v3865
      %v3867 = vpop.f32.mrb[0].mxu0
      %v3868 = vpop.f32.mrb[0].mxu0
      %v3869 = vadd.f32 %v3604, %v3868
      %v3870 = vpop.f32.mrb[0].mxu0
      %3871 = vmatprep.mubr.bf16.mxu0 %v3547
      %3872 = vmatmul.mubr.bf16.gmra.mrb[0].mxu0 %v3546
      %v3873 = vpop.f32.mrb[0].mxu0
      %v3874 = vadd.f32 %v3604, %v3873
      %v3875 = vpop.f32.mrb[0].mxu0
      %v3876 = vpop.f32.mrb[0].mxu0
      %v3877 = vadd.f32 %v3604, %v3876
      %v3878 = vpop.f32.mrb[0].mxu0
      %3879 = vmatprep.mubr.bf16.mxu0 %v3550
      %3880 = vmatmul.mubr.bf16.gmra.mrb[0].mxu0 %v3549
      %v3881 = vpop.f32.mrb[0].mxu0
      %v3882 = vadd.f32 %v3604, %v3881
      %v3883 = vpop.f32.mrb[0].mxu0
      %v3884 = vpop.f32.mrb[0].mxu0
      %v3885 = vadd.f32 %v3604, %v3884
      %v3886 = vpop.f32.mrb[0].mxu0
      %3887 = vmatprep.mubr.bf16.mxu0 %v3553
      %3888 = vmatmul.mubr.bf16.gmra.mrb[0].mxu0 %v3552
      %v3889 = vpop.f32.mrb[0].mxu0
      %v3890 = vadd.f32 %v3604, %v3889
      %v3891 = vpop.f32.mrb[0].mxu0
      %v3892 = vpop.f32.mrb[0].mxu0
      %v3893 = vadd.f32 %v3604, %v3892
      %v3894 = vpop.f32.mrb[0].mxu0
      %3895 = vmatprep.mubr.bf16.mxu0 %v3556
      %3896 = vmatmul.mubr.bf16.gmra.mrb[0].mxu0 %v3555
      %v3897 = vpop.f32.mrb[0].mxu0
      %v3898 = vadd.f32 %v3604, %v3897
      %v3899 = vpop.f32.mrb[0].mxu0
      %v3900 = vpop.f32.mrb[0].mxu0
      %v3901 = vadd.f32 %v3604, %v3900
      %v3902 = vpop.f32.mrb[0].mxu0
      %3903 = vmatprep.mubr.bf16.mxu0 %v3559
      %3904 = vmatmul.mubr.bf16.gmra.mrb[0].mxu0 %v3558
      %v3905 = vpop.f32.mrb[0].mxu0
      %v3906 = vadd.f32 %v3604, %v3905
      %v3907 = vpop.f32.mrb[0].mxu0
      %v3908 = vpop.f32.mrb[0].mxu0
      %v3909 = vadd.f32 %v3604, %v3908
      %v3910 = vpop.f32.mrb[0].mxu0
      %3911 = vmatprep.mubr.bf16.mxu0 %v3562
      %3912 = vmatmul.mubr.bf16.gmra.mrb[0].mxu0 %v3561
      %v3913 = vpop.f32.mrb[0].mxu0
      %v3914 = vadd.f32 %v3604, %v3913
      %v3915 = vpop.f32.mrb[0].mxu0
      %v3916 = vpop.f32.mrb[0].mxu0
      %v3917 = vadd.f32 %v3604, %v3916
      %v3918 = vpop.f32.mrb[0].mxu0
      %3919 = vdwg.mxu0
      %3920 = vmatprep.subr.bf16.mxu0 0
      %3921 = vmatpush1.bf16.msra.mxu0 %v3694
      %3922 = vmatprep.subr.bf16.mxu0 0
      %3923 = vmatpush1.bf16.msra.mxu0 %v3695
      %3924 = vmatprep.subr.bf16.mxu0 0
      %3925 = vmatpush1.bf16.msra.mxu0 0
      %3926 = vmatprep.subr.bf16.mxu0 0
      %3927 = vmatpush1.bf16.msra.mxu0 0
      %3928 = vmatprep.subr.bf16.mxu0 0
      %3929 = vmatpush1.bf16.msra.mxu0 0
      %3930 = vmatprep.subr.bf16.mxu0 0
      %3931 = vmatpush1.bf16.msra.mxu0 0
      %3932 = vmatprep.subr.bf16.mxu0 0
      %3933 = vmatpush1.bf16.msra.mxu0 0
      %3934 = vmatprep.subr.bf16.mxu0 0
      %3935 = vmatpush1.bf16.msra.mxu0 0
      %3936 = vmatprep.subr.bf16.mxu0 0
      %3937 = vmatpush1.bf16.msra.mxu0 0
      %3938 = vmatprep.subr.bf16.mxu0 0
      %3939 = vmatpush1.bf16.msra.mxu0 0
      %3940 = vmatprep.subr.bf16.mxu0 0
      %3941 = vmatpush1.bf16.msra.mxu0 0
      %3942 = vmatprep.subr.bf16.mxu0 0
      %3943 = vmatpush1.bf16.msra.mxu0 0
      %3944 = vmatprep.subr.bf16.mxu0 0
      %3945 = vmatpush1.bf16.msra.mxu0 0
      %3946 = vmatprep.subr.bf16.mxu0 0
      %3947 = vmatpush1.bf16.msra.mxu0 0
      %3948 = vmatprep.subr.bf16.mxu0 0
      %3949 = vmatpush1.bf16.msra.mxu0 0
      %3950 = vmatprep.subr.bf16.mxu0 0
      %3951 = vmatpush1.bf16.msra.mxu0 0
      %3952 = vmatprep.mubr.bf16.mxu0 0
      %3953 = vmatmul.mubr.bf16.gmra.mrb[0].mxu0 %v3715
      %v3954 = vpop.f32.mrb[0].mxu0
      %v3955 = vadd.f32 %v3794, %v3954
      %v3956 = vpop.f32.mrb[0].mxu0
      %v3957 = vpop.f32.mrb[0].mxu0
      %v3958 = vadd.f32 %v3797, %v3957
      %v3959 = vpop.f32.mrb[0].mxu0
      %3960 = vmatprep.mubr.bf16.mxu0 0
      %3961 = vmatmul.mubr.bf16.gmra.mrb[0].mxu0 %v3718
      %v3962 = vpop.f32.mrb[0].mxu0
      %v3963 = vadd.f32 %v3802, %v3962
      %v3964 = vpop.f32.mrb[0].mxu0
      %v3965 = vpop.f32.mrb[0].mxu0
      %v3966 = vadd.f32 %v3805, %v3965
      %v3967 = vpop.f32.mrb[0].mxu0
      %3968 = vmatprep.mubr.bf16.mxu0 0
      %3969 = vmatmul.mubr.bf16.gmra.mrb[0].mxu0 %v3721
      %v3970 = vpop.f32.mrb[0].mxu0
      %v3971 = vadd.f32 %v3810, %v3970
      %v3972 = vpop.f32.mrb[0].mxu0
      %v3973 = vpop.f32.mrb[0].mxu0
      %v3974 = vadd.f32 %v3813, %v3973
      %v3975 = vpop.f32.mrb[0].mxu0
      %3976 = vmatprep.mubr.bf16.mxu0 0
      %3977 = vmatmul.mubr.bf16.gmra.mrb[0].mxu0 %v3724
      %v3978 = vpop.f32.mrb[0].mxu0
      %v3979 = vadd.f32 %v3818, %v3978
      %v3980 = vpop.f32.mrb[0].mxu0
      %v3981 = vpop.f32.mrb[0].mxu0
      %v3982 = vadd.f32 %v3821, %v3981
      %v3983 = vpop.f32.mrb[0].mxu0
      %3984 = vmatprep.mubr.bf16.mxu0 0
      %3985 = vmatmul.mubr.bf16.gmra.mrb[0].mxu0 %v3727
      %v3986 = vpop.f32.mrb[0].mxu0
      %v3987 = vadd.f32 %v3826, %v3986
      %v3988 = vpop.f32.mrb[0].mxu0
      %v3989 = vpop.f32.mrb[0].mxu0
      %v3990 = vadd.f32 %v3829, %v3989
      %v3991 = vpop.f32.mrb[0].mxu0
      %3992 = vmatprep.mubr.bf16.mxu0 0
      %3993 = vmatmul.mubr.bf16.gmra.mrb[0].mxu0 %v3730
      %v3994 = vpop.f32.mrb[0].mxu0
      %v3995 = vadd.f32 %v3834, %v3994
      %v3996 = vpop.f32.mrb[0].mxu0
      %v3997 = vpop.f32.mrb[0].mxu0
      %v3998 = vadd.f32 %v3837, %v3997
      %v3999 = vpop.f32.mrb[0].mxu0
      %4000 = vmatprep.mubr.bf16.mxu0 0
      %4001 = vmatmul.mubr.bf16.gmra.mrb[0].mxu0 %v3733
      %v4002 = vpop.f32.mrb[0].mxu0
      %v4003 = vadd.f32 %v3842, %v4002
      %v4004 = vpop.f32.mrb[0].mxu0
      %v4005 = vpop.f32.mrb[0].mxu0
      %v4006 = vadd.f32 %v3845, %v4005
      %v4007 = vpop.f32.mrb[0].mxu0
      %4008 = vmatprep.mubr.bf16.mxu0 0
      %4009 = vmatmul.mubr.bf16.gmra.mrb[0].mxu0 %v3736
      %v4010 = vpop.f32.mrb[0].mxu0
      %v4011 = vadd.f32 %v3850, %v4010
      %v4012 = vpop.f32.mrb[0].mxu0
      %v4013 = vpop.f32.mrb[0].mxu0
      %v4014 = vadd.f32 %v3853, %v4013
      %v4015 = vpop.f32.mrb[0].mxu0
      %4016 = vmatprep.mubr.bf16.mxu0 0
      %4017 = vmatmul.mubr.bf16.gmra.mrb[0].mxu0 %v3739
      %v4018 = vpop.f32.mrb[0].mxu0
      %v4019 = vadd.f32 %v3858, %v4018
      %v4020 = vpop.f32.mrb[0].mxu0
      %v4021 = vpop.f32.mrb[0].mxu0
      %v4022 = vadd.f32 %v3861, %v4021
      %v4023 = vpop.f32.mrb[0].mxu0
      %4024 = vmatprep.mubr.bf16.mxu0 0
      %4025 = vmatmul.mubr.bf16.gmra.mrb[0].mxu0 %v3742
      %v4026 = vpop.f32.mrb[0].mxu0
      %v4027 = vadd.f32 %v3866, %v4026
      %v4028 = vpop.f32.mrb[0].mxu0
      %v4029 = vpop.f32.mrb[0].mxu0
      %v4030 = vadd.f32 %v3869, %v4029
      %v4031 = vpop.f32.mrb[0].mxu0
      %4032 = vmatprep.mubr.bf16.mxu0 0
      %4033 = vmatmul.mubr.bf16.gmra.mrb[0].mxu0 %v3745
      %v4034 = vpop.f32.mrb[0].mxu0
      %v4035 = vadd.f32 %v3874, %v4034
      %v4036 = vpop.f32.mrb[0].mxu0
      %v4037 = vpop.f32.mrb[0].mxu0
      %v4038 = vadd.f32 %v3877, %v4037
      %v4039 = vpop.f32.mrb[0].mxu0
      %4040 = vmatprep.mubr.bf16.mxu0 0
      %4041 = vmatmul.mubr.bf16.gmra.mrb[0].mxu0 %v3748
      %v4042 = vpop.f32.mrb[0].mxu0
      %v4043 = vadd.f32 %v3882, %v4042
      %v4044 = vpop.f32.mrb[0].mxu0
      %v4045 = vpop.f32.mrb[0].mxu0
      %v4046 = vadd.f32 %v3885, %v4045
      %v4047 = vpop.f32.mrb[0].mxu0
      %4048 = vmatprep.mubr.bf16.mxu0 0
      %4049 = vmatmul.mubr.bf16.gmra.mrb[0].mxu0 %v3751
      %v4050 = vpop.f32.mrb[0].mxu0
      %v4051 = vadd.f32 %v3890, %v4050
      %v4052 = vpop.f32.mrb[0].mxu0
      %v4053 = vpop.f32.mrb[0].mxu0
      %v4054 = vadd.f32 %v3893, %v4053
      %v4055 = vpop.f32.mrb[0].mxu0
      %4056 = vmatprep.mubr.bf16.mxu0 0
      %4057 = vmatmul.mubr.bf16.gmra.mrb[0].mxu0 %v3754
      %v4058 = vpop.f32.mrb[0].mxu0
      %v4059 = vadd.f32 %v3898, %v4058
      %v4060 = vpop.f32.mrb[0].mxu0
      %v4061 = vpop.f32.mrb[0].mxu0
      %v4062 = vadd.f32 %v3901, %v4061
      %v4063 = vpop.f32.mrb[0].mxu0
      %4064 = vmatprep.mubr.bf16.mxu0 0
      %4065 = vmatmul.mubr.bf16.gmra.mrb[0].mxu0 %v3757
      %v4066 = vpop.f32.mrb[0].mxu0
      %v4067 = vadd.f32 %v3906, %v4066
      %v4068 = vpop.f32.mrb[0].mxu0
      %v4069 = vpop.f32.mrb[0].mxu0
      %v4070 = vadd.f32 %v3909, %v4069
      %v4071 = vpop.f32.mrb[0].mxu0
      %4072 = vmatprep.mubr.bf16.mxu0 0
      %4073 = vmatmul.mubr.bf16.gmra.mrb[0].mxu0 %v1751
      %v4074 = vpop.f32.mrb[0].mxu0
      %v4075 = vadd.f32 %v3914, %v4074
      %v4076 = vpop.f32.mrb[0].mxu0
      %v4077 = vpop.f32.mrb[0].mxu0
      %v4078 = vadd.f32 %v3917, %v4077
      %v4079 = vpop.f32.mrb[0].mxu0
      %4080 = vdwg.mxu0
      %v4081 = vmul.f32 %v3955, 0.5
      %v4082 = vmul.f32 %v3958, 0.5
      %v4083 = vmul.f32 %v3963, 0.5
      %v4084 = vmul.f32 %v3966, 0.5
      %v4085 = vmul.f32 %v3971, 0.5
      %v4086 = vmul.f32 %v3974, 0.5
      %v4087 = vmul.f32 %v3979, 0.5
      %v4088 = vmul.f32 %v3982, 0.5
      %v4089 = vmul.f32 %v3987, 0.5
      %v4090 = vmul.f32 %v3990, 0.5
      %v4091 = vmul.f32 %v3995, 0.5
      %v4092 = vmul.f32 %v3998, 0.5
      %v4093 = vmul.f32 %v4003, 0.5
      %v4094 = vmul.f32 %v4006, 0.5
      %v4095 = vmul.f32 %v4011, 0.5
      %v4096 = vmul.f32 %v4014, 0.5
      %v4097 = vmul.f32 %v4019, 0.5
      %v4098 = vmul.f32 %v4022, 0.5
      %v4099 = vmul.f32 %v4027, 0.5
      %v4100 = vmul.f32 %v4030, 0.5
      %v4101 = vmul.f32 %v4035, 0.5
      %v4102 = vmul.f32 %v4038, 0.5
      %v4103 = vmul.f32 %v4043, 0.5
      %v4104 = vmul.f32 %v4046, 0.5
      %v4105 = vmul.f32 %v4051, 0.5
      %v4106 = vmul.f32 %v4054, 0.5
      %v4107 = vmul.f32 %v4059, 0.5
      %v4108 = vmul.f32 %v4062, 0.5
      %v4109 = vmul.f32 %v4067, 0.5
      %v4110 = vmul.f32 %v4070, 0.5
      %v4111 = vmul.f32 %v4075, 0.5
      %v4112 = vmul.f32 %v4078, 0.5
      %v4113 = vmul.f32 %v3955, 0.044715
      %v4114 = vmul.f32 %v3958, 0.044715
      %v4115 = vmul.f32 %v3963, 0.044715
      %v4116 = vmul.f32 %v3966, 0.044715
      %v4117 = vmul.f32 %v3971, 0.044715
      %v4118 = vmul.f32 %v3974, 0.044715
      %v4119 = vmul.f32 %v3979, 0.044715
      %v4120 = vmul.f32 %v3982, 0.044715
      %v4121 = vmul.f32 %v3987, 0.044715
      %v4122 = vmul.f32 %v3990, 0.044715
      %v4123 = vmul.f32 %v3995, 0.044715
      %v4124 = vmul.f32 %v3998, 0.044715
      %v4125 = vmul.f32 %v4003, 0.044715
      %v4126 = vmul.f32 %v4006, 0.044715
      %v4127 = vmul.f32 %v4011, 0.044715
      %v4128 = vmul.f32 %v4014, 0.044715
      %v4129 = vmul.f32 %v4019, 0.044715
      %v4130 = vmul.f32 %v4022, 0.044715
      %v4131 = vmul.f32 %v4027, 0.044715
      %v4132 = vmul.f32 %v4030, 0.044715
      %v4133 = vmul.f32 %v4035, 0.044715
      %v4134 = vmul.f32 %v4038, 0.044715
      %v4135 = vmul.f32 %v4043, 0.044715
      %v4136 = vmul.f32 %v4046, 0.044715
      %v4137 = vmul.f32 %v4051, 0.044715
      %v4138 = vmul.f32 %v4054, 0.044715
      %v4139 = vmul.f32 %v4059, 0.044715
      %v4140 = vmul.f32 %v4062, 0.044715
      %v4141 = vmul.f32 %v4067, 0.044715
      %v4142 = vmul.f32 %v4070, 0.044715
      %v4143 = vmul.f32 %v4075, 0.044715
      %v4144 = vmul.f32 %v4078, 0.044715
      %v4145 = vmul.f32 %v4113, %v3955
      %v4146 = vmul.f32 %v4114, %v3958
      %v4147 = vmul.f32 %v4115, %v3963
      %v4148 = vmul.f32 %v4116, %v3966
      %v4149 = vmul.f32 %v4117, %v3971
      %v4150 = vmul.f32 %v4118, %v3974
      %v4151 = vmul.f32 %v4119, %v3979
      %v4152 = vmul.f32 %v4120, %v3982
      %v4153 = vmul.f32 %v4121, %v3987
      %v4154 = vmul.f32 %v4122, %v3990
      %v4155 = vmul.f32 %v4123, %v3995
      %v4156 = vmul.f32 %v4124, %v3998
      %v4157 = vmul.f32 %v4125, %v4003
      %v4158 = vmul.f32 %v4126, %v4006
      %v4159 = vmul.f32 %v4127, %v4011
      %v4160 = vmul.f32 %v4128, %v4014
      %v4161 = vmul.f32 %v4129, %v4019
      %v4162 = vmul.f32 %v4130, %v4022
      %v4163 = vmul.f32 %v4131, %v4027
      %v4164 = vmul.f32 %v4132, %v4030
      %v4165 = vmul.f32 %v4133, %v4035
      %v4166 = vmul.f32 %v4134, %v4038
      %v4167 = vmul.f32 %v4135, %v4043
      %v4168 = vmul.f32 %v4136, %v4046
      %v4169 = vmul.f32 %v4137, %v4051
      %v4170 = vmul.f32 %v4138, %v4054
      %v4171 = vmul.f32 %v4139, %v4059
      %v4172 = vmul.f32 %v4140, %v4062
      %v4173 = vmul.f32 %v4141, %v4067
      %v4174 = vmul.f32 %v4142, %v4070
      %v4175 = vmul.f32 %v4143, %v4075
      %v4176 = vmul.f32 %v4144, %v4078
      %v4177 = vmul.f32 %v4145, %v3955
      %v4178 = vmul.f32 %v4146, %v3958
      %v4179 = vmul.f32 %v4147, %v3963
      %v4180 = vmul.f32 %v4148, %v3966
      %v4181 = vmul.f32 %v4149, %v3971
      %v4182 = vmul.f32 %v4150, %v3974
      %v4183 = vmul.f32 %v4151, %v3979
      %v4184 = vmul.f32 %v4152, %v3982
      %v4185 = vmul.f32 %v4153, %v3987
      %v4186 = vmul.f32 %v4154, %v3990
      %v4187 = vmul.f32 %v4155, %v3995
      %v4188 = vmul.f32 %v4156, %v3998
      %v4189 = vmul.f32 %v4157, %v4003
      %v4190 = vmul.f32 %v4158, %v4006
      %v4191 = vmul.f32 %v4159, %v4011
      %v4192 = vmul.f32 %v4160, %v4014
      %v4193 = vmul.f32 %v4161, %v4019
      %v4194 = vmul.f32 %v4162, %v4022
      %v4195 = vmul.f32 %v4163, %v4027
      %v4196 = vmul.f32 %v4164, %v4030
      %v4197 = vmul.f32 %v4165, %v4035
      %v4198 = vmul.f32 %v4166, %v4038
      %v4199 = vmul.f32 %v4167, %v4043
      %v4200 = vmul.f32 %v4168, %v4046
      %v4201 = vmul.f32 %v4169, %v4051
      %v4202 = vmul.f32 %v4170, %v4054
      %v4203 = vmul.f32 %v4171, %v4059
      %v4204 = vmul.f32 %v4172, %v4062
      %v4205 = vmul.f32 %v4173, %v4067
      %v4206 = vmul.f32 %v4174, %v4070
      %v4207 = vmul.f32 %v4175, %v4075
      %v4208 = vmul.f32 %v4176, %v4078
      %v4209 = vadd.f32 %v3955, %v4177
      %v4210 = vadd.f32 %v3958, %v4178
      %v4211 = vadd.f32 %v3963, %v4179
      %v4212 = vadd.f32 %v3966, %v4180
      %v4213 = vadd.f32 %v3971, %v4181
      %v4214 = vadd.f32 %v3974, %v4182
      %v4215 = vadd.f32 %v3979, %v4183
      %v4216 = vadd.f32 %v3982, %v4184
      %v4217 = vadd.f32 %v3987, %v4185
      %v4218 = vadd.f32 %v3990, %v4186
      %v4219 = vadd.f32 %v3995, %v4187
      %v4220 = vadd.f32 %v3998, %v4188
      %v4221 = vadd.f32 %v4003, %v4189
      %v4222 = vadd.f32 %v4006, %v4190
      %v4223 = vadd.f32 %v4011, %v4191
      %v4224 = vadd.f32 %v4014, %v4192
      %v4225 = vadd.f32 %v4019, %v4193
      %v4226 = vadd.f32 %v4022, %v4194
      %v4227 = vadd.f32 %v4027, %v4195
      %v4228 = vadd.f32 %v4030, %v4196
      %v4229 = vadd.f32 %v4035, %v4197
      %v4230 = vadd.f32 %v4038, %v4198
      %v4231 = vadd.f32 %v4043, %v4199
      %v4232 = vadd.f32 %v4046, %v4200
      %v4233 = vadd.f32 %v4051, %v4201
      %v4234 = vadd.f32 %v4054, %v4202
      %v4235 = vadd.f32 %v4059, %v4203
      %v4236 = vadd.f32 %v4062, %v4204
      %v4237 = vadd.f32 %v4067, %v4205
      %v4238 = vadd.f32 %v4070, %v4206
      %v4239 = vadd.f32 %v4075, %v4207
      %v4240 = vadd.f32 %v4078, %v4208
      %v4241 = vmul.f32 %v4209, 0.7978846
      %v4242 = vmul.f32 %v4210, 0.7978846
      %v4243 = vmul.f32 %v4211, 0.7978846
      %v4244 = vmul.f32 %v4212, 0.7978846
      %v4245 = vmul.f32 %v4213, 0.7978846
      %v4246 = vmul.f32 %v4214, 0.7978846
      %v4247 = vmul.f32 %v4215, 0.7978846
      %v4248 = vmul.f32 %v4216, 0.7978846
      %v4249 = vmul.f32 %v4217, 0.7978846
      %v4250 = vmul.f32 %v4218, 0.7978846
      %v4251 = vmul.f32 %v4219, 0.7978846
      %v4252 = vmul.f32 %v4220, 0.7978846
      %v4253 = vmul.f32 %v4221, 0.7978846
      %v4254 = vmul.f32 %v4222, 0.7978846
      %v4255 = vmul.f32 %v4223, 0.7978846
      %v4256 = vmul.f32 %v4224, 0.7978846
      %v4257 = vmul.f32 %v4225, 0.7978846
      %v4258 = vmul.f32 %v4226, 0.7978846
      %v4259 = vmul.f32 %v4227, 0.7978846
      %v4260 = vmul.f32 %v4228, 0.7978846
      %v4261 = vmul.f32 %v4229, 0.7978846
      %v4262 = vmul.f32 %v4230, 0.7978846
      %v4263 = vmul.f32 %v4231, 0.7978846
      %v4264 = vmul.f32 %v4232, 0.7978846
      %v4265 = vmul.f32 %v4233, 0.7978846
      %v4266 = vmul.f32 %v4234, 0.7978846
      %v4267 = vmul.f32 %v4235, 0.7978846
      %v4268 = vmul.f32 %v4236, 0.7978846
      %v4269 = vmul.f32 %v4237, 0.7978846
      %v4270 = vmul.f32 %v4238, 0.7978846
      %v4271 = vmul.f32 %v4239, 0.7978846
      %v4272 = vmul.f32 %v4240, 0.7978846
      %v4273 = vtanh.pop %v4241
      %v4274 = vtanh.pop %v4242
      %v4275 = vtanh.pop %v4243
      %v4276 = vtanh.pop %v4244
      %v4277 = vtanh.pop %v4245
      %v4278 = vtanh.pop %v4246
      %v4279 = vtanh.pop %v4247
      %v4280 = vtanh.pop %v4248
      %v4281 = vtanh.pop %v4249
      %v4282 = vtanh.pop %v4250
      %v4283 = vtanh.pop %v4251
      %v4284 = vtanh.pop %v4252
      %v4285 = vtanh.pop %v4253
      %v4286 = vtanh.pop %v4254
      %v4287 = vtanh.pop %v4255
      %v4288 = vtanh.pop %v4256
      %v4289 = vtanh.pop %v4257
      %v4290 = vtanh.pop %v4258
      %v4291 = vtanh.pop %v4259
      %v4292 = vtanh.pop %v4260
      %v4293 = vtanh.pop %v4261
      %v4294 = vtanh.pop %v4262
      %v4295 = vtanh.pop %v4263
      %v4296 = vtanh.pop %v4264
      %v4297 = vtanh.pop %v4265
      %v4298 = vtanh.pop %v4266
      %v4299 = vtanh.pop %v4267
      %v4300 = vtanh.pop %v4268
      %v4301 = vtanh.pop %v4269
      %v4302 = vtanh.pop %v4270
      %v4303 = vtanh.pop %v4271
      %v4304 = vtanh.pop %v4272
      %v4305 = vadd.f32 %v4273, 1.0
      %v4306 = vadd.f32 %v4274, 1.0
      %v4307 = vadd.f32 %v4275, 1.0
      %v4308 = vadd.f32 %v4276, 1.0
      %v4309 = vadd.f32 %v4277, 1.0
      %v4310 = vadd.f32 %v4278, 1.0
      %v4311 = vadd.f32 %v4279, 1.0
      %v4312 = vadd.f32 %v4280, 1.0
      %v4313 = vadd.f32 %v4281, 1.0
      %v4314 = vadd.f32 %v4282, 1.0
      %v4315 = vadd.f32 %v4283, 1.0
      %v4316 = vadd.f32 %v4284, 1.0
      %v4317 = vadd.f32 %v4285, 1.0
      %v4318 = vadd.f32 %v4286, 1.0
      %v4319 = vadd.f32 %v4287, 1.0
      %v4320 = vadd.f32 %v4288, 1.0
      %v4321 = vadd.f32 %v4289, 1.0
      %v4322 = vadd.f32 %v4290, 1.0
      %v4323 = vadd.f32 %v4291, 1.0
      %v4324 = vadd.f32 %v4292, 1.0
      %v4325 = vadd.f32 %v4293, 1.0
      %v4326 = vadd.f32 %v4294, 1.0
      %v4327 = vadd.f32 %v4295, 1.0
      %v4328 = vadd.f32 %v4296, 1.0
      %v4329 = vadd.f32 %v4297, 1.0
      %v4330 = vadd.f32 %v4298, 1.0
      %v4331 = vadd.f32 %v4299, 1.0
      %v4332 = vadd.f32 %v4300, 1.0
      %v4333 = vadd.f32 %v4301, 1.0
      %v4334 = vadd.f32 %v4302, 1.0
      %v4335 = vadd.f32 %v4303, 1.0
      %v4336 = vadd.f32 %v4304, 1.0
      %v4337 = vmul.f32 %v4081, %v4305
      %v4338 = vmul.f32 %v4082, %v4306
      %v4339 = vmul.f32 %v4083, %v4307
      %v4340 = vmul.f32 %v4084, %v4308
      %v4341 = vmul.f32 %v4085, %v4309
      %v4342 = vmul.f32 %v4086, %v4310
      %v4343 = vmul.f32 %v4087, %v4311
      %v4344 = vmul.f32 %v4088, %v4312
      %v4345 = vmul.f32 %v4089, %v4313
      %v4346 = vmul.f32 %v4090, %v4314
      %v4347 = vmul.f32 %v4091, %v4315
      %v4348 = vmul.f32 %v4092, %v4316
      %v4349 = vmul.f32 %v4093, %v4317
      %v4350 = vmul.f32 %v4094, %v4318
      %v4351 = vmul.f32 %v4095, %v4319
      %v4352 = vmul.f32 %v4096, %v4320
      %v4353 = vmul.f32 %v4097, %v4321
      %v4354 = vmul.f32 %v4098, %v4322
      %v4355 = vmul.f32 %v4099, %v4323
      %v4356 = vmul.f32 %v4100, %v4324
      %v4357 = vmul.f32 %v4101, %v4325
      %v4358 = vmul.f32 %v4102, %v4326
      %v4359 = vmul.f32 %v4103, %v4327
      %v4360 = vmul.f32 %v4104, %v4328
      %v4361 = vmul.f32 %v4105, %v4329
      %v4362 = vmul.f32 %v4106, %v4330
      %v4363 = vmul.f32 %v4107, %v4331
      %v4364 = vmul.f32 %v4108, %v4332
      %v4365 = vmul.f32 %v4109, %v4333
      %v4366 = vmul.f32 %v4110, %v4334
      %v4367 = vmul.f32 %v4111, %v4335
      %v4368 = vmul.f32 %v4112, %v4336
      %4369 = vxpose.xlu0.b32.start [1/16] %v4337, 128
      %4370 = vxpose.xlu0.b32.cont [2/16] %v4338, 128
      %4371 = vxpose.xlu0.b32.cont [3/16] %v4339, 128
      %4372 = vxpose.xlu0.b32.cont [4/16] %v4340, 128
      %4373 = vxpose.xlu0.b32.cont [5/16] %v4341, 128
      %4374 = vxpose.xlu0.b32.cont [6/16] %v4342, 128
      %4375 = vxpose.xlu0.b32.cont [7/16] %v4343, 128
      %4376 = vxpose.xlu0.b32.cont [8/16] %v4344, 128
      %4377 = vxpose.xlu0.b32.cont [9/16] %v4345, 128
      %4378 = vxpose.xlu0.b32.cont [10/16] %v4346, 128
      %4379 = vxpose.xlu0.b32.cont [11/16] %v4347, 128
      %4380 = vxpose.xlu0.b32.cont [12/16] %v4348, 128
      %4381 = vxpose.xlu0.b32.cont [13/16] %v4349, 128
      %4382 = vxpose.xlu0.b32.cont [14/16] %v4350, 128
      %4383 = vxpose.xlu0.b32.cont [15/16] %v4351, 128
      %4384 = vxpose.xlu0.b32.end [16/16] %v4352, 128
      %v4385 = vpop.trf.xlu0
      %v4386 = vpop.trf.xlu0
      %v4387 = vpop.trf.xlu0
      %v4388 = vpop.trf.xlu0
      %v4389 = vpop.trf.xlu0
      %v4390 = vpop.trf.xlu0
      %v4391 = vpop.trf.xlu0
      %v4392 = vpop.trf.xlu0
      %v4393 = vpop.trf.xlu0
      %v4394 = vpop.trf.xlu0
      %v4395 = vpop.trf.xlu0
      %v4396 = vpop.trf.xlu0
      %v4397 = vpop.trf.xlu0
      %v4398 = vpop.trf.xlu0
      %v4399 = vpop.trf.xlu0
      %v4400 = vpop.trf.xlu0
      %4401 = vxpose.xlu0.b32.start [1/16] %v4353, 128
      %4402 = vxpose.xlu0.b32.cont [2/16] %v4354, 128
      %4403 = vxpose.xlu0.b32.cont [3/16] %v4355, 128
      %4404 = vxpose.xlu0.b32.cont [4/16] %v4356, 128
      %4405 = vxpose.xlu0.b32.cont [5/16] %v4357, 128
      %4406 = vxpose.xlu0.b32.cont [6/16] %v4358, 128
      %4407 = vxpose.xlu0.b32.cont [7/16] %v4359, 128
      %4408 = vxpose.xlu0.b32.cont [8/16] %v4360, 128
      %4409 = vxpose.xlu0.b32.cont [9/16] %v4361, 128
      %4410 = vxpose.xlu0.b32.cont [10/16] %v4362, 128
      %4411 = vxpose.xlu0.b32.cont [11/16] %v4363, 128
      %4412 = vxpose.xlu0.b32.cont [12/16] %v4364, 128
      %4413 = vxpose.xlu0.b32.cont [13/16] %v4365, 128
      %4414 = vxpose.xlu0.b32.cont [14/16] %v4366, 128
      %4415 = vxpose.xlu0.b32.cont [15/16] %v4367, 128
      %4416 = vxpose.xlu0.b32.end [16/16] %v4368, 128
      %v4417 = vpop.trf.xlu0
      %v4418 = vpop.trf.xlu0
      %v4419 = vpop.trf.xlu0
      %v4420 = vpop.trf.xlu0
      %v4421 = vpop.trf.xlu0
      %v4422 = vpop.trf.xlu0
      %v4423 = vpop.trf.xlu0
      %v4424 = vpop.trf.xlu0
      %v4425 = vpop.trf.xlu0
      %v4426 = vpop.trf.xlu0
      %v4427 = vpop.trf.xlu0
      %v4428 = vpop.trf.xlu0
      %v4429 = vpop.trf.xlu0
      %v4430 = vpop.trf.xlu0
      %v4431 = vpop.trf.xlu0
      %v4432 = vpop.trf.xlu0
      %4433 = vst [vmem:[%s224] sm:$0xff] %v4385
      %4434 = vst [vmem:[%s224 + $0x8] sm:$0xff] %v4417
      %4435 = vst [vmem:[%s224 + $0x10] sm:$0xff] %v4386
      %4436 = vst [vmem:[%s224 + $0x18] sm:$0xff] %v4418
      %4437 = vst [vmem:[%s224 + $0x20] sm:$0xff] %v4387
      %4438 = vst [vmem:[%s224 + $0x28] sm:$0xff] %v4419
      %4439 = vst [vmem:[%s224 + $0x30] sm:$0xff] %v4388
      %4440 = vst [vmem:[%s224 + $0x38] sm:$0xff] %v4420
      %p4441 = scmp.lt.s32.totalorder %s16, 1
      %s4442 = scalar_select %p4441, %s16, 1
      %s4443 = smul.addr %s4442, 8
      %s4444 = smul.addr %s4443, 8
      %s4445 = scalar_lea.vmem %s5, %s4444
      // Predicated region
      $region41: #{fcab_forward.3} parent=39 // pred_check
        %p4446 = pneg %p144
      $region42: #{fcab_forward.3} parent=39 // pred_check_branch
        %4448 = sbr.rel (%p4446) target = $region44
      $region43: #{fcab_forward.3} parent=39 // pred_region
        _
      $region44: #{fcab_forward.3} parent=39 // pred_fallthru
        _
    $region40: #{fcab_forward.3} parent=5 // pred_fallthru
      _
    %p4449 = scmp.le.s32.totalorder 2, %s11
    // Predicated region
    $region45: #{fcab_forward.3} parent=5 // pred_check
      %p4450 = pneg %p4449
    $region46: #{fcab_forward.3} parent=5 // pred_check_branch
      %4452 = sbr.rel (%p4450) target = $region48
    $region47: #{fcab_forward.3} parent=5 // pred_region
      %s4453 = ssub.s32 %s11, 2
      // Predicated region
      $region49: #{fcab_forward.3} parent=47 // pred_check
        %p4454 = pneg %p150
      $region50: #{fcab_forward.3} parent=47 // pred_check_branch
        %4456 = sbr.rel (%p4454) target = $region52
      $region51: #{fcab_forward.3} parent=47 // pred_region
        %p4457 = scmp.lt.s32.totalorder %s17, 1
        %s4458 = scalar_select %p4457, %s17, 1
        %s4459 = smul.addr %s4458, 8
        %s4460 = smul.addr %s4459, 8
        %s4461 = scalar_lea.vmem %s5, %s4460
      $region52: #{fcab_forward.3} parent=47 // pred_fallthru
        _
    $region48: #{fcab_forward.3} parent=5 // pred_fallthru
      _
  $region6: #{fcab_forward.3} parent=0 // loop_footer
    %s15 = sadd.s32 1, %s11
  $region7: #{fcab_forward.3} parent=0 // loop_footer_branch
    %10 = sbr.rel target = $region3
  $region8: #{fcab_forward.3} parent=0 // loop_exit
    _

// kernel: fcab_forward.4
$region0: #{fcab_forward.4}
  #allocation0 [shape = 'u32[]', space=smem, size = 0x4, offset = 0x4, fixed_abs, tag = 'smem constant byte address 0x4 - core index']
  #allocation1 [shape = 'u32[144,128]{1,0:T(1,128)}', space=vmem, size = 0x12000, scoped, tag = 'internal scratch']
  %s0 = inlined_call_operand.vmem [shape: f32[2,32,256], index: 0, kind: input, shape index: {}]
  %s1 = inlined_call_operand.vmem [shape: bf16[288,32], index: 1, kind: input, shape index: {}]
  %s2 = inlined_call_operand.vmem [shape: f32[1,32], index: 2, kind: input, shape index: {}]
  %s3 = inlined_call_operand.vmem [shape: f32[32,2], index: 3, kind: input, shape index: {}]
  %s4 = inlined_call_operand.vmem [shape: f32[1,2], index: 4, kind: input, shape index: {}]
  %s5 = inlined_call_operand.vmem [shape: f32[32,2], index: 5, kind: input, shape index: {}]
  %s6 = inlined_call_operand.vmem [shape: f32[32,1], index: 6, kind: input, shape index: {}]
  %s7 = inlined_call_operand.vmem [shape: f32[2,32,1], index: 7, kind: output, shape index: {}]
  %s8 = sld [smem:[#allocation0]]
  $region61: #{fcab_forward.4} parent=0
    _
  %s10 = ssub.s32 1, %s8
  %s11 = scalar_select 0, %s10, %s8
  loop: start=0, step=1, limit=4
  $region2: #{fcab_forward.4} parent=0 // loop_pre_header
    _
  $region3: #{fcab_forward.4} parent=0 // loop_header
    %s13 = sphi 0, %s17
    %p14 = scmp.ge.s32.totalorder %s13, 4
    %s23 = sphi 0, %s25
    %s26 = sphi 0, %s23
    %s27 = sphi 0, %s26
    %s43 = sphi 0, %s27
    %s47 = sphi 0, %s47
    %s49 = sphi 0, %s47
    %s50 = sphi 0, %s49
    %s64 = sphi 0, %s50
    %s68 = sphi 0, %s68
    %s70 = sphi 0, %s68
    %s71 = sphi 0, %s70
    %s85 = sphi 0, %s71
    %s89 = sphi 0, %s89
    %s91 = sphi 0, %s89
    %s92 = sphi 0, %s91
    %s106 = sphi 0, %s92
    %s110 = sphi 0, %s110
    %s112 = sphi 0, %s110
    %s113 = sphi 0, %s112
    %s127 = sphi 0, %s113
    %s131 = sphi 0, %s131
    %s133 = sphi 0, %s131
    %s134 = sphi 0, %s133
    %s148 = sphi 0, %s134
    %s152 = sphi 0, %s152
    %s154 = sphi 0, %s152
    %s155 = sphi 0, %s154
    %s169 = sphi 0, %s155
    %s175 = sphi 0, %s177
    %s178 = sphi 0, %s175
    %s179 = sphi 0, %s178
    %s195 = sphi 0, %s179
  $region4: #{fcab_forward.4} parent=0 // loop_header_branch
    %16 = sbr.rel (%p14) target = $region8
  $region5: #{fcab_forward.4} parent=0 // loop_body
    %s18 = ssub.s32 %s13, 1
    %s19 = ssub.s32 %s13, 2
    %s20 = sadd.s32 %s13, 1
    %s21 = ssub.s32 %s13, %s20
    %p22 = scmp.eq.s32.totalorder %s21, 0
    %s24 = sadd.s32 %s23, 1
    %s25 = scalar_select %p22, %s23, %s24
    %p28 = pneg %p22
    %p29 = scmp.eq.s32.totalorder %s13, 1
    %p30 = por %p28, %p29
    %p31 = scmp.ne.s32.totalorder %s23, %s26
    %p32 = scmp.eq.s32.totalorder %s13, 0
    %p33 = por %p31, %p32
    %p34 = scmp.ne.s32.totalorder %s23, %s26
    %p35 = scmp.eq.s32.totalorder %s18, 1
    %p36 = por %p34, %p35
    %p37 = scmp.ne.s32.totalorder %s26, %s27
    %p38 = scmp.eq.s32.totalorder %s18, 0
    %p39 = por %p37, %p38
    %p40 = scmp.ne.s32.totalorder %s26, %s27
    %p41 = scmp.eq.s32.totalorder %s19, 1
    %p42 = por %p40, %p41
    %p44 = scmp.ne.s32.totalorder %s27, %s43
    %p45 = scmp.eq.s32.totalorder %s19, 0
    %p46 = por %p44, %p45
    %s48 = sadd.s32 %s47, 1
    %p51 = scmp.eq.s32.totalorder %s13, 1
    %p52 = scmp.ne.s32.totalorder %s47, %s49
    %p53 = scmp.eq.s32.totalorder %s13, 0
    %p54 = por %p52, %p53
    %p55 = scmp.ne.s32.totalorder %s47, %s49
    %p56 = scmp.eq.s32.totalorder %s18, 1
    %p57 = por %p55, %p56
    %p58 = scmp.ne.s32.totalorder %s49, %s50
    %p59 = scmp.eq.s32.totalorder %s18, 0
    %p60 = por %p58, %p59
    %p61 = scmp.ne.s32.totalorder %s49, %s50
    %p62 = scmp.eq.s32.totalorder %s19, 1
    %p63 = por %p61, %p62
    %p65 = scmp.ne.s32.totalorder %s50, %s64
    %p66 = scmp.eq.s32.totalorder %s19, 0
    %p67 = por %p65, %p66
    %s69 = sadd.s32 %s68, 1
    %p72 = scmp.eq.s32.totalorder %s13, 1
    %p73 = scmp.ne.s32.totalorder %s68, %s70
    %p74 = scmp.eq.s32.totalorder %s13, 0
    %p75 = por %p73, %p74
    %p76 = scmp.ne.s32.totalorder %s68, %s70
    %p77 = scmp.eq.s32.totalorder %s18, 1
    %p78 = por %p76, %p77
    %p79 = scmp.ne.s32.totalorder %s70, %s71
    %p80 = scmp.eq.s32.totalorder %s18, 0
    %p81 = por %p79, %p80
    %p82 = scmp.ne.s32.totalorder %s70, %s71
    %p83 = scmp.eq.s32.totalorder %s19, 1
    %p84 = por %p82, %p83
    %p86 = scmp.ne.s32.totalorder %s71, %s85
    %p87 = scmp.eq.s32.totalorder %s19, 0
    %p88 = por %p86, %p87
    %s90 = sadd.s32 %s89, 1
    %p93 = scmp.eq.s32.totalorder %s13, 1
    %p94 = scmp.ne.s32.totalorder %s89, %s91
    %p95 = scmp.eq.s32.totalorder %s13, 0
    %p96 = por %p94, %p95
    %p97 = scmp.ne.s32.totalorder %s89, %s91
    %p98 = scmp.eq.s32.totalorder %s18, 1
    %p99 = por %p97, %p98
    %p100 = scmp.ne.s32.totalorder %s91, %s92
    %p101 = scmp.eq.s32.totalorder %s18, 0
    %p102 = por %p100, %p101
    %p103 = scmp.ne.s32.totalorder %s91, %s92
    %p104 = scmp.eq.s32.totalorder %s19, 1
    %p105 = por %p103, %p104
    %p107 = scmp.ne.s32.totalorder %s92, %s106
    %p108 = scmp.eq.s32.totalorder %s19, 0
    %p109 = por %p107, %p108
    %s111 = sadd.s32 %s110, 1
    %p114 = scmp.eq.s32.totalorder %s13, 1
    %p115 = scmp.ne.s32.totalorder %s110, %s112
    %p116 = scmp.eq.s32.totalorder %s13, 0
    %p117 = por %p115, %p116
    %p118 = scmp.ne.s32.totalorder %s110, %s112
    %p119 = scmp.eq.s32.totalorder %s18, 1
    %p120 = por %p118, %p119
    %p121 = scmp.ne.s32.totalorder %s112, %s113
    %p122 = scmp.eq.s32.totalorder %s18, 0
    %p123 = por %p121, %p122
    %p124 = scmp.ne.s32.totalorder %s112, %s113
    %p125 = scmp.eq.s32.totalorder %s19, 1
    %p126 = por %p124, %p125
    %p128 = scmp.ne.s32.totalorder %s113, %s127
    %p129 = scmp.eq.s32.totalorder %s19, 0
    %p130 = por %p128, %p129
    %s132 = sadd.s32 %s131, 1
    %p135 = scmp.eq.s32.totalorder %s13, 1
    %p136 = scmp.ne.s32.totalorder %s131, %s133
    %p137 = scmp.eq.s32.totalorder %s13, 0
    %p138 = por %p136, %p137
    %p139 = scmp.ne.s32.totalorder %s131, %s133
    %p140 = scmp.eq.s32.totalorder %s18, 1
    %p141 = por %p139, %p140
    %p142 = scmp.ne.s32.totalorder %s133, %s134
    %p143 = scmp.eq.s32.totalorder %s18, 0
    %p144 = por %p142, %p143
    %p145 = scmp.ne.s32.totalorder %s133, %s134
    %p146 = scmp.eq.s32.totalorder %s19, 1
    %p147 = por %p145, %p146
    %p149 = scmp.ne.s32.totalorder %s134, %s148
    %p150 = scmp.eq.s32.totalorder %s19, 0
    %p151 = por %p149, %p150
    %s153 = sadd.s32 %s152, 1
    %p156 = scmp.eq.s32.totalorder %s13, 1
    %p157 = scmp.ne.s32.totalorder %s152, %s154
    %p158 = scmp.eq.s32.totalorder %s13, 0
    %p159 = por %p157, %p158
    %p160 = scmp.ne.s32.totalorder %s152, %s154
    %p161 = scmp.eq.s32.totalorder %s18, 1
    %p162 = por %p160, %p161
    %p163 = scmp.ne.s32.totalorder %s154, %s155
    %p164 = scmp.eq.s32.totalorder %s18, 0
    %p165 = por %p163, %p164
    %p166 = scmp.ne.s32.totalorder %s154, %s155
    %p167 = scmp.eq.s32.totalorder %s19, 1
    %p168 = por %p166, %p167
    %p170 = scmp.ne.s32.totalorder %s155, %s169
    %p171 = scmp.eq.s32.totalorder %s19, 0
    %p172 = por %p170, %p171
    %s173 = ssub.s32 %s13, %s20
    %p174 = scmp.eq.s32.totalorder %s173, 0
    %s176 = sadd.s32 %s175, 1
    %s177 = scalar_select %p174, %s175, %s176
    %p180 = pneg %p174
    %p181 = scmp.eq.s32.totalorder %s13, 1
    %p182 = por %p180, %p181
    %p183 = scmp.ne.s32.totalorder %s175, %s178
    %p184 = scmp.eq.s32.totalorder %s13, 0
    %p185 = por %p183, %p184
    %p186 = scmp.ne.s32.totalorder %s175, %s178
    %p187 = scmp.eq.s32.totalorder %s18, 1
    %p188 = por %p186, %p187
    %p189 = scmp.ne.s32.totalorder %s178, %s179
    %p190 = scmp.eq.s32.totalorder %s18, 0
    %p191 = por %p189, %p190
    %p192 = scmp.ne.s32.totalorder %s178, %s179
    %p193 = scmp.eq.s32.totalorder %s19, 1
    %p194 = por %p192, %p193
    %p196 = scmp.ne.s32.totalorder %s179, %s195
    %p197 = scmp.eq.s32.totalorder %s19, 0
    %p198 = por %p196, %p197
    %p199 = scmp.le.s32.totalorder 1, %s13
    %p200 = scmp.lt.s32.totalorder %s13, 3
    %p201 = pnand %p199, %p200
    %p202 = pneg %p201
    // Predicated region
    $region9: #{fcab_forward.4} parent=5 // pred_check
      _
    $region10: #{fcab_forward.4} parent=5 // pred_check_branch
      %204 = sbr.rel (%p201) target = $region12
    $region11: #{fcab_forward.4} parent=5 // pred_region
      %s205 = ssub.s32 %s13, 1
      // Predicated region
      $region13: #{fcab_forward.4} parent=11 // pred_check
        %p206 = pneg %p60
      $region14: #{fcab_forward.4} parent=11 // pred_check_branch
        %208 = sbr.rel (%p206) target = $region16
      $region15: #{fcab_forward.4} parent=11 // pred_region
        _
      $region16: #{fcab_forward.4} parent=11 // pred_fallthru
        _
      // Predicated region
      $region17: #{fcab_forward.4} parent=11 // pred_check
        %p209 = pneg %p81
      $region18: #{fcab_forward.4} parent=11 // pred_check_branch
        %211 = sbr.rel (%p209) target = $region20
      $region19: #{fcab_forward.4} parent=11 // pred_region
        _
      $region20: #{fcab_forward.4} parent=11 // pred_fallthru
        _
      // Predicated region
      $region21: #{fcab_forward.4} parent=11 // pred_check
        %p212 = pneg %p102
      $region22: #{fcab_forward.4} parent=11 // pred_check_branch
        %214 = sbr.rel (%p212) target = $region24
      $region23: #{fcab_forward.4} parent=11 // pred_region
        _
      $region24: #{fcab_forward.4} parent=11 // pred_fallthru
        _
      // Predicated region
      $region25: #{fcab_forward.4} parent=11 // pred_check
        %p215 = pneg %p123
      $region26: #{fcab_forward.4} parent=11 // pred_check_branch
        %217 = sbr.rel (%p215) target = $region28
      $region27: #{fcab_forward.4} parent=11 // pred_region
        _
      $region28: #{fcab_forward.4} parent=11 // pred_fallthru
        _
      // Predicated region
      $region29: #{fcab_forward.4} parent=11 // pred_check
        %p218 = pneg %p144
      $region30: #{fcab_forward.4} parent=11 // pred_check_branch
        %220 = sbr.rel (%p218) target = $region32
      $region31: #{fcab_forward.4} parent=11 // pred_region
        _
      $region32: #{fcab_forward.4} parent=11 // pred_fallthru
        _
      // Predicated region
      $region33: #{fcab_forward.4} parent=11 // pred_check
        %p221 = pneg %p165
      $region34: #{fcab_forward.4} parent=11 // pred_check_branch
        %223 = sbr.rel (%p221) target = $region36
      $region35: #{fcab_forward.4} parent=11 // pred_region
        _
      $region36: #{fcab_forward.4} parent=11 // pred_fallthru
        _
    $region12: #{fcab_forward.4} parent=5 // pred_fallthru
      _
    %p224 = scmp.lt.s32.totalorder %s13, 2
    // Predicated region
    $region37: #{fcab_forward.4} parent=5 // pred_check
      %p225 = pneg %p224
    $region38: #{fcab_forward.4} parent=5 // pred_check_branch
      %227 = sbr.rel (%p225) target = $region40
    $region39: #{fcab_forward.4} parent=5 // pred_region
      // Predicated region
      $region41: #{fcab_forward.4} parent=39 // pred_check
        %p228 = pneg %p33
      $region42: #{fcab_forward.4} parent=39 // pred_check_branch
        %230 = sbr.rel (%p228) target = $region44
      $region43: #{fcab_forward.4} parent=39 // pred_region
        %p231 = scmp.lt.s32.totalorder %s13, 1
        %s232 = scalar_select %p231, %s13, 1
        %s233 = smul.addr %s232, 8
        %s234 = smul.addr %s233, 8
        %s235 = scalar_lea.vmem %s0, %s234
      $region44: #{fcab_forward.4} parent=39 // pred_fallthru
        _
    $region40: #{fcab_forward.4} parent=5 // pred_fallthru
      _
    %p236 = scmp.le.s32.totalorder 1, %s13
    %p237 = scmp.lt.s32.totalorder %s13, 3
    %p238 = pnand %p236, %p237
    %p239 = pneg %p238
    // Predicated region
    $region45: #{fcab_forward.4} parent=5 // pred_check
      _
    $region46: #{fcab_forward.4} parent=5 // pred_check_branch
      %241 = sbr.rel (%p238) target = $region48
    $region47: #{fcab_forward.4} parent=5 // pred_region
      %s242 = ssub.s32 %s13, 1
      %p243 = scmp.lt.s32.totalorder %s18, 1
      %s244 = scalar_select %p243, %s18, 1
      %s245 = smul.addr %s244, 8
      %s246 = smul.addr %s245, 8
      %s247 = scalar_lea.vmem %s0, %s246
      %p248 = pneg %p39
      %p249 = pneg %p36
      %p250 = pneg %p60
      %p251 = pneg %p57
      %p252 = pneg %p81
      %p253 = pneg %p78
      %p254 = pneg %p102
      %p255 = pneg %p99
      %p256 = pneg %p123
      %p257 = pneg %p120
      %p258 = pneg %p144
      %p259 = pneg %p141
      %p260 = pneg %p165
      %p261 = pneg %p162
      %p262 = pneg %p191
      %p263 = pneg %p188
      %p264 = scmp.lt.s32.totalorder %s18, 1
      %s265 = scalar_select %p264, %s18, 1
      %s266 = smul.addr %s265, 4
      %s267 = smul.addr %s266, 8
      %s268 = scalar_lea.vmem %s7, %s267
      %p269 = scmp.lt.s32.totalorder %s18, 1
      %s270 = scalar_select %p269, %s18, 1
      %s271 = smul.addr %s270, 8
      %s272 = smul.addr %s271, 8
      %s273 = scalar_lea.vmem %s0, %s272
      %p274 = scmp.lt.s32.totalorder %s18, 1
      %s275 = scalar_select %p274, %s18, 1
      %s276 = smul.addr %s275, 4
      %s277 = smul.addr %s276, 8
      %s278 = scalar_lea.vmem %s7, %s277
      %v280 = vld [vmem:[%s273] sm:$0xff]
      %v281 = vld [vmem:[%s273 + $0x8] sm:$0xff]
      %v282 = vld [vmem:[%s273 + $0x10] sm:$0xff]
      %v283 = vld [vmem:[%s273 + $0x18] sm:$0xff]
      %v284 = vld [vmem:[%s273 + $0x20] sm:$0xff]
      %v285 = vld [vmem:[%s273 + $0x28] sm:$0xff]
      %v286 = vld [vmem:[%s273 + $0x30] sm:$0xff]
      %v287 = vld [vmem:[%s273 + $0x38] sm:$0xff]
      %288 = vxpose.xlu0.b32.start [1/16] %v280, 128
      %289 = vxpose.xlu0.b32.cont [2/16] %v282, 128
      %290 = vxpose.xlu0.b32.cont [3/16] %v284, 128
      %291 = vxpose.xlu0.b32.cont [4/16] %v286, 128
      %292 = vxpose.xlu0.b32.cont [5/16] 0.0, 128
      %293 = vxpose.xlu0.b32.cont [6/16] 0.0, 128
      %294 = vxpose.xlu0.b32.cont [7/16] 0.0, 128
      %295 = vxpose.xlu0.b32.cont [8/16] 0.0, 128
      %296 = vxpose.xlu0.b32.cont [9/16] 0.0, 128
      %297 = vxpose.xlu0.b32.cont [10/16] 0.0, 128
      %298 = vxpose.xlu0.b32.cont [11/16] 0.0, 128
      %299 = vxpose.xlu0.b32.cont [12/16] 0.0, 128
      %300 = vxpose.xlu0.b32.cont [13/16] 0.0, 128
      %301 = vxpose.xlu0.b32.cont [14/16] 0.0, 128
      %302 = vxpose.xlu0.b32.cont [15/16] 0.0, 128
      %303 = vxpose.xlu0.b32.end [16/16] 0.0, 128
      %v304 = vpop.trf.xlu0
      %v305 = vpop.trf.xlu0
      %v306 = vpop.trf.xlu0
      %v307 = vpop.trf.xlu0
      %v308 = vpop.trf.xlu0
      %v309 = vpop.trf.xlu0
      %v310 = vpop.trf.xlu0
      %v311 = vpop.trf.xlu0
      %v312 = vpop.trf.xlu0
      %v313 = vpop.trf.xlu0
      %v314 = vpop.trf.xlu0
      %v315 = vpop.trf.xlu0
      %v316 = vpop.trf.xlu0
      %v317 = vpop.trf.xlu0
      %v318 = vpop.trf.xlu0
      %v319 = vpop.trf.xlu0
      %320 = vxpose.xlu0.b32.start [1/16] %v281, 128
      %321 = vxpose.xlu0.b32.cont [2/16] %v283, 128
      %322 = vxpose.xlu0.b32.cont [3/16] %v285, 128
      %323 = vxpose.xlu0.b32.cont [4/16] %v287, 128
      %324 = vxpose.xlu0.b32.cont [5/16] 0.0, 128
      %325 = vxpose.xlu0.b32.cont [6/16] 0.0, 128
      %326 = vxpose.xlu0.b32.cont [7/16] 0.0, 128
      %327 = vxpose.xlu0.b32.cont [8/16] 0.0, 128
      %328 = vxpose.xlu0.b32.cont [9/16] 0.0, 128
      %329 = vxpose.xlu0.b32.cont [10/16] 0.0, 128
      %330 = vxpose.xlu0.b32.cont [11/16] 0.0, 128
      %331 = vxpose.xlu0.b32.cont [12/16] 0.0, 128
      %332 = vxpose.xlu0.b32.cont [13/16] 0.0, 128
      %333 = vxpose.xlu0.b32.cont [14/16] 0.0, 128
      %334 = vxpose.xlu0.b32.cont [15/16] 0.0, 128
      %335 = vxpose.xlu0.b32.end [16/16] 0.0, 128
      %v336 = vpop.trf.xlu0
      %v337 = vpop.trf.xlu0
      %v338 = vpop.trf.xlu0
      %v339 = vpop.trf.xlu0
      %v340 = vpop.trf.xlu0
      %v341 = vpop.trf.xlu0
      %v342 = vpop.trf.xlu0
      %v343 = vpop.trf.xlu0
      %v344 = vpop.trf.xlu0
      %v345 = vpop.trf.xlu0
      %v346 = vpop.trf.xlu0
      %v347 = vpop.trf.xlu0
      %v348 = vpop.trf.xlu0
      %v349 = vpop.trf.xlu0
      %v350 = vpop.trf.xlu0
      %v351 = vpop.trf.xlu0
      %vm385 = vcmask 1040384
      %v386 = vrot.slane 0.0, 7
      %v387 = vsel %vm385, %v386, %v386
      %v388 = vrot.slane %v304, 7
      %v389 = vrot.slane %v305, 7
      %v390 = vsel %vm385, %v388, %v389
      %v391 = vrot.slane %v306, 7
      %v392 = vrot.slane %v307, 7
      %v393 = vsel %vm385, %v391, %v392
      %v394 = vrot.slane %v308, 7
      %v395 = vrot.slane %v309, 7
      %v396 = vsel %vm385, %v394, %v395
      %v397 = vrot.slane %v310, 7
      %v398 = vrot.slane %v311, 7
      %v399 = vsel %vm385, %v397, %v398
      %v400 = vrot.slane %v312, 7
      %v401 = vrot.slane %v313, 7
      %v402 = vsel %vm385, %v400, %v401
      %v403 = vrot.slane %v314, 7
      %v404 = vrot.slane %v315, 7
      %v405 = vsel %vm385, %v403, %v404
      %v406 = vrot.slane %v316, 7
      %v407 = vrot.slane %v317, 7
      %v408 = vsel %vm385, %v406, %v407
      %v409 = vrot.slane %v318, 7
      %v410 = vrot.slane %v319, 7
      %v411 = vsel %vm385, %v409, %v410
      %v412 = vrot.slane %v336, 7
      %v413 = vrot.slane %v337, 7
      %v414 = vsel %vm385, %v412, %v413
      %v415 = vrot.slane %v338, 7
      %v416 = vrot.slane %v339, 7
      %v417 = vsel %vm385, %v415, %v416
      %v418 = vrot.slane %v340, 7
      %v419 = vrot.slane %v341, 7
      %v420 = vsel %vm385, %v418, %v419
      %v421 = vrot.slane %v342, 7
      %v422 = vrot.slane %v343, 7
      %v423 = vsel %vm385, %v421, %v422
      %v424 = vrot.slane %v344, 7
      %v425 = vrot.slane %v345, 7
      %v426 = vsel %vm385, %v424, %v425
      %v427 = vrot.slane %v346, 7
      %v428 = vrot.slane %v347, 7
      %v429 = vsel %vm385, %v427, %v428
      %v430 = vrot.slane %v348, 7
      %v431 = vrot.slane %v349, 7
      %v432 = vsel %vm385, %v430, %v431
      %v433 = vrot.slane %v350, 7
      %v434 = vrot.slane %v351, 7
      %v435 = vsel %vm385, %v433, %v434
      %v485 = vsel %vm385, 0.0, %v386
      %v486 = vsel %vm385, 0.0, %v388
      %v487 = vsel %vm385, 0.0, %v391
      %v488 = vsel %vm385, 0.0, %v394
      %v489 = vsel %vm385, 0.0, %v397
      %v490 = vsel %vm385, 0.0, %v400
      %v491 = vsel %vm385, 0.0, %v403
      %v492 = vsel %vm385, 0.0, %v406
      %v493 = vsel %vm385, 0.0, %v409
      %v494 = vsel %vm385, 0.0, %v412
      %v495 = vsel %vm385, 0.0, %v415
      %v496 = vsel %vm385, 0.0, %v418
      %v497 = vsel %vm385, 0.0, %v421
      %v498 = vsel %vm385, 0.0, %v424
      %v499 = vsel %vm385, 0.0, %v427
      %v500 = vsel %vm385, 0.0, %v430
      %v501 = vsel %vm385, 0.0, %v433
      %v502 = vsel %vm385, %v386, 0.0
      %v503 = vsel %vm385, %v389, 0.0
      %v504 = vsel %vm385, %v392, 0.0
      %v505 = vsel %vm385, %v395, 0.0
      %v506 = vsel %vm385, %v398, 0.0
      %v507 = vsel %vm385, %v401, 0.0
      %v508 = vsel %vm385, %v404, 0.0
      %v509 = vsel %vm385, %v407, 0.0
      %v510 = vsel %vm385, %v410, 0.0
      %v511 = vsel %vm385, %v413, 0.0
      %v512 = vsel %vm385, %v416, 0.0
      %v513 = vsel %vm385, %v419, 0.0
      %v514 = vsel %vm385, %v422, 0.0
      %v515 = vsel %vm385, %v425, 0.0
      %v516 = vsel %vm385, %v428, 0.0
      %v517 = vsel %vm385, %v431, 0.0
      %v518 = vsel %vm385, %v434, 0.0
      %vm551 = vcmask 1046528
      %v552 = vrot.slane %v485, 1
      %v553 = vrot.slane %v387, 1
      %v554 = vsel %vm551, %v552, %v553
      %v555 = vrot.slane %v502, 1
      %v556 = vsel %vm551, %v553, %v555
      %v557 = vrot.slane %v486, 1
      %v558 = vrot.slane %v390, 1
      %v559 = vsel %vm551, %v557, %v558
      %v560 = vrot.slane %v503, 1
      %v561 = vsel %vm551, %v558, %v560
      %v562 = vrot.slane %v487, 1
      %v563 = vrot.slane %v393, 1
      %v564 = vsel %vm551, %v562, %v563
      %v565 = vrot.slane %v504, 1
      %v566 = vsel %vm551, %v563, %v565
      %v567 = vrot.slane %v488, 1
      %v568 = vrot.slane %v396, 1
      %v569 = vsel %vm551, %v567, %v568
      %v570 = vrot.slane %v505, 1
      %v571 = vsel %vm551, %v568, %v570
      %v572 = vrot.slane %v489, 1
      %v573 = vrot.slane %v399, 1
      %v574 = vsel %vm551, %v572, %v573
      %v575 = vrot.slane %v506, 1
      %v576 = vsel %vm551, %v573, %v575
      %v577 = vrot.slane %v490, 1
      %v578 = vrot.slane %v402, 1
      %v579 = vsel %vm551, %v577, %v578
      %v580 = vrot.slane %v507, 1
      %v581 = vsel %vm551, %v578, %v580
      %v582 = vrot.slane %v491, 1
      %v583 = vrot.slane %v405, 1
      %v584 = vsel %vm551, %v582, %v583
      %v585 = vrot.slane %v508, 1
      %v586 = vsel %vm551, %v583, %v585
      %v587 = vrot.slane %v492, 1
      %v588 = vrot.slane %v408, 1
      %v589 = vsel %vm551, %v587, %v588
      %v590 = vrot.slane %v509, 1
      %v591 = vsel %vm551, %v588, %v590
      %v592 = vrot.slane %v493, 1
      %v593 = vrot.slane %v411, 1
      %v594 = vsel %vm551, %v592, %v593
      %v595 = vrot.slane %v510, 1
      %v596 = vsel %vm551, %v593, %v595
      %v597 = vrot.slane %v494, 1
      %v598 = vrot.slane %v414, 1
      %v599 = vsel %vm551, %v597, %v598
      %v600 = vrot.slane %v511, 1
      %v601 = vsel %vm551, %v598, %v600
      %v602 = vrot.slane %v495, 1
      %v603 = vrot.slane %v417, 1
      %v604 = vsel %vm551, %v602, %v603
      %v605 = vrot.slane %v512, 1
      %v606 = vsel %vm551, %v603, %v605
      %v607 = vrot.slane %v496, 1
      %v608 = vrot.slane %v420, 1
      %v609 = vsel %vm551, %v607, %v608
      %v610 = vrot.slane %v513, 1
      %v611 = vsel %vm551, %v608, %v610
      %v612 = vrot.slane %v497, 1
      %v613 = vrot.slane %v423, 1
      %v614 = vsel %vm551, %v612, %v613
      %v615 = vrot.slane %v514, 1
      %v616 = vsel %vm551, %v613, %v615
      %v617 = vrot.slane %v498, 1
      %v618 = vrot.slane %v426, 1
      %v619 = vsel %vm551, %v617, %v618
      %v620 = vrot.slane %v515, 1
      %v621 = vsel %vm551, %v618, %v620
      %v622 = vrot.slane %v499, 1
      %v623 = vrot.slane %v429, 1
      %v624 = vsel %vm551, %v622, %v623
      %v625 = vrot.slane %v516, 1
      %v626 = vsel %vm551, %v623, %v625
      %v627 = vrot.slane %v500, 1
      %v628 = vrot.slane %v432, 1
      %v629 = vsel %vm551, %v627, %v628
      %v630 = vrot.slane %v517, 1
      %v631 = vsel %vm551, %v628, %v630
      %vm632 = vcmask 1045504
      %v633 = vrot.slane %v485, 2
      %v634 = vrot.slane %v387, 2
      %v635 = vsel %vm632, %v633, %v634
      %v636 = vrot.slane %v502, 2
      %v637 = vsel %vm632, %v634, %v636
      %v638 = vrot.slane %v486, 2
      %v639 = vrot.slane %v390, 2
      %v640 = vsel %vm632, %v638, %v639
      %v641 = vrot.slane %v503, 2
      %v642 = vsel %vm632, %v639, %v641
      %v643 = vrot.slane %v487, 2
      %v644 = vrot.slane %v393, 2
      %v645 = vsel %vm632, %v643, %v644
      %v646 = vrot.slane %v504, 2
      %v647 = vsel %vm632, %v644, %v646
      %v648 = vrot.slane %v488, 2
      %v649 = vrot.slane %v396, 2
      %v650 = vsel %vm632, %v648, %v649
      %v651 = vrot.slane %v505, 2
      %v652 = vsel %vm632, %v649, %v651
      %v653 = vrot.slane %v489, 2
      %v654 = vrot.slane %v399, 2
      %v655 = vsel %vm632, %v653, %v654
      %v656 = vrot.slane %v506, 2
      %v657 = vsel %vm632, %v654, %v656
      %v658 = vrot.slane %v490, 2
      %v659 = vrot.slane %v402, 2
      %v660 = vsel %vm632, %v658, %v659
      %v661 = vrot.slane %v507, 2
      %v662 = vsel %vm632, %v659, %v661
      %v663 = vrot.slane %v491, 2
      %v664 = vrot.slane %v405, 2
      %v665 = vsel %vm632, %v663, %v664
      %v666 = vrot.slane %v508, 2
      %v667 = vsel %vm632, %v664, %v666
      %v668 = vrot.slane %v492, 2
      %v669 = vrot.slane %v408, 2
      %v670 = vsel %vm632, %v668, %v669
      %v671 = vrot.slane %v509, 2
      %v672 = vsel %vm632, %v669, %v671
      %v673 = vrot.slane %v493, 2
      %v674 = vrot.slane %v411, 2
      %v675 = vsel %vm632, %v673, %v674
      %v676 = vrot.slane %v510, 2
      %v677 = vsel %vm632, %v674, %v676
      %v678 = vrot.slane %v494, 2
      %v679 = vrot.slane %v414, 2
      %v680 = vsel %vm632, %v678, %v679
      %v681 = vrot.slane %v511, 2
      %v682 = vsel %vm632, %v679, %v681
      %v683 = vrot.slane %v495, 2
      %v684 = vrot.slane %v417, 2
      %v685 = vsel %vm632, %v683, %v684
      %v686 = vrot.slane %v512, 2
      %v687 = vsel %vm632, %v684, %v686
      %v688 = vrot.slane %v496, 2
      %v689 = vrot.slane %v420, 2
      %v690 = vsel %vm632, %v688, %v689
      %v691 = vrot.slane %v513, 2
      %v692 = vsel %vm632, %v689, %v691
      %v693 = vrot.slane %v497, 2
      %v694 = vrot.slane %v423, 2
      %v695 = vsel %vm632, %v693, %v694
      %v696 = vrot.slane %v514, 2
      %v697 = vsel %vm632, %v694, %v696
      %v698 = vrot.slane %v498, 2
      %v699 = vrot.slane %v426, 2
      %v700 = vsel %vm632, %v698, %v699
      %v701 = vrot.slane %v515, 2
      %v702 = vsel %vm632, %v699, %v701
      %v703 = vrot.slane %v499, 2
      %v704 = vrot.slane %v429, 2
      %v705 = vsel %vm632, %v703, %v704
      %v706 = vrot.slane %v516, 2
      %v707 = vsel %vm632, %v704, %v706
      %v708 = vrot.slane %v500, 2
      %v709 = vrot.slane %v432, 2
      %v710 = vsel %vm632, %v708, %v709
      %v711 = vrot.slane %v517, 2
      %v712 = vsel %vm632, %v709, %v711
      %v715 = vrot.slane %v501, 1
      %v716 = vrot.slane %v435, 1
      %v717 = vsel %vm551, %v715, %v716
      %v718 = vrot.slane %v518, 1
      %v719 = vsel %vm551, %v716, %v718
      %v752 = vrot.slane %v501, 2
      %v753 = vrot.slane %v435, 2
      %v754 = vsel %vm632, %v752, %v753
      %v755 = vrot.slane %v518, 2
      %v756 = vsel %vm632, %v753, %v755
      %789 = vrot.lane.b32.xlu0 %v554, 32
      %v790 = vpop.permute.xlu0 %789
      %791 = vrot.lane.b32.xlu0 %v556, 32
      %v792 = vpop.permute.xlu0 %791
      %793 = vrot.lane.b32.xlu0 %v559, 32
      %v794 = vpop.permute.xlu0 %793
      %795 = vrot.lane.b32.xlu0 %v561, 32
      %v796 = vpop.permute.xlu0 %795
      %797 = vrot.lane.b32.xlu0 %v564, 32
      %v798 = vpop.permute.xlu0 %797
      %799 = vrot.lane.b32.xlu0 %v566, 32
      %v800 = vpop.permute.xlu0 %799
      %801 = vrot.lane.b32.xlu0 %v569, 32
      %v802 = vpop.permute.xlu0 %801
      %803 = vrot.lane.b32.xlu0 %v571, 32
      %v804 = vpop.permute.xlu0 %803
      %805 = vrot.lane.b32.xlu0 %v574, 32
      %v806 = vpop.permute.xlu0 %805
      %807 = vrot.lane.b32.xlu0 %v576, 32
      %v808 = vpop.permute.xlu0 %807
      %809 = vrot.lane.b32.xlu0 %v579, 32
      %v810 = vpop.permute.xlu0 %809
      %811 = vrot.lane.b32.xlu0 %v581, 32
      %v812 = vpop.permute.xlu0 %811
      %813 = vrot.lane.b32.xlu0 %v584, 32
      %v814 = vpop.permute.xlu0 %813
      %815 = vrot.lane.b32.xlu0 %v586, 32
      %v816 = vpop.permute.xlu0 %815
      %817 = vrot.lane.b32.xlu0 %v589, 32
      %v818 = vpop.permute.xlu0 %817
      %819 = vrot.lane.b32.xlu0 %v591, 32
      %v820 = vpop.permute.xlu0 %819
      %821 = vrot.lane.b32.xlu0 %v594, 32
      %v822 = vpop.permute.xlu0 %821
      %823 = vrot.lane.b32.xlu0 %v596, 32
      %v824 = vpop.permute.xlu0 %823
      %825 = vrot.lane.b32.xlu0 %v599, 32
      %v826 = vpop.permute.xlu0 %825
      %827 = vrot.lane.b32.xlu0 %v601, 32
      %v828 = vpop.permute.xlu0 %827
      %829 = vrot.lane.b32.xlu0 %v604, 32
      %v830 = vpop.permute.xlu0 %829
      %831 = vrot.lane.b32.xlu0 %v606, 32
      %v832 = vpop.permute.xlu0 %831
      %833 = vrot.lane.b32.xlu0 %v609, 32
      %v834 = vpop.permute.xlu0 %833
      %835 = vrot.lane.b32.xlu0 %v611, 32
      %v836 = vpop.permute.xlu0 %835
      %837 = vrot.lane.b32.xlu0 %v614, 32
      %v838 = vpop.permute.xlu0 %837
      %839 = vrot.lane.b32.xlu0 %v616, 32
      %v840 = vpop.permute.xlu0 %839
      %841 = vrot.lane.b32.xlu0 %v619, 32
      %v842 = vpop.permute.xlu0 %841
      %843 = vrot.lane.b32.xlu0 %v621, 32
      %v844 = vpop.permute.xlu0 %843
      %845 = vrot.lane.b32.xlu0 %v624, 32
      %v846 = vpop.permute.xlu0 %845
      %847 = vrot.lane.b32.xlu0 %v626, 32
      %v848 = vpop.permute.xlu0 %847
      %849 = vrot.lane.b32.xlu0 %v629, 32
      %v850 = vpop.permute.xlu0 %849
      %851 = vrot.lane.b32.xlu0 %v631, 32
      %v852 = vpop.permute.xlu0 %851
      %885 = vrot.lane.b32.xlu0 %v635, 64
      %v886 = vpop.permute.xlu0 %885
      %887 = vrot.lane.b32.xlu0 %v637, 64
      %v888 = vpop.permute.xlu0 %887
      %889 = vrot.lane.b32.xlu0 %v640, 64
      %v890 = vpop.permute.xlu0 %889
      %891 = vrot.lane.b32.xlu0 %v642, 64
      %v892 = vpop.permute.xlu0 %891
      %893 = vrot.lane.b32.xlu0 %v645, 64
      %v894 = vpop.permute.xlu0 %893
      %895 = vrot.lane.b32.xlu0 %v647, 64
      %v896 = vpop.permute.xlu0 %895
      %897 = vrot.lane.b32.xlu0 %v650, 64
      %v898 = vpop.permute.xlu0 %897
      %899 = vrot.lane.b32.xlu0 %v652, 64
      %v900 = vpop.permute.xlu0 %899
      %901 = vrot.lane.b32.xlu0 %v655, 64
      %v902 = vpop.permute.xlu0 %901
      %903 = vrot.lane.b32.xlu0 %v657, 64
      %v904 = vpop.permute.xlu0 %903
      %905 = vrot.lane.b32.xlu0 %v660, 64
      %v906 = vpop.permute.xlu0 %905
      %907 = vrot.lane.b32.xlu0 %v662, 64
      %v908 = vpop.permute.xlu0 %907
      %909 = vrot.lane.b32.xlu0 %v665, 64
      %v910 = vpop.permute.xlu0 %909
      %911 = vrot.lane.b32.xlu0 %v667, 64
      %v912 = vpop.permute.xlu0 %911
      %913 = vrot.lane.b32.xlu0 %v670, 64
      %v914 = vpop.permute.xlu0 %913
      %915 = vrot.lane.b32.xlu0 %v672, 64
      %v916 = vpop.permute.xlu0 %915
      %917 = vrot.lane.b32.xlu0 %v675, 64
      %v918 = vpop.permute.xlu0 %917
      %919 = vrot.lane.b32.xlu0 %v677, 64
      %v920 = vpop.permute.xlu0 %919
      %921 = vrot.lane.b32.xlu0 %v680, 64
      %v922 = vpop.permute.xlu0 %921
      %923 = vrot.lane.b32.xlu0 %v682, 64
      %v924 = vpop.permute.xlu0 %923
      %925 = vrot.lane.b32.xlu0 %v685, 64
      %v926 = vpop.permute.xlu0 %925
      %927 = vrot.lane.b32.xlu0 %v687, 64
      %v928 = vpop.permute.xlu0 %927
      %929 = vrot.lane.b32.xlu0 %v690, 64
      %v930 = vpop.permute.xlu0 %929
      %931 = vrot.lane.b32.xlu0 %v692, 64
      %v932 = vpop.permute.xlu0 %931
      %933 = vrot.lane.b32.xlu0 %v695, 64
      %v934 = vpop.permute.xlu0 %933
      %935 = vrot.lane.b32.xlu0 %v697, 64
      %v936 = vpop.permute.xlu0 %935
      %937 = vrot.lane.b32.xlu0 %v700, 64
      %v938 = vpop.permute.xlu0 %937
      %939 = vrot.lane.b32.xlu0 %v702, 64
      %v940 = vpop.permute.xlu0 %939
      %941 = vrot.lane.b32.xlu0 %v705, 64
      %v942 = vpop.permute.xlu0 %941
      %943 = vrot.lane.b32.xlu0 %v707, 64
      %v944 = vpop.permute.xlu0 %943
      %945 = vrot.lane.b32.xlu0 %v710, 64
      %v946 = vpop.permute.xlu0 %945
      %947 = vrot.lane.b32.xlu0 %v712, 64
      %v948 = vpop.permute.xlu0 %947
      %981 = vrot.lane.b32.xlu0 %v486, 96
      %v982 = vpop.permute.xlu0 %981
      %983 = vrot.lane.b32.xlu0 %v390, 96
      %v984 = vpop.permute.xlu0 %983
      %985 = vrot.lane.b32.xlu0 %v487, 96
      %v986 = vpop.permute.xlu0 %985
      %987 = vrot.lane.b32.xlu0 %v393, 96
      %v988 = vpop.permute.xlu0 %987
      %989 = vrot.lane.b32.xlu0 %v488, 96
      %v990 = vpop.permute.xlu0 %989
      %991 = vrot.lane.b32.xlu0 %v396, 96
      %v992 = vpop.permute.xlu0 %991
      %993 = vrot.lane.b32.xlu0 %v489, 96
      %v994 = vpop.permute.xlu0 %993
      %995 = vrot.lane.b32.xlu0 %v399, 96
      %v996 = vpop.permute.xlu0 %995
      %997 = vrot.lane.b32.xlu0 %v490, 96
      %v998 = vpop.permute.xlu0 %997
      %999 = vrot.lane.b32.xlu0 %v402, 96
      %v1000 = vpop.permute.xlu0 %999
      %1001 = vrot.lane.b32.xlu0 %v491, 96
      %v1002 = vpop.permute.xlu0 %1001
      %1003 = vrot.lane.b32.xlu0 %v405, 96
      %v1004 = vpop.permute.xlu0 %1003
      %1005 = vrot.lane.b32.xlu0 %v492, 96
      %v1006 = vpop.permute.xlu0 %1005
      %1007 = vrot.lane.b32.xlu0 %v408, 96
      %v1008 = vpop.permute.xlu0 %1007
      %1009 = vrot.lane.b32.xlu0 %v493, 96
      %v1010 = vpop.permute.xlu0 %1009
      %1011 = vrot.lane.b32.xlu0 %v411, 96
      %v1012 = vpop.permute.xlu0 %1011
      %1013 = vrot.lane.b32.xlu0 %v494, 96
      %v1014 = vpop.permute.xlu0 %1013
      %1015 = vrot.lane.b32.xlu0 %v414, 96
      %v1016 = vpop.permute.xlu0 %1015
      %1017 = vrot.lane.b32.xlu0 %v495, 96
      %v1018 = vpop.permute.xlu0 %1017
      %1019 = vrot.lane.b32.xlu0 %v417, 96
      %v1020 = vpop.permute.xlu0 %1019
      %1021 = vrot.lane.b32.xlu0 %v496, 96
      %v1022 = vpop.permute.xlu0 %1021
      %1023 = vrot.lane.b32.xlu0 %v420, 96
      %v1024 = vpop.permute.xlu0 %1023
      %1025 = vrot.lane.b32.xlu0 %v497, 96
      %v1026 = vpop.permute.xlu0 %1025
      %1027 = vrot.lane.b32.xlu0 %v423, 96
      %v1028 = vpop.permute.xlu0 %1027
      %1029 = vrot.lane.b32.xlu0 %v498, 96
      %v1030 = vpop.permute.xlu0 %1029
      %1031 = vrot.lane.b32.xlu0 %v426, 96
      %v1032 = vpop.permute.xlu0 %1031
      %1033 = vrot.lane.b32.xlu0 %v499, 96
      %v1034 = vpop.permute.xlu0 %1033
      %1035 = vrot.lane.b32.xlu0 %v429, 96
      %v1036 = vpop.permute.xlu0 %1035
      %1037 = vrot.lane.b32.xlu0 %v500, 96
      %v1038 = vpop.permute.xlu0 %1037
      %1039 = vrot.lane.b32.xlu0 %v432, 96
      %v1040 = vpop.permute.xlu0 %1039
      %1041 = vrot.lane.b32.xlu0 %v501, 96
      %v1042 = vpop.permute.xlu0 %1041
      %1043 = vrot.lane.b32.xlu0 %v435, 96
      %v1044 = vpop.permute.xlu0 %1043
      %1077 = vrot.lane.b32.xlu0 %v640, 32
      %v1078 = vpop.permute.xlu0 %1077
      %1079 = vrot.lane.b32.xlu0 %v642, 32
      %v1080 = vpop.permute.xlu0 %1079
      %1081 = vrot.lane.b32.xlu0 %v645, 32
      %v1082 = vpop.permute.xlu0 %1081
      %1083 = vrot.lane.b32.xlu0 %v647, 32
      %v1084 = vpop.permute.xlu0 %1083
      %1085 = vrot.lane.b32.xlu0 %v650, 32
      %v1086 = vpop.permute.xlu0 %1085
      %1087 = vrot.lane.b32.xlu0 %v652, 32
      %v1088 = vpop.permute.xlu0 %1087
      %1089 = vrot.lane.b32.xlu0 %v655, 32
      %v1090 = vpop.permute.xlu0 %1089
      %1091 = vrot.lane.b32.xlu0 %v657, 32
      %v1092 = vpop.permute.xlu0 %1091
      %1093 = vrot.lane.b32.xlu0 %v660, 32
      %v1094 = vpop.permute.xlu0 %1093
      %1095 = vrot.lane.b32.xlu0 %v662, 32
      %v1096 = vpop.permute.xlu0 %1095
      %1097 = vrot.lane.b32.xlu0 %v665, 32
      %v1098 = vpop.permute.xlu0 %1097
      %1099 = vrot.lane.b32.xlu0 %v667, 32
      %v1100 = vpop.permute.xlu0 %1099
      %1101 = vrot.lane.b32.xlu0 %v670, 32
      %v1102 = vpop.permute.xlu0 %1101
      %1103 = vrot.lane.b32.xlu0 %v672, 32
      %v1104 = vpop.permute.xlu0 %1103
      %1105 = vrot.lane.b32.xlu0 %v675, 32
      %v1106 = vpop.permute.xlu0 %1105
      %1107 = vrot.lane.b32.xlu0 %v677, 32
      %v1108 = vpop.permute.xlu0 %1107
      %1109 = vrot.lane.b32.xlu0 %v680, 32
      %v1110 = vpop.permute.xlu0 %1109
      %1111 = vrot.lane.b32.xlu0 %v682, 32
      %v1112 = vpop.permute.xlu0 %1111
      %1113 = vrot.lane.b32.xlu0 %v685, 32
      %v1114 = vpop.permute.xlu0 %1113
      %1115 = vrot.lane.b32.xlu0 %v687, 32
      %v1116 = vpop.permute.xlu0 %1115
      %1117 = vrot.lane.b32.xlu0 %v690, 32
      %v1118 = vpop.permute.xlu0 %1117
      %1119 = vrot.lane.b32.xlu0 %v692, 32
      %v1120 = vpop.permute.xlu0 %1119
      %1121 = vrot.lane.b32.xlu0 %v695, 32
      %v1122 = vpop.permute.xlu0 %1121
      %1123 = vrot.lane.b32.xlu0 %v697, 32
      %v1124 = vpop.permute.xlu0 %1123
      %1125 = vrot.lane.b32.xlu0 %v700, 32
      %v1126 = vpop.permute.xlu0 %1125
      %1127 = vrot.lane.b32.xlu0 %v702, 32
      %v1128 = vpop.permute.xlu0 %1127
      %1129 = vrot.lane.b32.xlu0 %v705, 32
      %v1130 = vpop.permute.xlu0 %1129
      %1131 = vrot.lane.b32.xlu0 %v707, 32
      %v1132 = vpop.permute.xlu0 %1131
      %1133 = vrot.lane.b32.xlu0 %v710, 32
      %v1134 = vpop.permute.xlu0 %1133
      %1135 = vrot.lane.b32.xlu0 %v712, 32
      %v1136 = vpop.permute.xlu0 %1135
      %1137 = vrot.lane.b32.xlu0 %v754, 32
      %v1138 = vpop.permute.xlu0 %1137
      %1139 = vrot.lane.b32.xlu0 %v756, 32
      %v1140 = vpop.permute.xlu0 %1139
      %1173 = vrot.lane.b32.xlu0 %v487, 64
      %v1174 = vpop.permute.xlu0 %1173
      %1175 = vrot.lane.b32.xlu0 %v393, 64
      %v1176 = vpop.permute.xlu0 %1175
      %1177 = vrot.lane.b32.xlu0 %v488, 64
      %v1178 = vpop.permute.xlu0 %1177
      %1179 = vrot.lane.b32.xlu0 %v396, 64
      %v1180 = vpop.permute.xlu0 %1179
      %1181 = vrot.lane.b32.xlu0 %v489, 64
      %v1182 = vpop.permute.xlu0 %1181
      %1183 = vrot.lane.b32.xlu0 %v399, 64
      %v1184 = vpop.permute.xlu0 %1183
      %1185 = vrot.lane.b32.xlu0 %v490, 64
      %v1186 = vpop.permute.xlu0 %1185
      %1187 = vrot.lane.b32.xlu0 %v402, 64
      %v1188 = vpop.permute.xlu0 %1187
      %1189 = vrot.lane.b32.xlu0 %v491, 64
      %v1190 = vpop.permute.xlu0 %1189
      %1191 = vrot.lane.b32.xlu0 %v405, 64
      %v1192 = vpop.permute.xlu0 %1191
      %1193 = vrot.lane.b32.xlu0 %v492, 64
      %v1194 = vpop.permute.xlu0 %1193
      %1195 = vrot.lane.b32.xlu0 %v408, 64
      %v1196 = vpop.permute.xlu0 %1195
      %1197 = vrot.lane.b32.xlu0 %v493, 64
      %v1198 = vpop.permute.xlu0 %1197
      %1199 = vrot.lane.b32.xlu0 %v411, 64
      %v1200 = vpop.permute.xlu0 %1199
      %1201 = vrot.lane.b32.xlu0 %v494, 64
      %v1202 = vpop.permute.xlu0 %1201
      %1203 = vrot.lane.b32.xlu0 %v414, 64
      %v1204 = vpop.permute.xlu0 %1203
      %1205 = vrot.lane.b32.xlu0 %v495, 64
      %v1206 = vpop.permute.xlu0 %1205
      %1207 = vrot.lane.b32.xlu0 %v417, 64
      %v1208 = vpop.permute.xlu0 %1207
      %1209 = vrot.lane.b32.xlu0 %v496, 64
      %v1210 = vpop.permute.xlu0 %1209
      %1211 = vrot.lane.b32.xlu0 %v420, 64
      %v1212 = vpop.permute.xlu0 %1211
      %1213 = vrot.lane.b32.xlu0 %v497, 64
      %v1214 = vpop.permute.xlu0 %1213
      %1215 = vrot.lane.b32.xlu0 %v423, 64
      %v1216 = vpop.permute.xlu0 %1215
      %1217 = vrot.lane.b32.xlu0 %v498, 64
      %v1218 = vpop.permute.xlu0 %1217
      %1219 = vrot.lane.b32.xlu0 %v426, 64
      %v1220 = vpop.permute.xlu0 %1219
      %1221 = vrot.lane.b32.xlu0 %v499, 64
      %v1222 = vpop.permute.xlu0 %1221
      %1223 = vrot.lane.b32.xlu0 %v429, 64
      %v1224 = vpop.permute.xlu0 %1223
      %1225 = vrot.lane.b32.xlu0 %v500, 64
      %v1226 = vpop.permute.xlu0 %1225
      %1227 = vrot.lane.b32.xlu0 %v432, 64
      %v1228 = vpop.permute.xlu0 %1227
      %1229 = vrot.lane.b32.xlu0 %v501, 64
      %v1230 = vpop.permute.xlu0 %1229
      %1231 = vrot.lane.b32.xlu0 %v435, 64
      %v1232 = vpop.permute.xlu0 %1231
      %1233 = vrot.lane.b32.xlu0 %v485, 64
      %v1234 = vpop.permute.xlu0 %1233
      %1235 = vrot.lane.b32.xlu0 %v387, 64
      %v1236 = vpop.permute.xlu0 %1235
      %1269 = vrot.lane.b32.xlu0 %v564, 96
      %v1270 = vpop.permute.xlu0 %1269
      %1271 = vrot.lane.b32.xlu0 %v566, 96
      %v1272 = vpop.permute.xlu0 %1271
      %1273 = vrot.lane.b32.xlu0 %v569, 96
      %v1274 = vpop.permute.xlu0 %1273
      %1275 = vrot.lane.b32.xlu0 %v571, 96
      %v1276 = vpop.permute.xlu0 %1275
      %1277 = vrot.lane.b32.xlu0 %v574, 96
      %v1278 = vpop.permute.xlu0 %1277
      %1279 = vrot.lane.b32.xlu0 %v576, 96
      %v1280 = vpop.permute.xlu0 %1279
      %1281 = vrot.lane.b32.xlu0 %v579, 96
      %v1282 = vpop.permute.xlu0 %1281
      %1283 = vrot.lane.b32.xlu0 %v581, 96
      %v1284 = vpop.permute.xlu0 %1283
      %1285 = vrot.lane.b32.xlu0 %v584, 96
      %v1286 = vpop.permute.xlu0 %1285
      %1287 = vrot.lane.b32.xlu0 %v586, 96
      %v1288 = vpop.permute.xlu0 %1287
      %1289 = vrot.lane.b32.xlu0 %v589, 96
      %v1290 = vpop.permute.xlu0 %1289
      %1291 = vrot.lane.b32.xlu0 %v591, 96
      %v1292 = vpop.permute.xlu0 %1291
      %1293 = vrot.lane.b32.xlu0 %v594, 96
      %v1294 = vpop.permute.xlu0 %1293
      %1295 = vrot.lane.b32.xlu0 %v596, 96
      %v1296 = vpop.permute.xlu0 %1295
      %1297 = vrot.lane.b32.xlu0 %v599, 96
      %v1298 = vpop.permute.xlu0 %1297
      %1299 = vrot.lane.b32.xlu0 %v601, 96
      %v1300 = vpop.permute.xlu0 %1299
      %1301 = vrot.lane.b32.xlu0 %v604, 96
      %v1302 = vpop.permute.xlu0 %1301
      %1303 = vrot.lane.b32.xlu0 %v606, 96
      %v1304 = vpop.permute.xlu0 %1303
      %1305 = vrot.lane.b32.xlu0 %v609, 96
      %v1306 = vpop.permute.xlu0 %1305
      %1307 = vrot.lane.b32.xlu0 %v611, 96
      %v1308 = vpop.permute.xlu0 %1307
      %1309 = vrot.lane.b32.xlu0 %v614, 96
      %v1310 = vpop.permute.xlu0 %1309
      %1311 = vrot.lane.b32.xlu0 %v616, 96
      %v1312 = vpop.permute.xlu0 %1311
      %1313 = vrot.lane.b32.xlu0 %v619, 96
      %v1314 = vpop.permute.xlu0 %1313
      %1315 = vrot.lane.b32.xlu0 %v621, 96
      %v1316 = vpop.permute.xlu0 %1315
      %1317 = vrot.lane.b32.xlu0 %v624, 96
      %v1318 = vpop.permute.xlu0 %1317
      %1319 = vrot.lane.b32.xlu0 %v626, 96
      %v1320 = vpop.permute.xlu0 %1319
      %1321 = vrot.lane.b32.xlu0 %v629, 96
      %v1322 = vpop.permute.xlu0 %1321
      %1323 = vrot.lane.b32.xlu0 %v631, 96
      %v1324 = vpop.permute.xlu0 %1323
      %1325 = vrot.lane.b32.xlu0 %v717, 96
      %v1326 = vpop.permute.xlu0 %1325
      %1327 = vrot.lane.b32.xlu0 %v719, 96
      %v1328 = vpop.permute.xlu0 %1327
      %1329 = vrot.lane.b32.xlu0 %v554, 96
      %v1330 = vpop.permute.xlu0 %1329
      %1331 = vrot.lane.b32.xlu0 %v556, 96
      %v1332 = vpop.permute.xlu0 %1331
      %vm1365 = vcmask 261120
      %v1366 = vsel %vm1365, %v485, %v790
      %v1367 = vsel %vm1365, %v387, %v792
      %v1368 = vsel %vm1365, %v486, %v794
      %v1369 = vsel %vm1365, %v390, %v796
      %v1370 = vsel %vm1365, %v487, %v798
      %v1371 = vsel %vm1365, %v393, %v800
      %v1372 = vsel %vm1365, %v488, %v802
      %v1373 = vsel %vm1365, %v396, %v804
      %v1374 = vsel %vm1365, %v489, %v806
      %v1375 = vsel %vm1365, %v399, %v808
      %v1376 = vsel %vm1365, %v490, %v810
      %v1377 = vsel %vm1365, %v402, %v812
      %v1378 = vsel %vm1365, %v491, %v814
      %v1379 = vsel %vm1365, %v405, %v816
      %v1380 = vsel %vm1365, %v492, %v818
      %v1381 = vsel %vm1365, %v408, %v820
      %v1382 = vsel %vm1365, %v493, %v822
      %v1383 = vsel %vm1365, %v411, %v824
      %v1384 = vsel %vm1365, %v494, %v826
      %v1385 = vsel %vm1365, %v414, %v828
      %v1386 = vsel %vm1365, %v495, %v830
      %v1387 = vsel %vm1365, %v417, %v832
      %v1388 = vsel %vm1365, %v496, %v834
      %v1389 = vsel %vm1365, %v420, %v836
      %v1390 = vsel %vm1365, %v497, %v838
      %v1391 = vsel %vm1365, %v423, %v840
      %v1392 = vsel %vm1365, %v498, %v842
      %v1393 = vsel %vm1365, %v426, %v844
      %v1394 = vsel %vm1365, %v499, %v846
      %v1395 = vsel %vm1365, %v429, %v848
      %v1396 = vsel %vm1365, %v500, %v850
      %v1397 = vsel %vm1365, %v432, %v852
      %vm1398 = vcmask 523264
      %v1399 = vsel %vm1398, %v1366, %v886
      %v1400 = vsel %vm1398, %v1367, %v888
      %v1401 = vsel %vm1398, %v1368, %v890
      %v1402 = vsel %vm1398, %v1369, %v892
      %v1403 = vsel %vm1398, %v1370, %v894
      %v1404 = vsel %vm1398, %v1371, %v896
      %v1405 = vsel %vm1398, %v1372, %v898
      %v1406 = vsel %vm1398, %v1373, %v900
      %v1407 = vsel %vm1398, %v1374, %v902
      %v1408 = vsel %vm1398, %v1375, %v904
      %v1409 = vsel %vm1398, %v1376, %v906
      %v1410 = vsel %vm1398, %v1377, %v908
      %v1411 = vsel %vm1398, %v1378, %v910
      %v1412 = vsel %vm1398, %v1379, %v912
      %v1413 = vsel %vm1398, %v1380, %v914
      %v1414 = vsel %vm1398, %v1381, %v916
      %v1415 = vsel %vm1398, %v1382, %v918
      %v1416 = vsel %vm1398, %v1383, %v920
      %v1417 = vsel %vm1398, %v1384, %v922
      %v1418 = vsel %vm1398, %v1385, %v924
      %v1419 = vsel %vm1398, %v1386, %v926
      %v1420 = vsel %vm1398, %v1387, %v928
      %v1421 = vsel %vm1398, %v1388, %v930
      %v1422 = vsel %vm1398, %v1389, %v932
      %v1423 = vsel %vm1398, %v1390, %v934
      %v1424 = vsel %vm1398, %v1391, %v936
      %v1425 = vsel %vm1398, %v1392, %v938
      %v1426 = vsel %vm1398, %v1393, %v940
      %v1427 = vsel %vm1398, %v1394, %v942
      %v1428 = vsel %vm1398, %v1395, %v944
      %v1429 = vsel %vm1398, %v1396, %v946
      %v1430 = vsel %vm1398, %v1397, %v948
      %vm1431 = vcmask 785408
      %v1432 = vsel %vm1431, %v1399, %v982
      %v1433 = vsel %vm1431, %v1400, %v984
      %v1434 = vsel %vm1431, %v1401, %v986
      %v1435 = vsel %vm1431, %v1402, %v988
      %v1436 = vsel %vm1431, %v1403, %v990
      %v1437 = vsel %vm1431, %v1404, %v992
      %v1438 = vsel %vm1431, %v1405, %v994
      %v1439 = vsel %vm1431, %v1406, %v996
      %v1440 = vsel %vm1431, %v1407, %v998
      %v1441 = vsel %vm1431, %v1408, %v1000
      %v1442 = vsel %vm1431, %v1409, %v1002
      %v1443 = vsel %vm1431, %v1410, %v1004
      %v1444 = vsel %vm1431, %v1411, %v1006
      %v1445 = vsel %vm1431, %v1412, %v1008
      %v1446 = vsel %vm1431, %v1413, %v1010
      %v1447 = vsel %vm1431, %v1414, %v1012
      %v1448 = vsel %vm1431, %v1415, %v1014
      %v1449 = vsel %vm1431, %v1416, %v1016
      %v1450 = vsel %vm1431, %v1417, %v1018
      %v1451 = vsel %vm1431, %v1418, %v1020
      %v1452 = vsel %vm1431, %v1419, %v1022
      %v1453 = vsel %vm1431, %v1420, %v1024
      %v1454 = vsel %vm1431, %v1421, %v1026
      %v1455 = vsel %vm1431, %v1422, %v1028
      %v1456 = vsel %vm1431, %v1423, %v1030
      %v1457 = vsel %vm1431, %v1424, %v1032
      %v1458 = vsel %vm1431, %v1425, %v1034
      %v1459 = vsel %vm1431, %v1426, %v1036
      %v1460 = vsel %vm1431, %v1427, %v1038
      %v1461 = vsel %vm1431, %v1428, %v1040
      %v1462 = vsel %vm1431, %v1429, %v1042
      %v1463 = vsel %vm1431, %v1430, %v1044
      %v1464 = vsel %vm1365, %v559, %v1078
      %v1465 = vsel %vm1365, %v561, %v1080
      %v1466 = vsel %vm1365, %v564, %v1082
      %v1467 = vsel %vm1365, %v566, %v1084
      %v1468 = vsel %vm1365, %v569, %v1086
      %v1469 = vsel %vm1365, %v571, %v1088
      %v1470 = vsel %vm1365, %v574, %v1090
      %v1471 = vsel %vm1365, %v576, %v1092
      %v1472 = vsel %vm1365, %v579, %v1094
      %v1473 = vsel %vm1365, %v581, %v1096
      %v1474 = vsel %vm1365, %v584, %v1098
      %v1475 = vsel %vm1365, %v586, %v1100
      %v1476 = vsel %vm1365, %v589, %v1102
      %v1477 = vsel %vm1365, %v591, %v1104
      %v1478 = vsel %vm1365, %v594, %v1106
      %v1479 = vsel %vm1365, %v596, %v1108
      %v1480 = vsel %vm1365, %v599, %v1110
      %v1481 = vsel %vm1365, %v601, %v1112
      %v1482 = vsel %vm1365, %v604, %v1114
      %v1483 = vsel %vm1365, %v606, %v1116
      %v1484 = vsel %vm1365, %v609, %v1118
      %v1485 = vsel %vm1365, %v611, %v1120
      %v1486 = vsel %vm1365, %v614, %v1122
      %v1487 = vsel %vm1365, %v616, %v1124
      %v1488 = vsel %vm1365, %v619, %v1126
      %v1489 = vsel %vm1365, %v621, %v1128
      %v1490 = vsel %vm1365, %v624, %v1130
      %v1491 = vsel %vm1365, %v626, %v1132
      %v1492 = vsel %vm1365, %v629, %v1134
      %v1493 = vsel %vm1365, %v631, %v1136
      %v1494 = vsel %vm1365, %v717, %v1138
      %v1495 = vsel %vm1365, %v719, %v1140
      %v1496 = vsel %vm1398, %v1464, %v1174
      %v1497 = vsel %vm1398, %v1465, %v1176
      %v1498 = vsel %vm1398, %v1466, %v1178
      %v1499 = vsel %vm1398, %v1467, %v1180
      %v1500 = vsel %vm1398, %v1468, %v1182
      %v1501 = vsel %vm1398, %v1469, %v1184
      %v1502 = vsel %vm1398, %v1470, %v1186
      %v1503 = vsel %vm1398, %v1471, %v1188
      %v1504 = vsel %vm1398, %v1472, %v1190
      %v1505 = vsel %vm1398, %v1473, %v1192
      %v1506 = vsel %vm1398, %v1474, %v1194
      %v1507 = vsel %vm1398, %v1475, %v1196
      %v1508 = vsel %vm1398, %v1476, %v1198
      %v1509 = vsel %vm1398, %v1477, %v1200
      %v1510 = vsel %vm1398, %v1478, %v1202
      %v1511 = vsel %vm1398, %v1479, %v1204
      %v1512 = vsel %vm1398, %v1480, %v1206
      %v1513 = vsel %vm1398, %v1481, %v1208
      %v1514 = vsel %vm1398, %v1482, %v1210
      %v1515 = vsel %vm1398, %v1483, %v1212
      %v1516 = vsel %vm1398, %v1484, %v1214
      %v1517 = vsel %vm1398, %v1485, %v1216
      %v1518 = vsel %vm1398, %v1486, %v1218
      %v1519 = vsel %vm1398, %v1487, %v1220
      %v1520 = vsel %vm1398, %v1488, %v1222
      %v1521 = vsel %vm1398, %v1489, %v1224
      %v1522 = vsel %vm1398, %v1490, %v1226
      %v1523 = vsel %vm1398, %v1491, %v1228
      %v1524 = vsel %vm1398, %v1492, %v1230
      %v1525 = vsel %vm1398, %v1493, %v1232
      %v1526 = vsel %vm1398, %v1494, %v1234
      %v1527 = vsel %vm1398, %v1495, %v1236
      %v1528 = vsel %vm1431, %v1496, %v1270
      %v1529 = vsel %vm1431, %v1497, %v1272
      %v1530 = vsel %vm1431, %v1498, %v1274
      %v1531 = vsel %vm1431, %v1499, %v1276
      %v1532 = vsel %vm1431, %v1500, %v1278
      %v1533 = vsel %vm1431, %v1501, %v1280
      %v1534 = vsel %vm1431, %v1502, %v1282
      %v1535 = vsel %vm1431, %v1503, %v1284
      %v1536 = vsel %vm1431, %v1504, %v1286
      %v1537 = vsel %vm1431, %v1505, %v1288
      %v1538 = vsel %vm1431, %v1506, %v1290
      %v1539 = vsel %vm1431, %v1507, %v1292
      %v1540 = vsel %vm1431, %v1508, %v1294
      %v1541 = vsel %vm1431, %v1509, %v1296
      %v1542 = vsel %vm1431, %v1510, %v1298
      %v1543 = vsel %vm1431, %v1511, %v1300
      %v1544 = vsel %vm1431, %v1512, %v1302
      %v1545 = vsel %vm1431, %v1513, %v1304
      %v1546 = vsel %vm1431, %v1514, %v1306
      %v1547 = vsel %vm1431, %v1515, %v1308
      %v1548 = vsel %vm1431, %v1516, %v1310
      %v1549 = vsel %vm1431, %v1517, %v1312
      %v1550 = vsel %vm1431, %v1518, %v1314
      %v1551 = vsel %vm1431, %v1519, %v1316
      %v1552 = vsel %vm1431, %v1520, %v1318
      %v1553 = vsel %vm1431, %v1521, %v1320
      %v1554 = vsel %vm1431, %v1522, %v1322
      %v1555 = vsel %vm1431, %v1523, %v1324
      %v1556 = vsel %vm1431, %v1524, %v1326
      %v1557 = vsel %vm1431, %v1525, %v1328
      %v1558 = vsel %vm1431, %v1526, %v1330
      %v1559 = vsel %vm1431, %v1527, %v1332
      %v1560 = vpack.c.bf16 %v1433, %v1432
      %v1561 = vpack.c.bf16 %v1529, %v1528
      %v1562 = vpack.c.bf16 %v647, %v645
      %v1563 = vpack.c.bf16 %v1435, %v1434
      %v1564 = vpack.c.bf16 %v1531, %v1530
      %v1565 = vpack.c.bf16 %v652, %v650
      %v1566 = vpack.c.bf16 %v1437, %v1436
      %v1567 = vpack.c.bf16 %v1533, %v1532
      %v1568 = vpack.c.bf16 %v657, %v655
      %v1569 = vpack.c.bf16 %v1439, %v1438
      %v1570 = vpack.c.bf16 %v1535, %v1534
      %v1571 = vpack.c.bf16 %v662, %v660
      %v1572 = vpack.c.bf16 %v1441, %v1440
      %v1573 = vpack.c.bf16 %v1537, %v1536
      %v1574 = vpack.c.bf16 %v667, %v665
      %v1575 = vpack.c.bf16 %v1443, %v1442
      %v1576 = vpack.c.bf16 %v1539, %v1538
      %v1577 = vpack.c.bf16 %v672, %v670
      %v1578 = vpack.c.bf16 %v1445, %v1444
      %v1579 = vpack.c.bf16 %v1541, %v1540
      %v1580 = vpack.c.bf16 %v677, %v675
      %v1581 = vpack.c.bf16 %v1447, %v1446
      %v1582 = vpack.c.bf16 %v1543, %v1542
      %v1583 = vpack.c.bf16 %v682, %v680
      %v1584 = vpack.c.bf16 %v1449, %v1448
      %v1585 = vpack.c.bf16 %v1545, %v1544
      %v1586 = vpack.c.bf16 %v687, %v685
      %v1587 = vpack.c.bf16 %v1451, %v1450
      %v1588 = vpack.c.bf16 %v1547, %v1546
      %v1589 = vpack.c.bf16 %v692, %v690
      %v1590 = vpack.c.bf16 %v1453, %v1452
      %v1591 = vpack.c.bf16 %v1549, %v1548
      %v1592 = vpack.c.bf16 %v697, %v695
      %v1593 = vpack.c.bf16 %v1455, %v1454
      %v1594 = vpack.c.bf16 %v1551, %v1550
      %v1595 = vpack.c.bf16 %v702, %v700
      %v1596 = vpack.c.bf16 %v1457, %v1456
      %v1597 = vpack.c.bf16 %v1553, %v1552
      %v1598 = vpack.c.bf16 %v707, %v705
      %v1599 = vpack.c.bf16 %v1459, %v1458
      %v1600 = vpack.c.bf16 %v1555, %v1554
      %v1601 = vpack.c.bf16 %v712, %v710
      %v1602 = vpack.c.bf16 %v1461, %v1460
      %v1603 = vpack.c.bf16 %v1557, %v1556
      %v1604 = vpack.c.bf16 %v756, %v754
      %v1605 = vpack.c.bf16 %v1463, %v1462
      %v1606 = vpack.c.bf16 %v1559, %v1558
      %v1607 = vpack.c.bf16 %v637, %v635
      %v1608 = vld [vmem:[%s1] sm:$0xf]
      %v1609 = vld [vmem:[%s1 + $0x4] sm:$0xf]
      %v1610 = vld [vmem:[%s1 + $0x8] sm:$0xf]
      %v1611 = vld [vmem:[%s1 + $0xc] sm:$0xf]
      %v1612 = vld [vmem:[%s1 + $0x10] sm:$0xf]
      %v1613 = vld [vmem:[%s1 + $0x14] sm:$0xf]
      %v1614 = vld [vmem:[%s1 + $0x18] sm:$0xf]
      %v1615 = vld [vmem:[%s1 + $0x1c] sm:$0xf]
      %v1616 = vld [vmem:[%s1 + $0x20] sm:$0xf]
      %v1617 = vld [vmem:[%s1 + $0x24] sm:$0xf]
      %v1618 = vld [vmem:[%s1 + $0x28] sm:$0xf]
      %v1619 = vld [vmem:[%s1 + $0x2c] sm:$0xf]
      %v1620 = vld [vmem:[%s1 + $0x30] sm:$0xf]
      %v1621 = vld [vmem:[%s1 + $0x34] sm:$0xf]
      %v1622 = vld [vmem:[%s1 + $0x38] sm:$0xf]
      %v1623 = vld [vmem:[%s1 + $0x3c] sm:$0xf]
      %v1624 = vld [vmem:[%s1 + $0x40] sm:$0xf]
      %v1625 = vld [vmem:[%s1 + $0x44] sm:$0xf]
      %v1626 = vld [vmem:[%s1 + $0x48] sm:$0xf]
      %v1627 = vld [vmem:[%s1 + $0x4c] sm:$0xf]
      %v1628 = vld [vmem:[%s1 + $0x50] sm:$0xf]
      %v1629 = vld [vmem:[%s1 + $0x54] sm:$0xf]
      %v1630 = vld [vmem:[%s1 + $0x58] sm:$0xf]
      %v1631 = vld [vmem:[%s1 + $0x5c] sm:$0xf]
      %v1632 = vld [vmem:[%s1 + $0x60] sm:$0xf]
      %v1633 = vld [vmem:[%s1 + $0x64] sm:$0xf]
      %v1634 = vld [vmem:[%s1 + $0x68] sm:$0xf]
      %v1635 = vld [vmem:[%s1 + $0x6c] sm:$0xf]
      %v1636 = vld [vmem:[%s1 + $0x70] sm:$0xf]
      %v1637 = vld [vmem:[%s1 + $0x74] sm:$0xf]
      %v1638 = vld [vmem:[%s1 + $0x78] sm:$0xf]
      %v1639 = vld [vmem:[%s1 + $0x7c] sm:$0xf]
      %v1640 = vld [vmem:[%s1 + $0x80] sm:$0xf]
      %v1641 = vld [vmem:[%s1 + $0x84] sm:$0xf]
      %v1642 = vld [vmem:[%s1 + $0x88] sm:$0xf]
      %v1643 = vld [vmem:[%s1 + $0x8c] sm:$0xf]
      %v1644 = vld [vmem:[%s2] sm:$0x1]
      %v1646 = vlaneseq
      %v1647 = vshrl.u32 %v1646, 7
      %v1648 = vsub.s32 0, %v1647
      %v1649 = vrot.slane %v1644, %v1648
      %v1687 = vunpack.c.l.b16 %v1608
      %v1688 = vunpack.c.l.b16 %v1609
      %v1689 = vunpack.c.l.b16 %v1610
      %v1690 = vunpack.c.l.b16 %v1611
      %v1691 = vunpack.c.l.b16 %v1612
      %v1692 = vunpack.c.l.b16 %v1613
      %v1693 = vunpack.c.l.b16 %v1614
      %v1694 = vunpack.c.l.b16 %v1615
      %v1695 = vunpack.c.l.b16 %v1616
      %v1696 = vunpack.c.l.b16 %v1617
      %v1697 = vunpack.c.l.b16 %v1618
      %v1698 = vunpack.c.l.b16 %v1619
      %v1699 = vunpack.c.l.b16 %v1620
      %v1700 = vunpack.c.l.b16 %v1621
      %v1701 = vunpack.c.l.b16 %v1622
      %v1702 = vunpack.c.l.b16 %v1623
      %v1703 = vunpack.c.l.b16 %v1624
      %v1704 = vunpack.c.l.b16 %v1625
      %v1705 = vunpack.c.l.b16 %v1626
      %v1706 = vunpack.c.l.b16 %v1627
      %v1707 = vunpack.c.l.b16 %v1628
      %v1708 = vunpack.c.l.b16 %v1629
      %v1709 = vunpack.c.l.b16 %v1630
      %v1710 = vunpack.c.l.b16 %v1631
      %v1711 = vunpack.c.l.b16 %v1632
      %v1712 = vunpack.c.l.b16 %v1633
      %v1713 = vunpack.c.l.b16 %v1634
      %v1714 = vunpack.c.l.b16 %v1635
      %v1715 = vunpack.c.l.b16 %v1636
      %v1716 = vunpack.c.l.b16 %v1637
      %v1717 = vunpack.c.l.b16 %v1638
      %v1718 = vunpack.c.l.b16 %v1639
      %v1719 = vunpack.c.l.b16 %v1640
      %v1720 = vunpack.c.l.b16 %v1641
      %v1721 = vunpack.c.l.b16 %v1642
      %v1722 = vunpack.c.l.b16 %v1643
      %v1723 = vpack.c.b16 %v1688, %v1687
      %v1724 = vpack.c.b16 %v1690, %v1689
      %v1725 = vpack.c.b16 %v1692, %v1691
      %v1726 = vpack.c.b16 %v1694, %v1693
      %v1727 = vpack.c.b16 %v1696, %v1695
      %v1728 = vpack.c.b16 %v1698, %v1697
      %v1729 = vpack.c.b16 %v1700, %v1699
      %v1730 = vpack.c.b16 %v1702, %v1701
      %v1731 = vpack.c.b16 %v1704, %v1703
      %v1732 = vpack.c.b16 %v1706, %v1705
      %v1733 = vpack.c.b16 %v1708, %v1707
      %v1734 = vpack.c.b16 %v1710, %v1709
      %v1735 = vpack.c.b16 %v1712, %v1711
      %v1736 = vpack.c.b16 %v1714, %v1713
      %v1737 = vpack.c.b16 %v1716, %v1715
      %v1738 = vpack.c.b16 %v1718, %v1717
      %v1739 = vpack.c.b16 %v1720, %v1719
      %v1740 = vpack.c.b16 %v1722, %v1721
      %v1760 = vsel %vm1365, %v1562, 0
      %v1763 = vsel %vm1365, %v1565, 0
      %v1766 = vsel %vm1365, %v1568, 0
      %v1769 = vsel %vm1365, %v1571, 0
      %v1772 = vsel %vm1365, %v1574, 0
      %v1775 = vsel %vm1365, %v1577, 0
      %v1778 = vsel %vm1365, %v1580, 0
      %v1781 = vsel %vm1365, %v1583, 0
      %v1784 = vsel %vm1365, %v1586, 0
      %v1787 = vsel %vm1365, %v1589, 0
      %v1790 = vsel %vm1365, %v1592, 0
      %v1793 = vsel %vm1365, %v1595, 0
      %v1796 = vsel %vm1365, %v1598, 0
      %v1799 = vsel %vm1365, %v1601, 0
      %v1802 = vsel %vm1365, %v1604, 0
      %v1805 = vsel %vm1365, %v1607, 0
      %1807 = vmatprep.subr.bf16.mxu0 0
      %1808 = vmatpush1.bf16.msra.mxu0 %v1723
      %1809 = vmatprep.subr.bf16.mxu0 0
      %1810 = vmatpush1.bf16.msra.mxu0 %v1724
      %1811 = vmatprep.subr.bf16.mxu0 0
      %1812 = vmatpush1.bf16.msra.mxu0 %v1725
      %1813 = vmatprep.subr.bf16.mxu0 0
      %1814 = vmatpush1.bf16.msra.mxu0 %v1726
      %1815 = vmatprep.subr.bf16.mxu0 0
      %1816 = vmatpush1.bf16.msra.mxu0 %v1727
      %1817 = vmatprep.subr.bf16.mxu0 0
      %1818 = vmatpush1.bf16.msra.mxu0 %v1728
      %1819 = vmatprep.subr.bf16.mxu0 0
      %1820 = vmatpush1.bf16.msra.mxu0 %v1729
      %1821 = vmatprep.subr.bf16.mxu0 0
      %1822 = vmatpush1.bf16.msra.mxu0 %v1730
      %1823 = vmatprep.subr.bf16.mxu0 0
      %1824 = vmatpush1.bf16.msra.mxu0 %v1731
      %1825 = vmatprep.subr.bf16.mxu0 0
      %1826 = vmatpush1.bf16.msra.mxu0 %v1732
      %1827 = vmatprep.subr.bf16.mxu0 0
      %1828 = vmatpush1.bf16.msra.mxu0 %v1733
      %1829 = vmatprep.subr.bf16.mxu0 0
      %1830 = vmatpush1.bf16.msra.mxu0 %v1734
      %1831 = vmatprep.subr.bf16.mxu0 0
      %1832 = vmatpush1.bf16.msra.mxu0 %v1735
      %1833 = vmatprep.subr.bf16.mxu0 0
      %1834 = vmatpush1.bf16.msra.mxu0 %v1736
      %1835 = vmatprep.subr.bf16.mxu0 0
      %1836 = vmatpush1.bf16.msra.mxu0 %v1737
      %1837 = vmatprep.subr.bf16.mxu0 0
      %1838 = vmatpush1.bf16.msra.mxu0 %v1738
      %1839 = vmatprep.mubr.bf16.mxu0 %v1561
      %1840 = vmatmul.mubr.bf16.gmra.mrb[0].mxu0 %v1560
      %v1841 = vpop.f32.mrb[0].mxu0
      %v1842 = vadd.f32 %v1649, %v1841
      %v1843 = vpop.f32.mrb[0].mxu0
      %v1844 = vpop.f32.mrb[0].mxu0
      %v1845 = vadd.f32 %v1649, %v1844
      %v1846 = vpop.f32.mrb[0].mxu0
      %1847 = vmatprep.mubr.bf16.mxu0 %v1564
      %1848 = vmatmul.mubr.bf16.gmra.mrb[0].mxu0 %v1563
      %v1849 = vpop.f32.mrb[0].mxu0
      %v1850 = vadd.f32 %v1649, %v1849
      %v1851 = vpop.f32.mrb[0].mxu0
      %v1852 = vpop.f32.mrb[0].mxu0
      %v1853 = vadd.f32 %v1649, %v1852
      %v1854 = vpop.f32.mrb[0].mxu0
      %1855 = vmatprep.mubr.bf16.mxu0 %v1567
      %1856 = vmatmul.mubr.bf16.gmra.mrb[0].mxu0 %v1566
      %v1857 = vpop.f32.mrb[0].mxu0
      %v1858 = vadd.f32 %v1649, %v1857
      %v1859 = vpop.f32.mrb[0].mxu0
      %v1860 = vpop.f32.mrb[0].mxu0
      %v1861 = vadd.f32 %v1649, %v1860
      %v1862 = vpop.f32.mrb[0].mxu0
      %1863 = vmatprep.mubr.bf16.mxu0 %v1570
      %1864 = vmatmul.mubr.bf16.gmra.mrb[0].mxu0 %v1569
      %v1865 = vpop.f32.mrb[0].mxu0
      %v1866 = vadd.f32 %v1649, %v1865
      %v1867 = vpop.f32.mrb[0].mxu0
      %v1868 = vpop.f32.mrb[0].mxu0
      %v1869 = vadd.f32 %v1649, %v1868
      %v1870 = vpop.f32.mrb[0].mxu0
      %1871 = vmatprep.mubr.bf16.mxu0 %v1573
      %1872 = vmatmul.mubr.bf16.gmra.mrb[0].mxu0 %v1572
      %v1873 = vpop.f32.mrb[0].mxu0
      %v1874 = vadd.f32 %v1649, %v1873
      %v1875 = vpop.f32.mrb[0].mxu0
      %v1876 = vpop.f32.mrb[0].mxu0
      %v1877 = vadd.f32 %v1649, %v1876
      %v1878 = vpop.f32.mrb[0].mxu0
      %1879 = vmatprep.mubr.bf16.mxu0 %v1576
      %1880 = vmatmul.mubr.bf16.gmra.mrb[0].mxu0 %v1575
      %v1881 = vpop.f32.mrb[0].mxu0
      %v1882 = vadd.f32 %v1649, %v1881
      %v1883 = vpop.f32.mrb[0].mxu0
      %v1884 = vpop.f32.mrb[0].mxu0
      %v1885 = vadd.f32 %v1649, %v1884
      %v1886 = vpop.f32.mrb[0].mxu0
      %1887 = vmatprep.mubr.bf16.mxu0 %v1579
      %1888 = vmatmul.mubr.bf16.gmra.mrb[0].mxu0 %v1578
      %v1889 = vpop.f32.mrb[0].mxu0
      %v1890 = vadd.f32 %v1649, %v1889
      %v1891 = vpop.f32.mrb[0].mxu0
      %v1892 = vpop.f32.mrb[0].mxu0
      %v1893 = vadd.f32 %v1649, %v1892
      %v1894 = vpop.f32.mrb[0].mxu0
      %1895 = vmatprep.mubr.bf16.mxu0 %v1582
      %1896 = vmatmul.mubr.bf16.gmra.mrb[0].mxu0 %v1581
      %v1897 = vpop.f32.mrb[0].mxu0
      %v1898 = vadd.f32 %v1649, %v1897
      %v1899 = vpop.f32.mrb[0].mxu0
      %v1900 = vpop.f32.mrb[0].mxu0
      %v1901 = vadd.f32 %v1649, %v1900
      %v1902 = vpop.f32.mrb[0].mxu0
      %1903 = vmatprep.mubr.bf16.mxu0 %v1585
      %1904 = vmatmul.mubr.bf16.gmra.mrb[0].mxu0 %v1584
      %v1905 = vpop.f32.mrb[0].mxu0
      %v1906 = vadd.f32 %v1649, %v1905
      %v1907 = vpop.f32.mrb[0].mxu0
      %v1908 = vpop.f32.mrb[0].mxu0
      %v1909 = vadd.f32 %v1649, %v1908
      %v1910 = vpop.f32.mrb[0].mxu0
      %1911 = vmatprep.mubr.bf16.mxu0 %v1588
      %1912 = vmatmul.mubr.bf16.gmra.mrb[0].mxu0 %v1587
      %v1913 = vpop.f32.mrb[0].mxu0
      %v1914 = vadd.f32 %v1649, %v1913
      %v1915 = vpop.f32.mrb[0].mxu0
      %v1916 = vpop.f32.mrb[0].mxu0
      %v1917 = vadd.f32 %v1649, %v1916
      %v1918 = vpop.f32.mrb[0].mxu0
      %1919 = vmatprep.mubr.bf16.mxu0 %v1591
      %1920 = vmatmul.mubr.bf16.gmra.mrb[0].mxu0 %v1590
      %v1921 = vpop.f32.mrb[0].mxu0
      %v1922 = vadd.f32 %v1649, %v1921
      %v1923 = vpop.f32.mrb[0].mxu0
      %v1924 = vpop.f32.mrb[0].mxu0
      %v1925 = vadd.f32 %v1649, %v1924
      %v1926 = vpop.f32.mrb[0].mxu0
      %1927 = vmatprep.mubr.bf16.mxu0 %v1594
      %1928 = vmatmul.mubr.bf16.gmra.mrb[0].mxu0 %v1593
      %v1929 = vpop.f32.mrb[0].mxu0
      %v1930 = vadd.f32 %v1649, %v1929
      %v1931 = vpop.f32.mrb[0].mxu0
      %v1932 = vpop.f32.mrb[0].mxu0
      %v1933 = vadd.f32 %v1649, %v1932
      %v1934 = vpop.f32.mrb[0].mxu0
      %1935 = vmatprep.mubr.bf16.mxu0 %v1597
      %1936 = vmatmul.mubr.bf16.gmra.mrb[0].mxu0 %v1596
      %v1937 = vpop.f32.mrb[0].mxu0
      %v1938 = vadd.f32 %v1649, %v1937
      %v1939 = vpop.f32.mrb[0].mxu0
      %v1940 = vpop.f32.mrb[0].mxu0
      %v1941 = vadd.f32 %v1649, %v1940
      %v1942 = vpop.f32.mrb[0].mxu0
      %1943 = vmatprep.mubr.bf16.mxu0 %v1600
      %1944 = vmatmul.mubr.bf16.gmra.mrb[0].mxu0 %v1599
      %v1945 = vpop.f32.mrb[0].mxu0
      %v1946 = vadd.f32 %v1649, %v1945
      %v1947 = vpop.f32.mrb[0].mxu0
      %v1948 = vpop.f32.mrb[0].mxu0
      %v1949 = vadd.f32 %v1649, %v1948
      %v1950 = vpop.f32.mrb[0].mxu0
      %1951 = vmatprep.mubr.bf16.mxu0 %v1603
      %1952 = vmatmul.mubr.bf16.gmra.mrb[0].mxu0 %v1602
      %v1953 = vpop.f32.mrb[0].mxu0
      %v1954 = vadd.f32 %v1649, %v1953
      %v1955 = vpop.f32.mrb[0].mxu0
      %v1956 = vpop.f32.mrb[0].mxu0
      %v1957 = vadd.f32 %v1649, %v1956
      %v1958 = vpop.f32.mrb[0].mxu0
      %1959 = vmatprep.mubr.bf16.mxu0 %v1606
      %1960 = vmatmul.mubr.bf16.gmra.mrb[0].mxu0 %v1605
      %v1961 = vpop.f32.mrb[0].mxu0
      %v1962 = vadd.f32 %v1649, %v1961
      %v1963 = vpop.f32.mrb[0].mxu0
      %v1964 = vpop.f32.mrb[0].mxu0
      %v1965 = vadd.f32 %v1649, %v1964
      %v1966 = vpop.f32.mrb[0].mxu0
      %1967 = vdwg.mxu0
      %1968 = vmatprep.subr.bf16.mxu0 0
      %1969 = vmatpush1.bf16.msra.mxu0 %v1739
      %1970 = vmatprep.subr.bf16.mxu0 0
      %1971 = vmatpush1.bf16.msra.mxu0 %v1740
      %1972 = vmatprep.subr.bf16.mxu0 0
      %1973 = vmatpush1.bf16.msra.mxu0 0
      %1974 = vmatprep.subr.bf16.mxu0 0
      %1975 = vmatpush1.bf16.msra.mxu0 0
      %1976 = vmatprep.subr.bf16.mxu0 0
      %1977 = vmatpush1.bf16.msra.mxu0 0
      %1978 = vmatprep.subr.bf16.mxu0 0
      %1979 = vmatpush1.bf16.msra.mxu0 0
      %1980 = vmatprep.subr.bf16.mxu0 0
      %1981 = vmatpush1.bf16.msra.mxu0 0
      %1982 = vmatprep.subr.bf16.mxu0 0
      %1983 = vmatpush1.bf16.msra.mxu0 0
      %1984 = vmatprep.subr.bf16.mxu0 0
      %1985 = vmatpush1.bf16.msra.mxu0 0
      %1986 = vmatprep.subr.bf16.mxu0 0
      %1987 = vmatpush1.bf16.msra.mxu0 0
      %1988 = vmatprep.subr.bf16.mxu0 0
      %1989 = vmatpush1.bf16.msra.mxu0 0
      %1990 = vmatprep.subr.bf16.mxu0 0
      %1991 = vmatpush1.bf16.msra.mxu0 0
      %1992 = vmatprep.subr.bf16.mxu0 0
      %1993 = vmatpush1.bf16.msra.mxu0 0
      %1994 = vmatprep.subr.bf16.mxu0 0
      %1995 = vmatpush1.bf16.msra.mxu0 0
      %1996 = vmatprep.subr.bf16.mxu0 0
      %1997 = vmatpush1.bf16.msra.mxu0 0
      %1998 = vmatprep.subr.bf16.mxu0 0
      %1999 = vmatpush1.bf16.msra.mxu0 0
      %2000 = vmatprep.mubr.bf16.mxu0 0
      %2001 = vmatmul.mubr.bf16.gmra.mrb[0].mxu0 %v1760
      %v2002 = vpop.f32.mrb[0].mxu0
      %v2003 = vadd.f32 %v1842, %v2002
      %v2004 = vpop.f32.mrb[0].mxu0
      %v2005 = vpop.f32.mrb[0].mxu0
      %v2006 = vadd.f32 %v1845, %v2005
      %v2007 = vpop.f32.mrb[0].mxu0
      %2008 = vmatprep.mubr.bf16.mxu0 0
      %2009 = vmatmul.mubr.bf16.gmra.mrb[0].mxu0 %v1763
      %v2010 = vpop.f32.mrb[0].mxu0
      %v2011 = vadd.f32 %v1850, %v2010
      %v2012 = vpop.f32.mrb[0].mxu0
      %v2013 = vpop.f32.mrb[0].mxu0
      %v2014 = vadd.f32 %v1853, %v2013
      %v2015 = vpop.f32.mrb[0].mxu0
      %2016 = vmatprep.mubr.bf16.mxu0 0
      %2017 = vmatmul.mubr.bf16.gmra.mrb[0].mxu0 %v1766
      %v2018 = vpop.f32.mrb[0].mxu0
      %v2019 = vadd.f32 %v1858, %v2018
      %v2020 = vpop.f32.mrb[0].mxu0
      %v2021 = vpop.f32.mrb[0].mxu0
      %v2022 = vadd.f32 %v1861, %v2021
      %v2023 = vpop.f32.mrb[0].mxu0
      %2024 = vmatprep.mubr.bf16.mxu0 0
      %2025 = vmatmul.mubr.bf16.gmra.mrb[0].mxu0 %v1769
      %v2026 = vpop.f32.mrb[0].mxu0
      %v2027 = vadd.f32 %v1866, %v2026
      %v2028 = vpop.f32.mrb[0].mxu0
      %v2029 = vpop.f32.mrb[0].mxu0
      %v2030 = vadd.f32 %v1869, %v2029
      %v2031 = vpop.f32.mrb[0].mxu0
      %2032 = vmatprep.mubr.bf16.mxu0 0
      %2033 = vmatmul.mubr.bf16.gmra.mrb[0].mxu0 %v1772
      %v2034 = vpop.f32.mrb[0].mxu0
      %v2035 = vadd.f32 %v1874, %v2034
      %v2036 = vpop.f32.mrb[0].mxu0
      %v2037 = vpop.f32.mrb[0].mxu0
      %v2038 = vadd.f32 %v1877, %v2037
      %v2039 = vpop.f32.mrb[0].mxu0
      %2040 = vmatprep.mubr.bf16.mxu0 0
      %2041 = vmatmul.mubr.bf16.gmra.mrb[0].mxu0 %v1775
      %v2042 = vpop.f32.mrb[0].mxu0
      %v2043 = vadd.f32 %v1882, %v2042
      %v2044 = vpop.f32.mrb[0].mxu0
      %v2045 = vpop.f32.mrb[0].mxu0
      %v2046 = vadd.f32 %v1885, %v2045
      %v2047 = vpop.f32.mrb[0].mxu0
      %2048 = vmatprep.mubr.bf16.mxu0 0
      %2049 = vmatmul.mubr.bf16.gmra.mrb[0].mxu0 %v1778
      %v2050 = vpop.f32.mrb[0].mxu0
      %v2051 = vadd.f32 %v1890, %v2050
      %v2052 = vpop.f32.mrb[0].mxu0
      %v2053 = vpop.f32.mrb[0].mxu0
      %v2054 = vadd.f32 %v1893, %v2053
      %v2055 = vpop.f32.mrb[0].mxu0
      %2056 = vmatprep.mubr.bf16.mxu0 0
      %2057 = vmatmul.mubr.bf16.gmra.mrb[0].mxu0 %v1781
      %v2058 = vpop.f32.mrb[0].mxu0
      %v2059 = vadd.f32 %v1898, %v2058
      %v2060 = vpop.f32.mrb[0].mxu0
      %v2061 = vpop.f32.mrb[0].mxu0
      %v2062 = vadd.f32 %v1901, %v2061
      %v2063 = vpop.f32.mrb[0].mxu0
      %2064 = vmatprep.mubr.bf16.mxu0 0
      %2065 = vmatmul.mubr.bf16.gmra.mrb[0].mxu0 %v1784
      %v2066 = vpop.f32.mrb[0].mxu0
      %v2067 = vadd.f32 %v1906, %v2066
      %v2068 = vpop.f32.mrb[0].mxu0
      %v2069 = vpop.f32.mrb[0].mxu0
      %v2070 = vadd.f32 %v1909, %v2069
      %v2071 = vpop.f32.mrb[0].mxu0
      %2072 = vmatprep.mubr.bf16.mxu0 0
      %2073 = vmatmul.mubr.bf16.gmra.mrb[0].mxu0 %v1787
      %v2074 = vpop.f32.mrb[0].mxu0
      %v2075 = vadd.f32 %v1914, %v2074
      %v2076 = vpop.f32.mrb[0].mxu0
      %v2077 = vpop.f32.mrb[0].mxu0
      %v2078 = vadd.f32 %v1917, %v2077
      %v2079 = vpop.f32.mrb[0].mxu0
      %2080 = vmatprep.mubr.bf16.mxu0 0
      %2081 = vmatmul.mubr.bf16.gmra.mrb[0].mxu0 %v1790
      %v2082 = vpop.f32.mrb[0].mxu0
      %v2083 = vadd.f32 %v1922, %v2082
      %v2084 = vpop.f32.mrb[0].mxu0
      %v2085 = vpop.f32.mrb[0].mxu0
      %v2086 = vadd.f32 %v1925, %v2085
      %v2087 = vpop.f32.mrb[0].mxu0
      %2088 = vmatprep.mubr.bf16.mxu0 0
      %2089 = vmatmul.mubr.bf16.gmra.mrb[0].mxu0 %v1793
      %v2090 = vpop.f32.mrb[0].mxu0
      %v2091 = vadd.f32 %v1930, %v2090
      %v2092 = vpop.f32.mrb[0].mxu0
      %v2093 = vpop.f32.mrb[0].mxu0
      %v2094 = vadd.f32 %v1933, %v2093
      %v2095 = vpop.f32.mrb[0].mxu0
      %2096 = vmatprep.mubr.bf16.mxu0 0
      %2097 = vmatmul.mubr.bf16.gmra.mrb[0].mxu0 %v1796
      %v2098 = vpop.f32.mrb[0].mxu0
      %v2099 = vadd.f32 %v1938, %v2098
      %v2100 = vpop.f32.mrb[0].mxu0
      %v2101 = vpop.f32.mrb[0].mxu0
      %v2102 = vadd.f32 %v1941, %v2101
      %v2103 = vpop.f32.mrb[0].mxu0
      %2104 = vmatprep.mubr.bf16.mxu0 0
      %2105 = vmatmul.mubr.bf16.gmra.mrb[0].mxu0 %v1799
      %v2106 = vpop.f32.mrb[0].mxu0
      %v2107 = vadd.f32 %v1946, %v2106
      %v2108 = vpop.f32.mrb[0].mxu0
      %v2109 = vpop.f32.mrb[0].mxu0
      %v2110 = vadd.f32 %v1949, %v2109
      %v2111 = vpop.f32.mrb[0].mxu0
      %2112 = vmatprep.mubr.bf16.mxu0 0
      %2113 = vmatmul.mubr.bf16.gmra.mrb[0].mxu0 %v1802
      %v2114 = vpop.f32.mrb[0].mxu0
      %v2115 = vadd.f32 %v1954, %v2114
      %v2116 = vpop.f32.mrb[0].mxu0
      %v2117 = vpop.f32.mrb[0].mxu0
      %v2118 = vadd.f32 %v1957, %v2117
      %v2119 = vpop.f32.mrb[0].mxu0
      %2120 = vmatprep.mubr.bf16.mxu0 0
      %2121 = vmatmul.mubr.bf16.gmra.mrb[0].mxu0 %v1805
      %v2122 = vpop.f32.mrb[0].mxu0
      %v2123 = vadd.f32 %v1962, %v2122
      %v2124 = vpop.f32.mrb[0].mxu0
      %v2125 = vpop.f32.mrb[0].mxu0
      %v2126 = vadd.f32 %v1965, %v2125
      %v2127 = vpop.f32.mrb[0].mxu0
      %2128 = vdwg.mxu0
      %v2129 = vmax.f32 %v2003, 0.0
      %v2130 = vmax.f32 %v2006, 0.0
      %v2131 = vmax.f32 %v2011, 0.0
      %v2132 = vmax.f32 %v2014, 0.0
      %v2133 = vmax.f32 %v2019, 0.0
      %v2134 = vmax.f32 %v2022, 0.0
      %v2135 = vmax.f32 %v2027, 0.0
      %v2136 = vmax.f32 %v2030, 0.0
      %v2137 = vmax.f32 %v2035, 0.0
      %v2138 = vmax.f32 %v2038, 0.0
      %v2139 = vmax.f32 %v2043, 0.0
      %v2140 = vmax.f32 %v2046, 0.0
      %v2141 = vmax.f32 %v2051, 0.0
      %v2142 = vmax.f32 %v2054, 0.0
      %v2143 = vmax.f32 %v2059, 0.0
      %v2144 = vmax.f32 %v2062, 0.0
      %v2145 = vmax.f32 %v2067, 0.0
      %v2146 = vmax.f32 %v2070, 0.0
      %v2147 = vmax.f32 %v2075, 0.0
      %v2148 = vmax.f32 %v2078, 0.0
      %v2149 = vmax.f32 %v2083, 0.0
      %v2150 = vmax.f32 %v2086, 0.0
      %v2151 = vmax.f32 %v2091, 0.0
      %v2152 = vmax.f32 %v2094, 0.0
      %v2153 = vmax.f32 %v2099, 0.0
      %v2154 = vmax.f32 %v2102, 0.0
      %v2155 = vmax.f32 %v2107, 0.0
      %v2156 = vmax.f32 %v2110, 0.0
      %v2157 = vmax.f32 %v2115, 0.0
      %v2158 = vmax.f32 %v2118, 0.0
      %v2159 = vmax.f32 %v2123, 0.0
      %v2160 = vmax.f32 %v2126, 0.0
      %v2161 = vsel %vm1365, %v2129, 0.0
      %v2162 = vsel %vm1365, %v2130, 0.0
      %v2163 = vadd.f32 %v2161, %v2162
      %v2164 = vsel %vm1365, %v2131, 0.0
      %v2165 = vadd.f32 %v2163, %v2164
      %v2166 = vsel %vm1365, %v2132, 0.0
      %v2167 = vadd.f32 %v2165, %v2166
      %v2168 = vsel %vm1365, %v2133, 0.0
      %v2169 = vadd.f32 %v2167, %v2168
      %v2170 = vsel %vm1365, %v2134, 0.0
      %v2171 = vadd.f32 %v2169, %v2170
      %v2172 = vsel %vm1365, %v2135, 0.0
      %v2173 = vadd.f32 %v2171, %v2172
      %v2174 = vsel %vm1365, %v2136, 0.0
      %v2175 = vadd.f32 %v2173, %v2174
      %v2176 = vsel %vm1365, %v2137, 0.0
      %v2177 = vadd.f32 %v2175, %v2176
      %v2178 = vsel %vm1365, %v2138, 0.0
      %v2179 = vadd.f32 %v2177, %v2178
      %v2180 = vsel %vm1365, %v2139, 0.0
      %v2181 = vadd.f32 %v2179, %v2180
      %v2182 = vsel %vm1365, %v2140, 0.0
      %v2183 = vadd.f32 %v2181, %v2182
      %v2184 = vsel %vm1365, %v2141, 0.0
      %v2185 = vadd.f32 %v2183, %v2184
      %v2186 = vsel %vm1365, %v2142, 0.0
      %v2187 = vadd.f32 %v2185, %v2186
      %v2188 = vsel %vm1365, %v2143, 0.0
      %v2189 = vadd.f32 %v2187, %v2188
      %v2190 = vsel %vm1365, %v2144, 0.0
      %v2191 = vadd.f32 %v2189, %v2190
      %v2192 = vsel %vm1365, %v2145, 0.0
      %v2193 = vadd.f32 %v2191, %v2192
      %v2194 = vsel %vm1365, %v2146, 0.0
      %v2195 = vadd.f32 %v2193, %v2194
      %v2196 = vsel %vm1365, %v2147, 0.0
      %v2197 = vadd.f32 %v2195, %v2196
      %v2198 = vsel %vm1365, %v2148, 0.0
      %v2199 = vadd.f32 %v2197, %v2198
      %v2200 = vsel %vm1365, %v2149, 0.0
      %v2201 = vadd.f32 %v2199, %v2200
      %v2202 = vsel %vm1365, %v2150, 0.0
      %v2203 = vadd.f32 %v2201, %v2202
      %v2204 = vsel %vm1365, %v2151, 0.0
      %v2205 = vadd.f32 %v2203, %v2204
      %v2206 = vsel %vm1365, %v2152, 0.0
      %v2207 = vadd.f32 %v2205, %v2206
      %v2208 = vsel %vm1365, %v2153, 0.0
      %v2209 = vadd.f32 %v2207, %v2208
      %v2210 = vsel %vm1365, %v2154, 0.0
      %v2211 = vadd.f32 %v2209, %v2210
      %v2212 = vsel %vm1365, %v2155, 0.0
      %v2213 = vadd.f32 %v2211, %v2212
      %v2214 = vsel %vm1365, %v2156, 0.0
      %v2215 = vadd.f32 %v2213, %v2214
      %v2216 = vsel %vm1365, %v2157, 0.0
      %v2217 = vadd.f32 %v2215, %v2216
      %v2218 = vsel %vm1365, %v2158, 0.0
      %v2219 = vadd.f32 %v2217, %v2218
      %v2220 = vsel %vm1365, %v2159, 0.0
      %v2221 = vadd.f32 %v2219, %v2220
      %v2222 = vsel %vm1365, %v2160, 0.0
      %v2223 = vadd.f32 %v2221, %v2222
      %v2224 = vrot.slane %v2223, 4
      %v2225 = vadd.f32 %v2223, %v2224
      %v2226 = vrot.slane %v2225, 2
      %v2227 = vadd.f32 %v2225, %v2226
      %v2228 = vrot.slane %v2227, 1
      %v2229 = vadd.f32 %v2227, %v2228
      %v2230 = vrcp.pop 256.0
      %v2231 = vmul.f32 %v2229, %v2230
      %2232 = vxpose.xlu0.b32.start [1/16] %v2231, 128
      %2233 = vxpose.xlu0.b32.cont [2/16] 0.0, 128
      %2234 = vxpose.xlu0.b32.cont [3/16] 0.0, 128
      %2235 = vxpose.xlu0.b32.cont [4/16] 0.0, 128
      %2236 = vxpose.xlu0.b32.cont [5/16] 0.0, 128
      %2237 = vxpose.xlu0.b32.cont [6/16] 0.0, 128
      %2238 = vxpose.xlu0.b32.cont [7/16] 0.0, 128
      %2239 = vxpose.xlu0.b32.cont [8/16] 0.0, 128
      %2240 = vxpose.xlu0.b32.cont [9/16] 0.0, 128
      %2241 = vxpose.xlu0.b32.cont [10/16] 0.0, 128
      %2242 = vxpose.xlu0.b32.cont [11/16] 0.0, 128
      %2243 = vxpose.xlu0.b32.cont [12/16] 0.0, 128
      %2244 = vxpose.xlu0.b32.cont [13/16] 0.0, 128
      %2245 = vxpose.xlu0.b32.cont [14/16] 0.0, 128
      %2246 = vxpose.xlu0.b32.cont [15/16] 0.0, 128
      %2247 = vxpose.xlu0.b32.end [16/16] 0.0, 128
      %v2248 = vpop.trf.xlu0
      %v2249 = vpop.trf.xlu0
      %v2250 = vpop.trf.xlu0
      %v2251 = vpop.trf.xlu0
      %v2252 = vpop.trf.xlu0
      %v2253 = vpop.trf.xlu0
      %v2254 = vpop.trf.xlu0
      %v2255 = vpop.trf.xlu0
      %v2256 = vpop.trf.xlu0
      %v2257 = vpop.trf.xlu0
      %v2258 = vpop.trf.xlu0
      %v2259 = vpop.trf.xlu0
      %v2260 = vpop.trf.xlu0
      %v2261 = vpop.trf.xlu0
      %v2262 = vpop.trf.xlu0
      %v2263 = vpop.trf.xlu0
      %v2264 = vld [vmem:[%s3] sm:$0xff]
      %v2265 = vld [vmem:[%s3 + $0x8] sm:$0xff]
      %v2266 = vld [vmem:[%s3 + $0x10] sm:$0xff]
      %v2267 = vld [vmem:[%s3 + $0x18] sm:$0xff]
      %2269 = vset.pattern.permute.xlu0 0
      %2270 = vperm.xlu0 %2269, %v2248
      %v2271 = vpop.permute.xlu0 %2270
      %2274 = vset.pattern.permute.xlu0 0
      %2275 = vperm.xlu0 %2274, %v2249
      %v2276 = vpop.permute.xlu0 %2275
      %2279 = vset.pattern.permute.xlu0 0
      %2280 = vperm.xlu0 %2279, %v2250
      %v2281 = vpop.permute.xlu0 %2280
      %2284 = vset.pattern.permute.xlu0 0
      %2285 = vperm.xlu0 %2284, %v2251
      %v2286 = vpop.permute.xlu0 %2285
      %v2288 = vmul.f32 %v2264, %v2271
      %v2289 = vmul.f32 %v2265, %v2276
      %v2290 = vmul.f32 %v2266, %v2281
      %v2291 = vmul.f32 %v2267, %v2286
      %vm2292 = vcmask 15360
      %v2293 = vsel %vm2292, %v2288, 0.0
      %v2294 = vsel %vm2292, %v2289, 0.0
      %v2295 = vadd.f32 %v2293, %v2294
      %v2296 = vsel %vm2292, %v2290, 0.0
      %v2297 = vadd.f32 %v2295, %v2296
      %v2298 = vsel %vm2292, %v2291, 0.0
      %v2299 = vadd.f32 %v2297, %v2298
      %v2300 = vrot.slane %v2299, 4
      %v2301 = vadd.f32 %v2299, %v2300
      %v2302 = vrot.slane %v2301, 2
      %v2303 = vadd.f32 %v2301, %v2302
      %v2304 = vrot.slane %v2303, 1
      %v2305 = vadd.f32 %v2303, %v2304
      %v2306 = vld [vmem:[%s4] sm:$0x1]
      %v2307 = vadd.f32 %v2305, %v2306
      %v2308 = vmax.f32 %v2307, 0.0
      %v2309 = vld [vmem:[%s5] sm:$0xff]
      %v2310 = vld [vmem:[%s5 + $0x8] sm:$0xff]
      %v2311 = vld [vmem:[%s5 + $0x10] sm:$0xff]
      %v2312 = vld [vmem:[%s5 + $0x18] sm:$0xff]
      %v2313 = vlaneseq
      %v2314 = vshrl.u32 %v2313, 7
      %v2315 = vsub.s32 0, %v2314
      %v2316 = vrot.slane %v2308, %v2315
      %v2317 = vmul.f32 %v2309, %v2316
      %v2318 = vmul.f32 %v2310, %v2316
      %v2319 = vmul.f32 %v2311, %v2316
      %v2320 = vmul.f32 %v2312, %v2316
      %v2321 = vsel %vm2292, %v2317, 0.0
      %2322 = vadd.xlane.f32.xlu0 %v2321
      %v2323 = vpop.xlane.xlu0 %2322
      %v2324 = vsel %vm2292, %v2318, 0.0
      %2325 = vadd.xlane.f32.xlu0 %v2324
      %v2326 = vpop.xlane.xlu0 %2325
      %v2327 = vsel %vm2292, %v2319, 0.0
      %2328 = vadd.xlane.f32.xlu0 %v2327
      %v2329 = vpop.xlane.xlu0 %2328
      %v2330 = vsel %vm2292, %v2320, 0.0
      %2331 = vadd.xlane.f32.xlu0 %v2330
      %v2332 = vpop.xlane.xlu0 %2331
      %v2333 = vld [vmem:[%s6] sm:$0xff]
      %v2334 = vld [vmem:[%s6 + $0x8] sm:$0xff]
      %v2335 = vld [vmem:[%s6 + $0x10] sm:$0xff]
      %v2336 = vld [vmem:[%s6 + $0x18] sm:$0xff]
      %v2337 = vadd.f32 %v2323, %v2333
      %v2338 = vadd.f32 %v2326, %v2334
      %v2339 = vadd.f32 %v2329, %v2335
      %v2340 = vadd.f32 %v2332, %v2336
      %v2341 = vsub.f32 0.0, %v2337
      %v2342 = vsub.f32 0.0, %v2338
      %v2343 = vsub.f32 0.0, %v2339
      %v2344 = vsub.f32 0.0, %v2340
      %v2345 = vmul.f32 %v2341, 1.442695
      %v2346 = vpow.pop %v2345
      %v2347 = vmul.f32 %v2342, 1.442695
      %v2348 = vpow.pop %v2347
      %v2349 = vmul.f32 %v2343, 1.442695
      %v2350 = vpow.pop %v2349
      %v2351 = vmul.f32 %v2344, 1.442695
      %v2352 = vpow.pop %v2351
      %v2353 = vadd.f32 %v2346, 1.0
      %v2354 = vadd.f32 %v2348, 1.0
      %v2355 = vadd.f32 %v2350, 1.0
      %v2356 = vadd.f32 %v2352, 1.0
      %v2357 = vrcp.pop %v2353
      %v2358 = vmul.f32 1.0, %v2357
      %v2359 = vrcp.pop %v2354
      %v2360 = vmul.f32 1.0, %v2359
      %v2361 = vrcp.pop %v2355
      %v2362 = vmul.f32 1.0, %v2361
      %v2363 = vrcp.pop %v2356
      %v2364 = vmul.f32 1.0, %v2363
      %vm2365 = vcmask 7168
      %2366 = vst.msk [vmem:[%s278] sm:$0xff] %vm2365, %v2358
      %2367 = vst.msk [vmem:[%s278 + $0x8] sm:$0xff] %vm2365, %v2360
      %2368 = vst.msk [vmem:[%s278 + $0x10] sm:$0xff] %vm2365, %v2362
      %2369 = vst.msk [vmem:[%s278 + $0x18] sm:$0xff] %vm2365, %v2364
      %p2370 = scmp.lt.s32.totalorder %s18, 1
      %s2371 = scalar_select %p2370, %s18, 1
      %s2372 = smul.addr %s2371, 4
      %s2373 = smul.addr %s2372, 8
      %s2374 = scalar_lea.vmem %s7, %s2373
      // Predicated region
      $region49: #{fcab_forward.4} parent=47 // pred_check
        %p2375 = pneg %p188
      $region50: #{fcab_forward.4} parent=47 // pred_check_branch
        %2377 = sbr.rel (%p2375) target = $region52
      $region51: #{fcab_forward.4} parent=47 // pred_region
        _
      $region52: #{fcab_forward.4} parent=47 // pred_fallthru
        _
    $region48: #{fcab_forward.4} parent=5 // pred_fallthru
      _
    %p2378 = scmp.le.s32.totalorder 2, %s13
    // Predicated region
    $region53: #{fcab_forward.4} parent=5 // pred_check
      %p2379 = pneg %p2378
    $region54: #{fcab_forward.4} parent=5 // pred_check_branch
      %2381 = sbr.rel (%p2379) target = $region56
    $region55: #{fcab_forward.4} parent=5 // pred_region
      %s2382 = ssub.s32 %s13, 2
      // Predicated region
      $region57: #{fcab_forward.4} parent=55 // pred_check
        %p2383 = pneg %p194
      $region58: #{fcab_forward.4} parent=55 // pred_check_branch
        %2385 = sbr.rel (%p2383) target = $region60
      $region59: #{fcab_forward.4} parent=55 // pred_region
        %p2386 = scmp.lt.s32.totalorder %s19, 1
        %s2387 = scalar_select %p2386, %s19, 1
        %s2388 = smul.addr %s2387, 4
        %s2389 = smul.addr %s2388, 8
        %s2390 = scalar_lea.vmem %s7, %s2389
      $region60: #{fcab_forward.4} parent=55 // pred_fallthru
        _
    $region56: #{fcab_forward.4} parent=5 // pred_fallthru
      _
  $region6: #{fcab_forward.4} parent=0 // loop_footer
    %s17 = sadd.s32 1, %s13
  $region7: #{fcab_forward.4} parent=0 // loop_footer_branch
    %12 = sbr.rel target = $region3
  $region8: #{fcab_forward.4} parent=0 // loop_exit
    _

// kernel: fcab_forward.5
$region0: #{fcab_forward.5}
  #allocation0 [shape = 'u32[]', space=smem, size = 0x4, offset = 0x4, fixed_abs, tag = 'smem constant byte address 0x4 - core index']
  #allocation1 [shape = 'u32[144,128]{1,0:T(1,128)}', space=vmem, size = 0x12000, scoped, tag = 'internal scratch']
  %s0 = inlined_call_operand.vmem [shape: f32[2,32,256], index: 0, kind: input, shape index: {}]
  %s1 = inlined_call_operand.vmem [shape: f32[2,32,1], index: 1, kind: input, shape index: {}]
  %s2 = inlined_call_operand.vmem [shape: f32[2,32,256], index: 2, kind: input, shape index: {}]
  %s3 = inlined_call_operand.vmem [shape: f32[2,32,256], index: 3, kind: output, shape index: {}]
  %s4 = sld [smem:[#allocation0]]
  $region45: #{fcab_forward.5} parent=0
    _
  %s6 = ssub.s32 1, %s4
  %s7 = scalar_select 0, %s6, %s4
  loop: start=0, step=1, limit=4
  $region2: #{fcab_forward.5} parent=0 // loop_pre_header
    _
  $region3: #{fcab_forward.5} parent=0 // loop_header
    %s9 = sphi 0, %s13
    %p10 = scmp.ge.s32.totalorder %s9, 4
    %s19 = sphi 0, %s21
    %s22 = sphi 0, %s19
    %s23 = sphi 0, %s22
    %s39 = sphi 0, %s23
    %s45 = sphi 0, %s47
    %s48 = sphi 0, %s45
    %s49 = sphi 0, %s48
    %s65 = sphi 0, %s49
    %s71 = sphi 0, %s73
    %s74 = sphi 0, %s71
    %s75 = sphi 0, %s74
    %s91 = sphi 0, %s75
    %s97 = sphi 0, %s99
    %s100 = sphi 0, %s97
    %s101 = sphi 0, %s100
    %s117 = sphi 0, %s101
  $region4: #{fcab_forward.5} parent=0 // loop_header_branch
    %12 = sbr.rel (%p10) target = $region8
  $region5: #{fcab_forward.5} parent=0 // loop_body
    %s14 = ssub.s32 %s9, 1
    %s15 = ssub.s32 %s9, 2
    %s16 = sadd.s32 %s9, 1
    %s17 = ssub.s32 %s9, %s16
    %p18 = scmp.eq.s32.totalorder %s17, 0
    %s20 = sadd.s32 %s19, 1
    %s21 = scalar_select %p18, %s19, %s20
    %p24 = pneg %p18
    %p25 = scmp.eq.s32.totalorder %s9, 1
    %p26 = por %p24, %p25
    %p27 = scmp.ne.s32.totalorder %s19, %s22
    %p28 = scmp.eq.s32.totalorder %s9, 0
    %p29 = por %p27, %p28
    %p30 = scmp.ne.s32.totalorder %s19, %s22
    %p31 = scmp.eq.s32.totalorder %s14, 1
    %p32 = por %p30, %p31
    %p33 = scmp.ne.s32.totalorder %s22, %s23
    %p34 = scmp.eq.s32.totalorder %s14, 0
    %p35 = por %p33, %p34
    %p36 = scmp.ne.s32.totalorder %s22, %s23
    %p37 = scmp.eq.s32.totalorder %s15, 1
    %p38 = por %p36, %p37
    %p40 = scmp.ne.s32.totalorder %s23, %s39
    %p41 = scmp.eq.s32.totalorder %s15, 0
    %p42 = por %p40, %p41
    %s43 = ssub.s32 %s9, %s16
    %p44 = scmp.eq.s32.totalorder %s43, 0
    %s46 = sadd.s32 %s45, 1
    %s47 = scalar_select %p44, %s45, %s46
    %p50 = pneg %p44
    %p51 = scmp.eq.s32.totalorder %s9, 1
    %p52 = por %p50, %p51
    %p53 = scmp.ne.s32.totalorder %s45, %s48
    %p54 = scmp.eq.s32.totalorder %s9, 0
    %p55 = por %p53, %p54
    %p56 = scmp.ne.s32.totalorder %s45, %s48
    %p57 = scmp.eq.s32.totalorder %s14, 1
    %p58 = por %p56, %p57
    %p59 = scmp.ne.s32.totalorder %s48, %s49
    %p60 = scmp.eq.s32.totalorder %s14, 0
    %p61 = por %p59, %p60
    %p62 = scmp.ne.s32.totalorder %s48, %s49
    %p63 = scmp.eq.s32.totalorder %s15, 1
    %p64 = por %p62, %p63
    %p66 = scmp.ne.s32.totalorder %s49, %s65
    %p67 = scmp.eq.s32.totalorder %s15, 0
    %p68 = por %p66, %p67
    %s69 = ssub.s32 %s9, %s16
    %p70 = scmp.eq.s32.totalorder %s69, 0
    %s72 = sadd.s32 %s71, 1
    %s73 = scalar_select %p70, %s71, %s72
    %p76 = pneg %p70
    %p77 = scmp.eq.s32.totalorder %s9, 1
    %p78 = por %p76, %p77
    %p79 = scmp.ne.s32.totalorder %s71, %s74
    %p80 = scmp.eq.s32.totalorder %s9, 0
    %p81 = por %p79, %p80
    %p82 = scmp.ne.s32.totalorder %s71, %s74
    %p83 = scmp.eq.s32.totalorder %s14, 1
    %p84 = por %p82, %p83
    %p85 = scmp.ne.s32.totalorder %s74, %s75
    %p86 = scmp.eq.s32.totalorder %s14, 0
    %p87 = por %p85, %p86
    %p88 = scmp.ne.s32.totalorder %s74, %s75
    %p89 = scmp.eq.s32.totalorder %s15, 1
    %p90 = por %p88, %p89
    %p92 = scmp.ne.s32.totalorder %s75, %s91
    %p93 = scmp.eq.s32.totalorder %s15, 0
    %p94 = por %p92, %p93
    %s95 = ssub.s32 %s9, %s16
    %p96 = scmp.eq.s32.totalorder %s95, 0
    %s98 = sadd.s32 %s97, 1
    %s99 = scalar_select %p96, %s97, %s98
    %p102 = pneg %p96
    %p103 = scmp.eq.s32.totalorder %s9, 1
    %p104 = por %p102, %p103
    %p105 = scmp.ne.s32.totalorder %s97, %s100
    %p106 = scmp.eq.s32.totalorder %s9, 0
    %p107 = por %p105, %p106
    %p108 = scmp.ne.s32.totalorder %s97, %s100
    %p109 = scmp.eq.s32.totalorder %s14, 1
    %p110 = por %p108, %p109
    %p111 = scmp.ne.s32.totalorder %s100, %s101
    %p112 = scmp.eq.s32.totalorder %s14, 0
    %p113 = por %p111, %p112
    %p114 = scmp.ne.s32.totalorder %s100, %s101
    %p115 = scmp.eq.s32.totalorder %s15, 1
    %p116 = por %p114, %p115
    %p118 = scmp.ne.s32.totalorder %s101, %s117
    %p119 = scmp.eq.s32.totalorder %s15, 0
    %p120 = por %p118, %p119
    %p121 = scmp.le.s32.totalorder 1, %s9
    %p122 = scmp.lt.s32.totalorder %s9, 3
    %p123 = pnand %p121, %p122
    %p124 = pneg %p123
    // Predicated region
    $region9: #{fcab_forward.5} parent=5 // pred_check
      _
    $region10: #{fcab_forward.5} parent=5 // pred_check_branch
      %126 = sbr.rel (%p123) target = $region12
    $region11: #{fcab_forward.5} parent=5 // pred_region
      %s127 = ssub.s32 %s9, 1
    $region12: #{fcab_forward.5} parent=5 // pred_fallthru
      _
    %p128 = scmp.lt.s32.totalorder %s9, 2
    // Predicated region
    $region13: #{fcab_forward.5} parent=5 // pred_check
      %p129 = pneg %p128
    $region14: #{fcab_forward.5} parent=5 // pred_check_branch
      %131 = sbr.rel (%p129) target = $region16
    $region15: #{fcab_forward.5} parent=5 // pred_region
      // Predicated region
      $region17: #{fcab_forward.5} parent=15 // pred_check
        %p132 = pneg %p29
      $region18: #{fcab_forward.5} parent=15 // pred_check_branch
        %134 = sbr.rel (%p132) target = $region20
      $region19: #{fcab_forward.5} parent=15 // pred_region
        %p135 = scmp.lt.s32.totalorder %s9, 1
        %s136 = scalar_select %p135, %s9, 1
        %s137 = smul.addr %s136, 8
        %s138 = smul.addr %s137, 8
        %s139 = scalar_lea.vmem %s0, %s138
      $region20: #{fcab_forward.5} parent=15 // pred_fallthru
        _
      // Predicated region
      $region21: #{fcab_forward.5} parent=15 // pred_check
        %p140 = pneg %p55
      $region22: #{fcab_forward.5} parent=15 // pred_check_branch
        %142 = sbr.rel (%p140) target = $region24
      $region23: #{fcab_forward.5} parent=15 // pred_region
        %p143 = scmp.lt.s32.totalorder %s9, 1
        %s144 = scalar_select %p143, %s9, 1
        %s145 = smul.addr %s144, 4
        %s146 = smul.addr %s145, 8
        %s147 = scalar_lea.vmem %s1, %s146
      $region24: #{fcab_forward.5} parent=15 // pred_fallthru
        _
      // Predicated region
      $region25: #{fcab_forward.5} parent=15 // pred_check
        %p148 = pneg %p81
      $region26: #{fcab_forward.5} parent=15 // pred_check_branch
        %150 = sbr.rel (%p148) target = $region28
      $region27: #{fcab_forward.5} parent=15 // pred_region
        %p151 = scmp.lt.s32.totalorder %s9, 1
        %s152 = scalar_select %p151, %s9, 1
        %s153 = smul.addr %s152, 8
        %s154 = smul.addr %s153, 8
        %s155 = scalar_lea.vmem %s2, %s154
      $region28: #{fcab_forward.5} parent=15 // pred_fallthru
        _
    $region16: #{fcab_forward.5} parent=5 // pred_fallthru
      _
    %p156 = scmp.le.s32.totalorder 1, %s9
    %p157 = scmp.lt.s32.totalorder %s9, 3
    %p158 = pnand %p156, %p157
    %p159 = pneg %p158
    // Predicated region
    $region29: #{fcab_forward.5} parent=5 // pred_check
      _
    $region30: #{fcab_forward.5} parent=5 // pred_check_branch
      %161 = sbr.rel (%p158) target = $region32
    $region31: #{fcab_forward.5} parent=5 // pred_region
      %s162 = ssub.s32 %s9, 1
      %p163 = scmp.lt.s32.totalorder %s14, 1
      %s164 = scalar_select %p163, %s14, 1
      %s165 = smul.addr %s164, 8
      %s166 = smul.addr %s165, 8
      %s167 = scalar_lea.vmem %s0, %s166
      %p168 = pneg %p35
      %p169 = pneg %p32
      %p170 = scmp.lt.s32.totalorder %s14, 1
      %s171 = scalar_select %p170, %s14, 1
      %s172 = smul.addr %s171, 4
      %s173 = smul.addr %s172, 8
      %s174 = scalar_lea.vmem %s1, %s173
      %p175 = pneg %p61
      %p176 = pneg %p58
      %p177 = scmp.lt.s32.totalorder %s14, 1
      %s178 = scalar_select %p177, %s14, 1
      %s179 = smul.addr %s178, 8
      %s180 = smul.addr %s179, 8
      %s181 = scalar_lea.vmem %s2, %s180
      %p182 = pneg %p87
      %p183 = pneg %p84
      %p184 = pneg %p113
      %p185 = pneg %p110
      %p186 = scmp.lt.s32.totalorder %s14, 1
      %s187 = scalar_select %p186, %s14, 1
      %s188 = smul.addr %s187, 8
      %s189 = smul.addr %s188, 8
      %s190 = scalar_lea.vmem %s3, %s189
      %p191 = scmp.lt.s32.totalorder %s14, 1
      %s192 = scalar_select %p191, %s14, 1
      %s193 = smul.addr %s192, 8
      %s194 = smul.addr %s193, 8
      %s195 = scalar_lea.vmem %s0, %s194
      %p196 = scmp.lt.s32.totalorder %s14, 1
      %s197 = scalar_select %p196, %s14, 1
      %s198 = smul.addr %s197, 4
      %s199 = smul.addr %s198, 8
      %s200 = scalar_lea.vmem %s1, %s199
      %p201 = scmp.lt.s32.totalorder %s14, 1
      %s202 = scalar_select %p201, %s14, 1
      %s203 = smul.addr %s202, 8
      %s204 = smul.addr %s203, 8
      %s205 = scalar_lea.vmem %s2, %s204
      %p206 = scmp.lt.s32.totalorder %s14, 1
      %s207 = scalar_select %p206, %s14, 1
      %s208 = smul.addr %s207, 8
      %s209 = smul.addr %s208, 8
      %s210 = scalar_lea.vmem %s3, %s209
      %v211 = vld [vmem:[%s200] sm:$0xff]
      %v212 = vld [vmem:[%s200 + $0x8] sm:$0xff]
      %v213 = vld [vmem:[%s200 + $0x10] sm:$0xff]
      %v214 = vld [vmem:[%s200 + $0x18] sm:$0xff]
      %v215 = vld [vmem:[%s195] sm:$0xff]
      %v216 = vld [vmem:[%s195 + $0x8] sm:$0xff]
      %v217 = vld [vmem:[%s195 + $0x10] sm:$0xff]
      %v218 = vld [vmem:[%s195 + $0x18] sm:$0xff]
      %v219 = vld [vmem:[%s195 + $0x20] sm:$0xff]
      %v220 = vld [vmem:[%s195 + $0x28] sm:$0xff]
      %v221 = vld [vmem:[%s195 + $0x30] sm:$0xff]
      %v222 = vld [vmem:[%s195 + $0x38] sm:$0xff]
      %224 = vset.pattern.permute.xlu0 0
      %225 = vperm.xlu0 %224, %v211
      %v226 = vpop.permute.xlu0 %225
      %229 = vset.pattern.permute.xlu0 0
      %230 = vperm.xlu0 %229, %v212
      %v231 = vpop.permute.xlu0 %230
      %234 = vset.pattern.permute.xlu0 0
      %235 = vperm.xlu0 %234, %v213
      %v236 = vpop.permute.xlu0 %235
      %239 = vset.pattern.permute.xlu0 0
      %240 = vperm.xlu0 %239, %v214
      %v241 = vpop.permute.xlu0 %240
      %v243 = vmul.f32 %v226, %v215
      %v244 = vmul.f32 %v226, %v216
      %v245 = vmul.f32 %v231, %v217
      %v246 = vmul.f32 %v231, %v218
      %v247 = vmul.f32 %v236, %v219
      %v248 = vmul.f32 %v236, %v220
      %v249 = vmul.f32 %v241, %v221
      %v250 = vmul.f32 %v241, %v222
      %v251 = vld [vmem:[%s205] sm:$0xff]
      %v252 = vld [vmem:[%s205 + $0x8] sm:$0xff]
      %v253 = vld [vmem:[%s205 + $0x10] sm:$0xff]
      %v254 = vld [vmem:[%s205 + $0x18] sm:$0xff]
      %v255 = vld [vmem:[%s205 + $0x20] sm:$0xff]
      %v256 = vld [vmem:[%s205 + $0x28] sm:$0xff]
      %v257 = vld [vmem:[%s205 + $0x30] sm:$0xff]
      %v258 = vld [vmem:[%s205 + $0x38] sm:$0xff]
      %v259 = vadd.f32 %v243, %v251
      %v260 = vadd.f32 %v244, %v252
      %v261 = vadd.f32 %v245, %v253
      %v262 = vadd.f32 %v246, %v254
      %v263 = vadd.f32 %v247, %v255
      %v264 = vadd.f32 %v248, %v256
      %v265 = vadd.f32 %v249, %v257
      %v266 = vadd.f32 %v250, %v258
      %267 = vst [vmem:[%s210] sm:$0xff] %v259
      %268 = vst [vmem:[%s210 + $0x8] sm:$0xff] %v260
      %269 = vst [vmem:[%s210 + $0x10] sm:$0xff] %v261
      %270 = vst [vmem:[%s210 + $0x18] sm:$0xff] %v262
      %271 = vst [vmem:[%s210 + $0x20] sm:$0xff] %v263
      %272 = vst [vmem:[%s210 + $0x28] sm:$0xff] %v264
      %273 = vst [vmem:[%s210 + $0x30] sm:$0xff] %v265
      %274 = vst [vmem:[%s210 + $0x38] sm:$0xff] %v266
      %p275 = scmp.lt.s32.totalorder %s14, 1
      %s276 = scalar_select %p275, %s14, 1
      %s277 = smul.addr %s276, 8
      %s278 = smul.addr %s277, 8
      %s279 = scalar_lea.vmem %s3, %s278
      // Predicated region
      $region33: #{fcab_forward.5} parent=31 // pred_check
        %p280 = pneg %p110
      $region34: #{fcab_forward.5} parent=31 // pred_check_branch
        %282 = sbr.rel (%p280) target = $region36
      $region35: #{fcab_forward.5} parent=31 // pred_region
        _
      $region36: #{fcab_forward.5} parent=31 // pred_fallthru
        _
    $region32: #{fcab_forward.5} parent=5 // pred_fallthru
      _
    %p283 = scmp.le.s32.totalorder 2, %s9
    // Predicated region
    $region37: #{fcab_forward.5} parent=5 // pred_check
      %p284 = pneg %p283
    $region38: #{fcab_forward.5} parent=5 // pred_check_branch
      %286 = sbr.rel (%p284) target = $region40
    $region39: #{fcab_forward.5} parent=5 // pred_region
      %s287 = ssub.s32 %s9, 2
      // Predicated region
      $region41: #{fcab_forward.5} parent=39 // pred_check
        %p288 = pneg %p116
      $region42: #{fcab_forward.5} parent=39 // pred_check_branch
        %290 = sbr.rel (%p288) target = $region44
      $region43: #{fcab_forward.5} parent=39 // pred_region
        %p291 = scmp.lt.s32.totalorder %s15, 1
        %s292 = scalar_select %p291, %s15, 1
        %s293 = smul.addr %s292, 8
        %s294 = smul.addr %s293, 8
        %s295 = scalar_lea.vmem %s3, %s294
      $region44: #{fcab_forward.5} parent=39 // pred_fallthru
        _
    $region40: #{fcab_forward.5} parent=5 // pred_fallthru
      _
  $region6: #{fcab_forward.5} parent=0 // loop_footer
    %s13 = sadd.s32 1, %s9
  $region7: #{fcab_forward.5} parent=0 // loop_footer_branch
    %8 = sbr.rel target = $region3
  $region8: #{fcab_forward.5} parent=0 // loop_exit
    _

</llo_original>
